<compile_context>
chip_gen: v5e
topology: v5e:2x2
jax: 0.10.0
libtpu: 0.0.40
codegen_flags: <defaults>
</compile_context>

<pallas_src>
import functools

import jax
import jax.numpy as jnp
from jax import lax
from jax.experimental import pallas as pl
from jax.experimental.pallas import tpu as pltpu


# ----------------------------- tiling helpers -----------------------------

def _fit_tile(dim, target, align):
    """Largest tile <= target that divides `dim` and is a multiple of `align`;
    falls back to the full dim (always a legal full-extent BlockSpec block).
    NOTE: the fallback can be large for awkward/prime dims — acceptable here."""
    if dim <= target:
        return dim
    t = (target // align) * align
    while t >= align:
        if dim % t == 0:
            return t
        t -= align
    return dim


def _attn_tiles(H, T, hd, budget=12 << 20):
    """Pick (head group G, q tile, kv tile) under a per-step VMEM budget.
    G must be a multiple of 8 or equal to H (BlockSpec (8,128) rule)."""
    tq = _fit_tile(T, 256, 8)
    tkv = _fit_tile(T, 512, 128)

    def ws(g, kv):
        blocks = 2 * g * (tq + 2 * kv) * hd * 2          # double-buffered bf16 q/k/v
        scr = g * tq * (4 * hd + 2 * hd + 2 * 4 * 128)    # acc f32 + qs bf16 + m/l (lane pad)
        score = g * tq * kv * 4                           # per-head score matrix (transient)
        out = 2 * g * tq * hd * 2                         # double-buffered bf16 out
        return blocks + scr + score + out

    cands = sorted({H} | {g for g in range(8, H, 8) if H % g == 0})
    G = cands[0]
    for g in cands:
        if ws(g, tkv) <= budget:
            G = g
    while ws(G, tkv) > budget and tkv % 256 == 0:
        tkv //= 2
    return G, tq, tkv


def _moe_tiles(N, D, H, budget):
    """H-tile keeps double-buffered expert weights small (v7x 64 MiB VMEM);
    token tile grows into the remaining budget (bigger on v6e per review)."""
    th = _fit_tile(H, max(128, (budget // 3) // (12 * D)), 128)
    w_bytes = 12 * D * th
    tn = _fit_tile(N, max(64, (budget - w_bytes) // (24 * D)), 8)
    return tn, th


# -------------------- linear (tiled matmul + fused epilogue) --------------------

def _make_linear_kernel(has_bias, has_res):
    def kernel(*refs):
        x_ref, w_ref = refs[0], refs[1]
        idx = 2
        b_ref = r_ref = None
        if has_bias:
            b_ref = refs[idx]
            idx += 1
        if has_res:
            r_ref = refs[idx]
            idx += 1
        o_ref, acc_ref = refs[idx], refs[idx + 1]

        k = pl.program_id(2)

        @pl.when(k == 0)
        def _():
            acc_ref[...] = jnp.zeros_like(acc_ref)

        acc_ref[...] += jnp.dot(
            x_ref[...].astype(jnp.bfloat16),
            w_ref[...].astype(jnp.bfloat16),
            preferred_element_type=jnp.float32)

        @pl.when(k == pl.num_programs(2) - 1)
        def _():
            out = acc_ref[...]
            if has_bias:
                out = out + b_ref[...]
            if has_res:
                out = out + r_ref[...].astype(jnp.float32)
            o_ref[...] = out.astype(o_ref.dtype)

    return kernel


def linear(x, w, b=None, residual=None, *, out_dtype=jnp.float32,
           tm=512, tn=512, tk=512):
    """x: (M, K) (bf16 or f32); w: (K, N) bf16 (torch weight transposed);
    b: (N,) or None; residual: (M, N) f32 or None (fused into the epilogue)."""
    M, K = x.shape
    N = w.shape[1]
    tm = _fit_tile(M, tm, 8)
    tn = _fit_tile(N, tn, 128)
    tk = _fit_tile(K, tk, 128)
    grid = (M // tm, N // tn, K // tk)

    in_specs = [pl.BlockSpec((tm, tk), lambda i, j, k: (i, k)),
                pl.BlockSpec((tk, tn), lambda i, j, k: (k, j))]
    args = [x, w]
    if b is not None:
        in_specs.append(pl.BlockSpec((1, tn), lambda i, j, k: (0, j)))
        args.append(b.reshape(1, N).astype(jnp.float32))
    if residual is not None:
        in_specs.append(pl.BlockSpec((tm, tn), lambda i, j, k: (i, j)))
        args.append(residual)

    return pl.pallas_call(
        _make_linear_kernel(b is not None, residual is not None),
        out_shape=jax.ShapeDtypeStruct((M, N), out_dtype),
        grid=grid,
        in_specs=in_specs,
        out_specs=pl.BlockSpec((tm, tn), lambda i, j, k: (i, j)),
        scratch_shapes=[pltpu.VMEM((tm, tn), jnp.float32)],
        compiler_params=pltpu.CompilerParams(
            dimension_semantics=("parallel", "parallel", "arbitrary")),
    )(*args)


# ----------------------------- layernorm (row-tiled, bf16 out) -----------------------------

def _layernorm_kernel(x_ref, g_ref, b_ref, o_ref):
    x = x_ref[...].astype(jnp.float32)
    mu = jnp.mean(x, axis=-1, keepdims=True)
    var = jnp.mean(jnp.square(x - mu), axis=-1, keepdims=True)
    o_ref[...] = ((x - mu) * lax.rsqrt(var + 1e-5) * g_ref[...] + b_ref[...]
                  ).astype(o_ref.dtype)


def layernorm(x, g, b, *, tm=256, out_dtype=jnp.bfloat16):
    """x: (M, D); g, b: (D,). Matches nn.LayerNorm(eps=1e-5); bf16 output by default
    (consumers are bf16 matmuls, halves HBM write+read traffic)."""
    M, D = x.shape
    tm = _fit_tile(M, tm, 8)
    return pl.pallas_call(
        _layernorm_kernel,
        out_shape=jax.ShapeDtypeStruct((M, D), out_dtype),
        grid=(M // tm,),
        in_specs=[pl.BlockSpec((tm, D), lambda i: (i, 0)),
                  pl.BlockSpec((1, D), lambda i: (0, 0)),
                  pl.BlockSpec((1, D), lambda i: (0, 0))],
        out_specs=pl.BlockSpec((tm, D), lambda i: (i, 0)),
        compiler_params=pltpu.CompilerParams(dimension_semantics=("parallel",)),
    )(x, g.reshape(1, D), b.reshape(1, D))


# ---------------- attention (fused RoPE, head-grouped, flash KV tiling) ----------------

def _attn_kernel(q_ref, k_ref, v_ref, cq_ref, sq_ref, ck_ref, sk_ref, o_ref,
                 qs_ref, m_ref, l_ref, acc_ref, *, G, hd):
    ki = pl.program_id(3)
    h2 = hd // 2

    @pl.when(ki == 0)
    def _():
        m_ref[...] = jnp.full_like(m_ref, -jnp.inf)
        l_ref[...] = jnp.zeros_like(l_ref)
        acc_ref[...] = jnp.zeros_like(acc_ref)
        # Rotate + scale q once per q tile (cos/sin for q already carry 1/sqrt(hd)).
        cq = cq_ref[...]                              # (tq, h2) f32
        sq = sq_ref[...]
        qb = q_ref[...][0, :, 0]                      # (tq, G, hd) bf16
        for g in range(G):
            q = qb[:, g, :].astype(jnp.float32)       # (tq, hd)
            q1, q2 = q[:, :h2], q[:, h2:]
            qs_ref[g] = jnp.concatenate(
                [q1 * cq - q2 * sq, q2 * cq + q1 * sq], axis=-1).astype(qs_ref.dtype)

    ck = ck_ref[...]                                  # (tkv, h2) f32
    sk = sk_ref[...]
    kb = k_ref[...][0, :, 0]                          # (tkv, G, hd) bf16
    vb = v_ref[...][0, :, 0]                          # (tkv, G, hd) bf16
    for g in range(G):
        k = kb[:, g, :].astype(jnp.float32)           # (tkv, hd)
        k1, k2 = k[:, :h2], k[:, h2:]
        kr = jnp.concatenate([k1 * ck - k2 * sk, k2 * ck + k1 * sk],
                             axis=-1).astype(jnp.bfloat16)
        # Transpose-free QK^T: contract the last dims of both operands.
        s = lax.dot_general(qs_ref[g], kr, (((1,), (1,)), ((), ())),
                            preferred_element_type=jnp.float32)          # (tq, tkv)
        m_prev = m_ref[g]
        m_new = jnp.maximum(m_prev, jnp.max(s, axis=-1, keepdims=True))
        alpha = jnp.exp(m_prev - m_new)
        p = jnp.exp(s - m_new)
        l_ref[g] = alpha * l_ref[g] + jnp.sum(p, axis=-1, keepdims=True)
        acc_ref[g] = alpha * acc_ref[g] + jnp.dot(
            p.astype(jnp.bfloat16), vb[:, g, :], preferred_element_type=jnp.float32)
        m_ref[g] = m_new

    @pl.when(ki == pl.num_programs(3) - 1)
    def _():
        for g in range(G):
            o_ref[0, :, g, :] = (acc_ref[g] / l_ref[g]).astype(o_ref.dtype)


def attention_rope(qkv, cos_q, sin_q, cos_k, sin_k, *, out_dtype=jnp.bfloat16):
    """qkv: (B, T, 3, H, hd) bf16 whose q/k columns were permuted evens-first per head
    (so torchtune's interleaved RoPE becomes a rotate-half here — see init_params()).
    cos_q/sin_q: (T, hd/2) f32 with 1/sqrt(hd) folded in; cos_k/sin_k: (T, hd/2) f32.
    Returns non-causal SDPA output in (B, T, H, hd), out_dtype."""
    B, T, three, H, hd = qkv.shape
    assert three == 3
    G, tq, tkv = _attn_tiles(H, T, hd)
    grid = (B, H // G, T // tq, T // tkv)   # B leading => both v7x TensorCores busy.

    qspec = pl.BlockSpec((1, tq, 1, G, hd), lambda b, h, qi, ki: (b, qi, 0, h, 0))
    kspec = pl.BlockSpec((1, tkv, 1, G, hd), lambda b, h, qi, ki: (b, ki, 1, h, 0))
    vspec = pl.BlockSpec((1, tkv, 1, G, hd), lambda b, h, qi, ki: (b, ki, 2, h, 0))
    cq_spec = pl.BlockSpec((tq, hd // 2), lambda b, h, qi, ki: (qi, 0))
    ck_spec = pl.BlockSpec((tkv, hd // 2), lambda b, h, qi, ki: (ki, 0))
    out_spec = pl.BlockSpec((1, tq, G, hd), lambda b, h, qi, ki: (b, qi, h, 0))

    kernel = functools.partial(_attn_kernel, G=G, hd=hd)
    return pl.pallas_call(
        kernel,
        out_shape=jax.ShapeDtypeStruct((B, T, H, hd), out_dtype),
        grid=grid,
        in_specs=[qspec, kspec, vspec, cq_spec, cq_spec, ck_spec, ck_spec],
        out_specs=out_spec,
        scratch_shapes=[pltpu.VMEM((G, tq, hd), jnp.bfloat16),   # rotated + scaled q
                        pltpu.VMEM((G, tq, 1), jnp.float32),     # running max
                        pltpu.VMEM((G, tq, 1), jnp.float32),     # running denom
                        pltpu.VMEM((G, tq, hd), jnp.float32)],   # running accumulator
        compiler_params=pltpu.CompilerParams(
            dimension_semantics=("parallel", "parallel", "parallel", "arbitrary")),
    )(qkv, qkv, qkv, cos_q, sin_q, cos_k, sin_k)


# ---------------- MoE experts (dense masked combine, token x expert x H tiling) ----------------

def _moe_kernel(x_ref, w1a_ref, w1b_ref, w2_ref, cw_ref, r_ref, o_ref, acc_ref):
    e = pl.program_id(1)
    h = pl.program_id(2)

    @pl.when((e == 0) & (h == 0))
    def _():
        acc_ref[...] = jnp.zeros_like(acc_ref)

    x = x_ref[...].astype(jnp.bfloat16)                                   # (tn, D), already bf16
    a = jnp.dot(x, w1a_ref[0], preferred_element_type=jnp.float32)        # (tn, th)
    b = jnp.dot(x, w1b_ref[0], preferred_element_type=jnp.float32)        # (tn, th)
    g = a * jax.nn.sigmoid(a) * b                                         # silu(a) * b

    # Lane-dense combine weights (tn, E); pick this expert's column with a tiny masked
    # cross-lane reduce and fold it into g before the 2nd matmul: cw*(g@w2) == (cw*g)@w2.
    cw_all = cw_ref[...]
    eids = lax.broadcasted_iota(jnp.int32, cw_all.shape, 1)
    cw = jnp.sum(jnp.where(eids == e, cw_all, 0.0), axis=1, keepdims=True)  # (tn, 1)
    g = (g * cw).astype(jnp.bfloat16)

    acc_ref[...] += jnp.dot(g, w2_ref[0], preferred_element_type=jnp.float32)

    @pl.when((e == pl.num_programs(1) - 1) & (h == pl.num_programs(2) - 1))
    def _():
        o_ref[...] = (acc_ref[...] + r_ref[...]).astype(o_ref.dtype)


def moe_experts(x, w1a, w1b, w2, combine, residual, *, budget=32 << 20):
    """x: (N, D) bf16; w1a/w1b: (E, D, H) bf16; w2: (E, H, D) bf16;
    combine: (N, E) gate weights (0 for unselected experts); residual: (N, D) f32.
    Returns residual + sum_e combine[:, e] * Expert_e(x)."""
    N, D = x.shape
    E, _, H = w1a.shape
    tn, th = _moe_tiles(N, D, H, budget)
    grid = (N // tn, E, H // th)
    return pl.pallas_call(
        _moe_kernel,
        out_shape=jax.ShapeDtypeStruct((N, D), jnp.float32),
        grid=grid,
        in_specs=[pl.BlockSpec((tn, D), lambda i, e, h: (i, 0)),
                  pl.BlockSpec((1, D, th), lambda i, e, h: (e, 0, h)),
                  pl.BlockSpec((1, D, th), lambda i, e, h: (e, 0, h)),
                  pl.BlockSpec((1, th, D), lambda i, e, h: (e, h, 0)),
                  pl.BlockSpec((tn, E), lambda i, e, h: (i, 0)),
                  pl.BlockSpec((tn, D), lambda i, e, h: (i, 0))],
        out_specs=pl.BlockSpec((tn, D), lambda i, e, h: (i, 0)),
        scratch_shapes=[pltpu.VMEM((tn, D), jnp.float32)],
        compiler_params=pltpu.CompilerParams(
            dimension_semantics=("parallel", "arbitrary", "arbitrary"),
            vmem_limit_bytes=48 << 20),
    )(x, w1a, w1b, w2, combine.astype(jnp.float32), residual)


# ----------------------------- JAX glue (RoPE tables, routing, assembly) -----------------------------

def rope_tables(T, hd, scale, base=10000.0):
    """torchtune RoPE angle tables, (T, hd/2). q tables carry the 1/sqrt(hd) scale so the
    attention kernel never multiplies the (tq, tkv) score matrix."""
    theta = 1.0 / (base ** (jnp.arange(0, hd, 2, dtype=jnp.float32) / hd))
    pos = jnp.arange(T, dtype=jnp.float32)
    ang = pos[:, None] * theta[None, :]
    cos, sin = jnp.cos(ang), jnp.sin(ang)
    return cos * scale, sin * scale, cos, sin


def block_forward(x2, blk, rope, *, B, T, n_heads, top_k):
    BT, D = x2.shape
    hd = D // n_heads
    E = blk['gate_w'].shape[1]
    cos_q, sin_q, cos_k, sin_k = rope

    # --- attention sublayer: x = x + out_proj(attn(LN(x)))  (residual fused) ---
    h = layernorm(x2, blk['attn_norm_g'], blk['attn_norm_b'])             # (BT, D) bf16
    qkv = linear(h, blk['qkv_w'], out_dtype=jnp.bfloat16)                 # (BT, 3D) bf16
    qkv = qkv.reshape(B, T, 3, n_heads, hd)                               # free (contiguous)
    attn = attention_rope(qkv, cos_q, sin_q, cos_k, sin_k)                # (B, T, H, hd) bf16
    x2 = linear(attn.reshape(BT, D), blk['out_w'], residual=x2)           # f32 residual stream

    # --- MoE FFN sublayer: x = x + MoE(LN(x))  (residual fused) ---
    hn = layernorm(x2, blk['ffn_norm_g'], blk['ffn_norm_b'])              # (BT, D) bf16
    # gate(x) + expert_biases, with the bias fused into the matmul epilogue.
    gate_scores = linear(hn, blk['gate_w'], b=blk['expert_biases'])       # (BT, E) f32
    topk_vals, topk_idx = lax.top_k(gate_scores, top_k)
    topk_gates = jax.nn.softmax(topk_vals, axis=-1)
    sel = jax.nn.one_hot(topk_idx, E, dtype=jnp.float32)                  # (BT, k, E)
    combine = jnp.sum(sel * topk_gates[..., None], axis=1)                # (BT, E) lane-dense
    x2 = moe_experts(hn, blk['w1a'], blk['w1b'], blk['w2'], combine, x2)

    # load-balancing loss (tiny num_experts-sized reduction, kept in plain JAX)
    expert_usage = jnp.sum(sel, axis=(0, 1))                              # (E,)
    expert_probs = jnp.mean(jax.nn.softmax(gate_scores, axis=-1), axis=0)
    usage_ratio = expert_usage / jnp.sum(expert_usage)
    prob_ratio = expert_probs / jnp.sum(expert_probs)
    lb_loss = jnp.sum(usage_ratio * prob_ratio) * E
    return x2, lb_loss


def moe_model_forward(tokens, params, *, n_heads, top_k, max_seq_len):
    B, T = tokens.shape
    D = params['embed'].shape[1]
    hd = D // n_heads
    rope = rope_tables(T, hd, float(hd) ** -0.5)
    x2 = jnp.take(params['embed'], tokens, axis=0).reshape(B * T, D)      # (BT, D) f32
    total_lb = jnp.float32(0.0)
    for blk in params['blocks']:
        x2, lb = block_forward(x2, blk, rope, B=B, T=T, n_heads=n_heads, top_k=top_k)
        total_lb = total_lb + lb
    xf = layernorm(x2, params['final_norm_g'], params['final_norm_b'])    # bf16
    # num_tasks == 0 path -> sequence_head (Linear with bias, fused into matmul epilogue)
    logits = linear(xf, params['head_w'], params['head_b'])
    return logits.reshape(B, T, -1), total_lb


# ----------------------------- deterministic init -----------------------------

def init_params(key, *, vocab, D, n_blocks, n_heads, ffn_h, E, out_dim):
    hd = D // n_heads
    ks = iter(jax.random.split(key, 8 + 8 * n_blocks))

    def u(k, shape, fan_in, dtype=jnp.bfloat16):
        bound = 1.0 / (fan_in ** 0.5)
        return jax.random.uniform(k, shape, jnp.float32, -bound, bound).astype(dtype)

    # Evens-first permutation of each head's hd columns for the q and k projections:
    # turns torchtune's interleaved-pair RoPE into a rotate-half inside the attention
    # kernel (no in-kernel deinterleave). q.k^T is invariant under a shared permutation
    # of hd and v is untouched, so the module output is unchanged. Torch checkpoints
    # would need the same one-time column permutation.
    perm = jnp.concatenate([jnp.arange(0, hd, 2), jnp.arange(1, hd, 2)])

    def make_qkv(k):
        w = u(k, (D, 3 * D), D).reshape(D, 3, n_heads, hd)
        wq = w[:, 0][..., perm]
        wk = w[:, 1][..., perm]
        return jnp.stack([wq, wk, w[:, 2]], axis=1).reshape(D, 3 * D)

    params = {'embed': jax.random.normal(next(ks), (vocab, D), jnp.float32)}
    blocks = []
    for _ in range(n_blocks):
        blocks.append({
            'attn_norm_g': jnp.ones((D,), jnp.float32),
            'attn_norm_b': jnp.zeros((D,), jnp.float32),
            'qkv_w': make_qkv(next(ks)),                  # stored (in, out), bf16
            'out_w': u(next(ks), (D, D), D),
            'ffn_norm_g': jnp.ones((D,), jnp.float32),
            'ffn_norm_b': jnp.zeros((D,), jnp.float32),
            'gate_w': u(next(ks), (D, E), D),
            'w1a': u(next(ks), (E, D, ffn_h), D),         # Expert.linear1 first half (x1 path)
            'w1b': u(next(ks), (E, D, ffn_h), D),         # Expert.linear1 second half (x2 path)
            'w2': u(next(ks), (E, ffn_h, D), ffn_h),      # Expert.linear2 (per expert, transposed)
            'expert_biases': jnp.zeros((E,), jnp.float32),
        })
    params['blocks'] = blocks
    params['final_norm_g'] = jnp.ones((D,), jnp.float32)
    params['final_norm_b'] = jnp.zeros((D,), jnp.float32)
    params['head_w'] = u(next(ks), (D, out_dim), D)
    params['head_b'] = u(next(ks), (out_dim,), D, dtype=jnp.float32)
    return params


# ----------------------------- main -----------------------------

if __name__ == "__main__":
    VOCAB, EMBED_D, N_BLOCKS, N_HEADS = 64, 32, 2, 4
    FFN_H, N_EXPERTS, TOP_K, OUT_DIM, MAX_SEQ = 16, 4, 2, 16, 16
    B, T = 2, 8

    key = jax.random.PRNGKey(0)
    kp, kt = jax.random.split(key)
    params = init_params(kp, vocab=VOCAB, D=EMBED_D, n_blocks=N_BLOCKS,
                         n_heads=N_HEADS, ffn_h=FFN_H, E=N_EXPERTS, out_dim=OUT_DIM)
    tokens = jax.random.randint(kt, (B, T), 0, VOCAB)

    fwd = jax.jit(functools.partial(moe_model_forward, n_heads=N_HEADS,
                                    top_k=TOP_K, max_seq_len=MAX_SEQ))
    logits, lb_loss = fwd(tokens, params)
    jax.block_until_ready((logits, lb_loss))

    assert logits.shape == (B, T, OUT_DIM)
    assert lb_loss.shape == ()
    assert bool(jnp.all(jnp.isfinite(logits)))
    print("KERNEL_OK")
</pallas_src>

<mosaic_0001>
module attributes {stable_mosaic.version = 11 : i64} {
  func.func @_layernorm_kernel(%arg0: i32, %arg1: memref<16x32xf32, #tpu.memory_space<vmem>>, %arg2: memref<1x32xf32, #tpu.memory_space<vmem>>, %arg3: memref<1x32xf32, #tpu.memory_space<vmem>>, %arg4: memref<16x32xbf16, #tpu.memory_space<vmem>>) attributes {dimension_semantics = [#tpu.dimension_semantics<parallel>], iteration_bounds = array<i64: 1>, scalar_prefetch = 0 : i64, scratch_operands = 0 : i64, tpu.core_type = #tpu.core_type<tc>, window_params = [{transform_indices = @transform_0, window_bounds = array<i64: 16, 32>}, {pipeline_mode = #tpu.pipeline_mode<synchronous>, transform_indices = @transform_1, window_bounds = array<i64: 1, 32>}, {pipeline_mode = #tpu.pipeline_mode<synchronous>, transform_indices = @transform_2, window_bounds = array<i64: 1, 32>}, {transform_indices = @transform_3, window_bounds = array<i64: 16, 32>}]} {
    %c0 = arith.constant 0 : index
    %c0_0 = arith.constant 0 : index
    %0 = vector.load %arg1[%c0, %c0_0] : memref<16x32xf32, #tpu.memory_space<vmem>>, vector<16x32xf32>
    %cst = arith.constant dense<0.000000e+00> : vector<16xf32>
    %1 = vector.multi_reduction <add>, %0, %cst [1] : vector<16x32xf32> to vector<16xf32>
    %2 = vector.shape_cast %1 : vector<16xf32> to vector<16x1xf32>
    %cst_1 = arith.constant 3.200000e+01 : f32
    %3 = vector.broadcast %cst_1 : f32 to vector<16x1xf32>
    %4 = arith.divf %2, %3 : vector<16x1xf32>
    %5 = vector.broadcast %4 : vector<16x1xf32> to vector<16x32xf32>
    %6 = arith.subf %0, %5 : vector<16x32xf32>
    %7 = arith.mulf %6, %6 : vector<16x32xf32>
    %cst_2 = arith.constant dense<0.000000e+00> : vector<16xf32>
    %8 = vector.multi_reduction <add>, %7, %cst_2 [1] : vector<16x32xf32> to vector<16xf32>
    %9 = vector.shape_cast %8 : vector<16xf32> to vector<16x1xf32>
    %cst_3 = arith.constant 3.200000e+01 : f32
    %10 = vector.broadcast %cst_3 : f32 to vector<16x1xf32>
    %11 = arith.divf %9, %10 : vector<16x1xf32>
    %12 = vector.broadcast %4 : vector<16x1xf32> to vector<16x32xf32>
    %13 = arith.subf %0, %12 : vector<16x32xf32>
    %cst_4 = arith.constant 9.99999974E-6 : f32
    %14 = vector.broadcast %cst_4 : f32 to vector<16x1xf32>
    %15 = arith.addf %11, %14 : vector<16x1xf32>
    %16 = math.rsqrt %15 : vector<16x1xf32>
    %17 = vector.broadcast %16 : vector<16x1xf32> to vector<16x32xf32>
    %18 = arith.mulf %13, %17 : vector<16x32xf32>
    %c0_5 = arith.constant 0 : index
    %c0_6 = arith.constant 0 : index
    %19 = vector.load %arg2[%c0_5, %c0_6] : memref<1x32xf32, #tpu.memory_space<vmem>>, vector<1x32xf32>
    %20 = vector.broadcast %19 : vector<1x32xf32> to vector<16x32xf32>
    %21 = arith.mulf %18, %20 : vector<16x32xf32>
    %c0_7 = arith.constant 0 : index
    %c0_8 = arith.constant 0 : index
    %22 = vector.load %arg3[%c0_7, %c0_8] : memref<1x32xf32, #tpu.memory_space<vmem>>, vector<1x32xf32>
    %23 = vector.broadcast %22 : vector<1x32xf32> to vector<16x32xf32>
    %24 = arith.addf %21, %23 : vector<16x32xf32>
    %25 = arith.truncf %24 : vector<16x32xf32> to vector<16x32xbf16>
    %c0_9 = arith.constant 0 : index
    %c0_10 = arith.constant 0 : index
    %26 = vector.load %arg4[%c0_9, %c0_10] : memref<16x32xbf16, #tpu.memory_space<vmem>>, vector<16x32xbf16>
    tpu.vector_store %arg4[%c0_9, %c0_10], %25 {strides = array<i32>} : memref<16x32xbf16, #tpu.memory_space<vmem>>, vector<16x32xbf16>,
    return
  }
  func.func @transform_0(%arg0: i32) -> (i32, i32) {
    %c0_i32 = arith.constant 0 : i32
    %c0_i32_0 = arith.constant 0 : i32
    return %arg0, %c0_i32 : i32, i32
  }
  func.func @transform_1(%arg0: i32) -> (i32, i32) {
    %c0_i32 = arith.constant 0 : i32
    %c0_i32_0 = arith.constant 0 : i32
    %c0_i32_1 = arith.constant 0 : i32
    return %c0_i32, %c0_i32_0 : i32, i32
  }
  func.func @transform_2(%arg0: i32) -> (i32, i32) {
    %c0_i32 = arith.constant 0 : i32
    %c0_i32_0 = arith.constant 0 : i32
    %c0_i32_1 = arith.constant 0 : i32
    return %c0_i32, %c0_i32_0 : i32, i32
  }
  func.func @transform_3(%arg0: i32) -> (i32, i32) {
    %c0_i32 = arith.constant 0 : i32
    %c0_i32_0 = arith.constant 0 : i32
    return %arg0, %c0_i32 : i32, i32
  }
}

module attributes {stable_mosaic.version = 11 : i64} {
  func.func @kernel(%arg0: i32, %arg1: i32, %arg2: i32, %arg3: memref<16x32xbf16, #tpu.memory_space<vmem>>, %arg4: memref<32x96xbf16, #tpu.memory_space<vmem>>, %arg5: memref<16x96xbf16, #tpu.memory_space<vmem>>, %arg6: memref<16x96xf32, #tpu.memory_space<vmem>>) attributes {dimension_semantics = [#tpu.dimension_semantics<parallel>, #tpu.dimension_semantics<parallel>, #tpu.dimension_semantics<arbitrary>], iteration_bounds = array<i64: 1, 1, 1>, scalar_prefetch = 0 : i64, scratch_operands = 1 : i64, tpu.core_type = #tpu.core_type<tc>, window_params = [{transform_indices = @transform_0, window_bounds = array<i64: 16, 32>}, {transform_indices = @transform_1, window_bounds = array<i64: 32, 96>}, {transform_indices = @transform_2, window_bounds = array<i64: 16, 96>}]} {
    %c0_i32 = arith.constant 0 : i32
    %0 = arith.cmpi eq, %arg2, %c0_i32 : i32
    %1 = arith.extui %0 : i1 to i32
    %c0_i32_0 = arith.constant 0 : i32
    %2 = arith.cmpi ne, %1, %c0_i32_0 : i32
    scf.if %2 {
      %cst_10 = arith.constant 0.000000e+00 : f32
      %12 = vector.broadcast %cst_10 : f32 to vector<16x96xf32>
      %c0_11 = arith.constant 0 : index
      %c0_12 = arith.constant 0 : index
      %13 = vector.load %arg6[%c0_11, %c0_12] : memref<16x96xf32, #tpu.memory_space<vmem>>, vector<16x96xf32>
      tpu.vector_store %arg6[%c0_11, %c0_12], %12 {strides = array<i32>} : memref<16x96xf32, #tpu.memory_space<vmem>>, vector<16x96xf32>,
    } else {
    }
    %c0 = arith.constant 0 : index
    %c0_1 = arith.constant 0 : index
    %3 = vector.load %arg6[%c0, %c0_1] : memref<16x96xf32, #tpu.memory_space<vmem>>, vector<16x96xf32>
    %c0_2 = arith.constant 0 : index
    %c0_3 = arith.constant 0 : index
    %4 = vector.load %arg3[%c0_2, %c0_3] : memref<16x32xbf16, #tpu.memory_space<vmem>>, vector<16x32xbf16>
    %c0_4 = arith.constant 0 : index
    %c0_5 = arith.constant 0 : index
    %5 = vector.load %arg4[%c0_4, %c0_5] : memref<32x96xbf16, #tpu.memory_space<vmem>>, vector<32x96xbf16>
    %cst = arith.constant dense<0.000000e+00> : vector<16x96xf32>
    %6 = tpu.matmul %4, %5, %cst {dimension_numbers = #tpu.dot_dimension_numbers<[1], [0], [0], [1], [0, 0, 1, 1], [], []>} : vector<16x32xbf16>, vector<32x96xbf16>, vector<16x96xf32> -> vector<16x96xf32>
    %7 = arith.addf %3, %6 : vector<16x96xf32>
    %c0_6 = arith.constant 0 : index
    %c0_7 = arith.constant 0 : index
    %8 = vector.load %arg6[%c0_6, %c0_7] : memref<16x96xf32, #tpu.memory_space<vmem>>, vector<16x96xf32>
    tpu.vector_store %arg6[%c0_6, %c0_7], %7 {strides = array<i32>} : memref<16x96xf32, #tpu.memory_space<vmem>>, vector<16x96xf32>,
    %c0_i32_8 = arith.constant 0 : i32
    %9 = arith.cmpi eq, %arg2, %c0_i32_8 : i32
    %10 = arith.extui %9 : i1 to i32
    %c0_i32_9 = arith.constant 0 : i32
    %11 = arith.cmpi ne, %10, %c0_i32_9 : i32
    scf.if %11 {
      %c0_10 = arith.constant 0 : index
      %c0_11 = arith.constant 0 : index
      %12 = vector.load %arg6[%c0_10, %c0_11] : memref<16x96xf32, #tpu.memory_space<vmem>>, vector<16x96xf32>
      %13 = arith.truncf %12 : vector<16x96xf32> to vector<16x96xbf16>
      %c0_12 = arith.constant 0 : index
      %c0_13 = arith.constant 0 : index
      %14 = vector.load %arg5[%c0_12, %c0_13] : memref<16x96xbf16, #tpu.memory_space<vmem>>, vector<16x96xbf16>
      tpu.vector_store %arg5[%c0_12, %c0_13], %13 {strides = array<i32>} : memref<16x96xbf16, #tpu.memory_space<vmem>>, vector<16x96xbf16>,
    } else {
    }
    return
  }
  func.func @transform_0(%arg0: i32, %arg1: i32, %arg2: i32) -> (i32, i32) {
    %c0_i32 = arith.constant 0 : i32
    return %arg0, %arg2 : i32, i32
  }
  func.func @transform_1(%arg0: i32, %arg1: i32, %arg2: i32) -> (i32, i32) {
    %c0_i32 = arith.constant 0 : i32
    return %arg2, %arg1 : i32, i32
  }
  func.func @transform_2(%arg0: i32, %arg1: i32, %arg2: i32) -> (i32, i32) {
    %c0_i32 = arith.constant 0 : i32
    return %arg0, %arg1 : i32, i32
  }
}

module attributes {stable_mosaic.version = 11 : i64} {
  func.func @_attn_kernel(%arg0: i32, %arg1: i32, %arg2: i32, %arg3: i32, %arg4: memref<1x8x1x4x8xbf16, #tpu.memory_space<vmem>>, %arg5: memref<1x8x1x4x8xbf16, #tpu.memory_space<vmem>>, %arg6: memref<1x8x1x4x8xbf16, #tpu.memory_space<vmem>>, %arg7: memref<8x4xf32, #tpu.memory_space<vmem>>, %arg8: memref<8x4xf32, #tpu.memory_space<vmem>>, %arg9: memref<8x4xf32, #tpu.memory_space<vmem>>, %arg10: memref<8x4xf32, #tpu.memory_space<vmem>>, %arg11: memref<1x8x4x8xbf16, #tpu.memory_space<vmem>>, %arg12: memref<4x8x8xbf16, #tpu.memory_space<vmem>>, %arg13: memref<4x8x1xf32, #tpu.memory_space<vmem>>, %arg14: memref<4x8x1xf32, #tpu.memory_space<vmem>>, %arg15: memref<4x8x8xf32, #tpu.memory_space<vmem>>) attributes {dimension_semantics = [#tpu.dimension_semantics<parallel>, #tpu.dimension_semantics<parallel>, #tpu.dimension_semantics<parallel>, #tpu.dimension_semantics<arbitrary>], iteration_bounds = array<i64: 2, 1, 1, 1>, scalar_prefetch = 0 : i64, scratch_operands = 4 : i64, tpu.core_type = #tpu.core_type<tc>, window_params = [{transform_indices = @transform_0, window_bounds = array<i64: 1, 8, 1, 4, 8>}, {transform_indices = @transform_1, window_bounds = array<i64: 1, 8, 1, 4, 8>}, {transform_indices = @transform_2, window_bounds = array<i64: 1, 8, 1, 4, 8>}, {transform_indices = @transform_3, window_bounds = array<i64: 8, 4>}, {transform_indices = @transform_4, window_bounds = array<i64: 8, 4>}, {transform_indices = @transform_5, window_bounds = array<i64: 8, 4>}, {transform_indices = @transform_6, window_bounds = array<i64: 8, 4>}, {transform_indices = @transform_7, window_bounds = array<i64: 1, 8, 4, 8>}]} {
    %c0_i32 = arith.constant 0 : i32
    %0 = arith.cmpi eq, %arg3, %c0_i32 : i32
    %1 = arith.extui %0 : i1 to i32
    %c0_i32_0 = arith.constant 0 : i32
    %2 = arith.cmpi ne, %1, %c0_i32_0 : i32
    scf.if %2 {
      %cst_112 = arith.constant 0xFF800000 : f32
      %212 = vector.broadcast %cst_112 : f32 to vector<4x8x1xf32>
      %c0_113 = arith.constant 0 : index
      %c0_114 = arith.constant 0 : index
      %c0_115 = arith.constant 0 : index
      %213 = vector.load %arg13[%c0_113, %c0_114, %c0_115] : memref<4x8x1xf32, #tpu.memory_space<vmem>>, vector<4x8x1xf32>
      tpu.vector_store %arg13[%c0_113, %c0_114, %c0_115], %212 {strides = array<i32>} : memref<4x8x1xf32, #tpu.memory_space<vmem>>, vector<4x8x1xf32>,
      %cst_116 = arith.constant 0.000000e+00 : f32
      %214 = vector.broadcast %cst_116 : f32 to vector<4x8x1xf32>
      %c0_117 = arith.constant 0 : index
      %c0_118 = arith.constant 0 : index
      %c0_119 = arith.constant 0 : index
      %215 = vector.load %arg14[%c0_117, %c0_118, %c0_119] : memref<4x8x1xf32, #tpu.memory_space<vmem>>, vector<4x8x1xf32>
      tpu.vector_store %arg14[%c0_117, %c0_118, %c0_119], %214 {strides = array<i32>} : memref<4x8x1xf32, #tpu.memory_space<vmem>>, vector<4x8x1xf32>,
      %cst_120 = arith.constant 0.000000e+00 : f32
      %216 = vector.broadcast %cst_120 : f32 to vector<4x8x8xf32>
      %c0_121 = arith.constant 0 : index
      %c0_122 = arith.constant 0 : index
      %c0_123 = arith.constant 0 : index
      %217 = vector.load %arg15[%c0_121, %c0_122, %c0_123] : memref<4x8x8xf32, #tpu.memory_space<vmem>>, vector<4x8x8xf32>
      tpu.vector_store %arg15[%c0_121, %c0_122, %c0_123], %216 {strides = array<i32>} : memref<4x8x8xf32, #tpu.memory_space<vmem>>, vector<4x8x8xf32>,
      %c0_124 = arith.constant 0 : index
      %c0_125 = arith.constant 0 : index
      %218 = vector.load %arg7[%c0_124, %c0_125] : memref<8x4xf32, #tpu.memory_space<vmem>>, vector<8x4xf32>
      %c0_126 = arith.constant 0 : index
      %c0_127 = arith.constant 0 : index
      %219 = vector.load %arg8[%c0_126, %c0_127] : memref<8x4xf32, #tpu.memory_space<vmem>>, vector<8x4xf32>
      %c0_128 = arith.constant 0 : index
      %c0_129 = arith.constant 0 : index
      %c0_130 = arith.constant 0 : index
      %c0_131 = arith.constant 0 : index
      %c0_132 = arith.constant 0 : index
      %220 = vector.load %arg4[%c0_128, %c0_129, %c0_130, %c0_131, %c0_132] : memref<1x8x1x4x8xbf16, #tpu.memory_space<vmem>>, vector<1x8x1x4x8xbf16>
      %221 = vector.shape_cast %220 : vector<1x8x1x4x8xbf16> to vector<8x4x8xbf16>
      %222 = vector.extract_strided_slice %221 {offsets = [0, 0, 0], sizes = [8, 1, 8], strides = [1, 1, 1]} : vector<8x4x8xbf16> to vector<8x1x8xbf16>
      %223 = vector.shape_cast %222 : vector<8x1x8xbf16> to vector<8x8xbf16>
      %224 = arith.extf %223 : vector<8x8xbf16> to vector<8x8xf32>
      %225 = vector.extract_strided_slice %224 {offsets = [0, 0], sizes = [8, 4], strides = [1, 1]} : vector<8x8xf32> to vector<8x4xf32>
      %226 = vector.extract_strided_slice %224 {offsets = [0, 4], sizes = [8, 4], strides = [1, 1]} : vector<8x8xf32> to vector<8x4xf32>
      %227 = arith.mulf %225, %218 : vector<8x4xf32>
      %228 = arith.mulf %226, %219 : vector<8x4xf32>
      %229 = arith.subf %227, %228 : vector<8x4xf32>
      %230 = arith.mulf %226, %218 : vector<8x4xf32>
      %231 = arith.mulf %225, %219 : vector<8x4xf32>
      %232 = arith.addf %230, %231 : vector<8x4xf32>
      %233 = tpu.concatenate %229, %232 in 1 : vector<8x4xf32>, vector<8x4xf32> -> vector<8x8xf32>
      %234 = arith.truncf %233 : vector<8x8xf32> to vector<8x8xbf16>
      %c0_133 = arith.constant 0 : index
      %c0_134 = arith.constant 0 : index
      %c0_135 = arith.constant 0 : index
      %235 = vector.load %arg12[%c0_133, %c0_134, %c0_135] : memref<4x8x8xbf16, #tpu.memory_space<vmem>>, vector<1x8x8xbf16>
      %236 = vector.shape_cast %235 : vector<1x8x8xbf16> to vector<8x8xbf16>
      %237 = vector.shape_cast %234 : vector<8x8xbf16> to vector<1x8x8xbf16>
      tpu.vector_store %arg12[%c0_133, %c0_134, %c0_135], %237 {strides = array<i32>} : memref<4x8x8xbf16, #tpu.memory_space<vmem>>, vector<1x8x8xbf16>,
      %238 = vector.extract_strided_slice %221 {offsets = [0, 1, 0], sizes = [8, 1, 8], strides = [1, 1, 1]} : vector<8x4x8xbf16> to vector<8x1x8xbf16>
      %239 = vector.shape_cast %238 : vector<8x1x8xbf16> to vector<8x8xbf16>
      %240 = arith.extf %239 : vector<8x8xbf16> to vector<8x8xf32>
      %241 = vector.extract_strided_slice %240 {offsets = [0, 0], sizes = [8, 4], strides = [1, 1]} : vector<8x8xf32> to vector<8x4xf32>
      %242 = vector.extract_strided_slice %240 {offsets = [0, 4], sizes = [8, 4], strides = [1, 1]} : vector<8x8xf32> to vector<8x4xf32>
      %243 = arith.mulf %241, %218 : vector<8x4xf32>
      %244 = arith.mulf %242, %219 : vector<8x4xf32>
      %245 = arith.subf %243, %244 : vector<8x4xf32>
      %246 = arith.mulf %242, %218 : vector<8x4xf32>
      %247 = arith.mulf %241, %219 : vector<8x4xf32>
      %248 = arith.addf %246, %247 : vector<8x4xf32>
      %249 = tpu.concatenate %245, %248 in 1 : vector<8x4xf32>, vector<8x4xf32> -> vector<8x8xf32>
      %250 = arith.truncf %249 : vector<8x8xf32> to vector<8x8xbf16>
      %c1_136 = arith.constant 1 : index
      %c0_137 = arith.constant 0 : index
      %c0_138 = arith.constant 0 : index
      %251 = vector.load %arg12[%c1_136, %c0_137, %c0_138] : memref<4x8x8xbf16, #tpu.memory_space<vmem>>, vector<1x8x8xbf16>
      %252 = vector.shape_cast %251 : vector<1x8x8xbf16> to vector<8x8xbf16>
      %253 = vector.shape_cast %250 : vector<8x8xbf16> to vector<1x8x8xbf16>
      tpu.vector_store %arg12[%c1_136, %c0_137, %c0_138], %253 {strides = array<i32>} : memref<4x8x8xbf16, #tpu.memory_space<vmem>>, vector<1x8x8xbf16>,
      %254 = vector.extract_strided_slice %221 {offsets = [0, 2, 0], sizes = [8, 1, 8], strides = [1, 1, 1]} : vector<8x4x8xbf16> to vector<8x1x8xbf16>
      %255 = vector.shape_cast %254 : vector<8x1x8xbf16> to vector<8x8xbf16>
      %256 = arith.extf %255 : vector<8x8xbf16> to vector<8x8xf32>
      %257 = vector.extract_strided_slice %256 {offsets = [0, 0], sizes = [8, 4], strides = [1, 1]} : vector<8x8xf32> to vector<8x4xf32>
      %258 = vector.extract_strided_slice %256 {offsets = [0, 4], sizes = [8, 4], strides = [1, 1]} : vector<8x8xf32> to vector<8x4xf32>
      %259 = arith.mulf %257, %218 : vector<8x4xf32>
      %260 = arith.mulf %258, %219 : vector<8x4xf32>
      %261 = arith.subf %259, %260 : vector<8x4xf32>
      %262 = arith.mulf %258, %218 : vector<8x4xf32>
      %263 = arith.mulf %257, %219 : vector<8x4xf32>
      %264 = arith.addf %262, %263 : vector<8x4xf32>
      %265 = tpu.concatenate %261, %264 in 1 : vector<8x4xf32>, vector<8x4xf32> -> vector<8x8xf32>
      %266 = arith.truncf %265 : vector<8x8xf32> to vector<8x8xbf16>
      %c2_139 = arith.constant 2 : index
      %c0_140 = arith.constant 0 : index
      %c0_141 = arith.constant 0 : index
      %267 = vector.load %arg12[%c2_139, %c0_140, %c0_141] : memref<4x8x8xbf16, #tpu.memory_space<vmem>>, vector<1x8x8xbf16>
      %268 = vector.shape_cast %267 : vector<1x8x8xbf16> to vector<8x8xbf16>
      %269 = vector.shape_cast %266 : vector<8x8xbf16> to vector<1x8x8xbf16>
      tpu.vector_store %arg12[%c2_139, %c0_140, %c0_141], %269 {strides = array<i32>} : memref<4x8x8xbf16, #tpu.memory_space<vmem>>, vector<1x8x8xbf16>,
      %270 = vector.extract_strided_slice %221 {offsets = [0, 3, 0], sizes = [8, 1, 8], strides = [1, 1, 1]} : vector<8x4x8xbf16> to vector<8x1x8xbf16>
      %271 = vector.shape_cast %270 : vector<8x1x8xbf16> to vector<8x8xbf16>
      %272 = arith.extf %271 : vector<8x8xbf16> to vector<8x8xf32>
      %273 = vector.extract_strided_slice %272 {offsets = [0, 0], sizes = [8, 4], strides = [1, 1]} : vector<8x8xf32> to vector<8x4xf32>
      %274 = vector.extract_strided_slice %272 {offsets = [0, 4], sizes = [8, 4], strides = [1, 1]} : vector<8x8xf32> to vector<8x4xf32>
      %275 = arith.mulf %273, %218 : vector<8x4xf32>
      %276 = arith.mulf %274, %219 : vector<8x4xf32>
      %277 = arith.subf %275, %276 : vector<8x4xf32>
      %278 = arith.mulf %274, %218 : vector<8x4xf32>
      %279 = arith.mulf %273, %219 : vector<8x4xf32>
      %280 = arith.addf %278, %279 : vector<8x4xf32>
      %281 = tpu.concatenate %277, %280 in 1 : vector<8x4xf32>, vector<8x4xf32> -> vector<8x8xf32>
      %282 = arith.truncf %281 : vector<8x8xf32> to vector<8x8xbf16>
      %c3_142 = arith.constant 3 : index
      %c0_143 = arith.constant 0 : index
      %c0_144 = arith.constant 0 : index
      %283 = vector.load %arg12[%c3_142, %c0_143, %c0_144] : memref<4x8x8xbf16, #tpu.memory_space<vmem>>, vector<1x8x8xbf16>
      %284 = vector.shape_cast %283 : vector<1x8x8xbf16> to vector<8x8xbf16>
      %285 = vector.shape_cast %282 : vector<8x8xbf16> to vector<1x8x8xbf16>
      tpu.vector_store %arg12[%c3_142, %c0_143, %c0_144], %285 {strides = array<i32>} : memref<4x8x8xbf16, #tpu.memory_space<vmem>>, vector<1x8x8xbf16>,
    } else {
    }
    %c0 = arith.constant 0 : index
    %c0_1 = arith.constant 0 : index
    %3 = vector.load %arg9[%c0, %c0_1] : memref<8x4xf32, #tpu.memory_space<vmem>>, vector<8x4xf32>
    %c0_2 = arith.constant 0 : index
    %c0_3 = arith.constant 0 : index
    %4 = vector.load %arg10[%c0_2, %c0_3] : memref<8x4xf32, #tpu.memory_space<vmem>>, vector<8x4xf32>
    %c0_4 = arith.constant 0 : index
    %c0_5 = arith.constant 0 : index
    %c0_6 = arith.constant 0 : index
    %c0_7 = arith.constant 0 : index
    %c0_8 = arith.constant 0 : index
    %5 = vector.load %arg5[%c0_4, %c0_5, %c0_6, %c0_7, %c0_8] : memref<1x8x1x4x8xbf16, #tpu.memory_space<vmem>>, vector<1x8x1x4x8xbf16>
    %6 = vector.shape_cast %5 : vector<1x8x1x4x8xbf16> to vector<8x4x8xbf16>
    %c0_9 = arith.constant 0 : index
    %c0_10 = arith.constant 0 : index
    %c0_11 = arith.constant 0 : index
    %c0_12 = arith.constant 0 : index
    %c0_13 = arith.constant 0 : index
    %7 = vector.load %arg6[%c0_9, %c0_10, %c0_11, %c0_12, %c0_13] : memref<1x8x1x4x8xbf16, #tpu.memory_space<vmem>>, vector<1x8x1x4x8xbf16>
    %8 = vector.shape_cast %7 : vector<1x8x1x4x8xbf16> to vector<8x4x8xbf16>
    %9 = vector.extract_strided_slice %6 {offsets = [0, 0, 0], sizes = [8, 1, 8], strides = [1, 1, 1]} : vector<8x4x8xbf16> to vector<8x1x8xbf16>
    %10 = vector.shape_cast %9 : vector<8x1x8xbf16> to vector<8x8xbf16>
    %11 = arith.extf %10 : vector<8x8xbf16> to vector<8x8xf32>
    %12 = vector.extract_strided_slice %11 {offsets = [0, 0], sizes = [8, 4], strides = [1, 1]} : vector<8x8xf32> to vector<8x4xf32>
    %13 = vector.extract_strided_slice %11 {offsets = [0, 4], sizes = [8, 4], strides = [1, 1]} : vector<8x8xf32> to vector<8x4xf32>
    %14 = arith.mulf %12, %3 : vector<8x4xf32>
    %15 = arith.mulf %13, %4 : vector<8x4xf32>
    %16 = arith.subf %14, %15 : vector<8x4xf32>
    %17 = arith.mulf %13, %3 : vector<8x4xf32>
    %18 = arith.mulf %12, %4 : vector<8x4xf32>
    %19 = arith.addf %17, %18 : vector<8x4xf32>
    %20 = tpu.concatenate %16, %19 in 1 : vector<8x4xf32>, vector<8x4xf32> -> vector<8x8xf32>
    %21 = arith.truncf %20 : vector<8x8xf32> to vector<8x8xbf16>
    %c0_14 = arith.constant 0 : index
    %c0_15 = arith.constant 0 : index
    %c0_16 = arith.constant 0 : index
    %22 = vector.load %arg12[%c0_14, %c0_15, %c0_16] : memref<4x8x8xbf16, #tpu.memory_space<vmem>>, vector<1x8x8xbf16>
    %23 = vector.shape_cast %22 : vector<1x8x8xbf16> to vector<8x8xbf16>
    %cst = arith.constant dense<0.000000e+00> : vector<8x8xf32>
    %24 = tpu.matmul %23, %21, %cst {dimension_numbers = #tpu.dot_dimension_numbers<[1], [1], [0], [0], [0, 0, 1, 0], [], []>} : vector<8x8xbf16>, vector<8x8xbf16>, vector<8x8xf32> -> vector<8x8xf32>
    %c0_17 = arith.constant 0 : index
    %c0_18 = arith.constant 0 : index
    %c0_19 = arith.constant 0 : index
    %25 = vector.load %arg13[%c0_17, %c0_18, %c0_19] : memref<4x8x1xf32, #tpu.memory_space<vmem>>, vector<1x8x1xf32>
    %26 = vector.shape_cast %25 : vector<1x8x1xf32> to vector<8x1xf32>
    %cst_20 = arith.constant dense<0xFF800000> : vector<8xf32>
    %27 = vector.multi_reduction <maximumf>, %24, %cst_20 [1] : vector<8x8xf32> to vector<8xf32>
    %28 = vector.shape_cast %27 : vector<8xf32> to vector<8x1xf32>
    %29 = arith.maximumf %26, %28 : vector<8x1xf32>
    %30 = arith.subf %26, %29 : vector<8x1xf32>
    %31 = math.exp %30 : vector<8x1xf32>
    %32 = vector.broadcast %29 : vector<8x1xf32> to vector<8x8xf32>
    %33 = arith.subf %24, %32 : vector<8x8xf32>
    %34 = math.exp %33 : vector<8x8xf32>
    %c0_21 = arith.constant 0 : index
    %c0_22 = arith.constant 0 : index
    %c0_23 = arith.constant 0 : index
    %35 = vector.load %arg14[%c0_21, %c0_22, %c0_23] : memref<4x8x1xf32, #tpu.memory_space<vmem>>, vector<1x8x1xf32>
    %36 = vector.shape_cast %35 : vector<1x8x1xf32> to vector<8x1xf32>
    %37 = arith.mulf %31, %36 : vector<8x1xf32>
    %cst_24 = arith.constant dense<0.000000e+00> : vector<8xf32>
    %38 = vector.multi_reduction <add>, %34, %cst_24 [1] : vector<8x8xf32> to vector<8xf32>
    %39 = vector.shape_cast %38 : vector<8xf32> to vector<8x1xf32>
    %40 = arith.addf %37, %39 : vector<8x1xf32>
    %c0_25 = arith.constant 0 : index
    %c0_26 = arith.constant 0 : index
    %c0_27 = arith.constant 0 : index
    %41 = vector.load %arg14[%c0_25, %c0_26, %c0_27] : memref<4x8x1xf32, #tpu.memory_space<vmem>>, vector<1x8x1xf32>
    %42 = vector.shape_cast %41 : vector<1x8x1xf32> to vector<8x1xf32>
    %43 = vector.shape_cast %40 : vector<8x1xf32> to vector<1x8x1xf32>
    tpu.vector_store %arg14[%c0_25, %c0_26, %c0_27], %43 {strides = array<i32>} : memref<4x8x1xf32, #tpu.memory_space<vmem>>, vector<1x8x1xf32>,
    %c0_28 = arith.constant 0 : index
    %c0_29 = arith.constant 0 : index
    %c0_30 = arith.constant 0 : index
    %44 = vector.load %arg15[%c0_28, %c0_29, %c0_30] : memref<4x8x8xf32, #tpu.memory_space<vmem>>, vector<1x8x8xf32>
    %45 = vector.shape_cast %44 : vector<1x8x8xf32> to vector<8x8xf32>
    %46 = vector.broadcast %31 : vector<8x1xf32> to vector<8x8xf32>
    %47 = arith.mulf %46, %45 : vector<8x8xf32>
    %48 = arith.truncf %34 : vector<8x8xf32> to vector<8x8xbf16>
    %49 = vector.extract_strided_slice %8 {offsets = [0, 0, 0], sizes = [8, 1, 8], strides = [1, 1, 1]} : vector<8x4x8xbf16> to vector<8x1x8xbf16>
    %50 = vector.shape_cast %49 : vector<8x1x8xbf16> to vector<8x8xbf16>
    %cst_31 = arith.constant dense<0.000000e+00> : vector<8x8xf32>
    %51 = tpu.matmul %48, %50, %cst_31 {dimension_numbers = #tpu.dot_dimension_numbers<[1], [0], [0], [1], [0, 0, 1, 1], [], []>} : vector<8x8xbf16>, vector<8x8xbf16>, vector<8x8xf32> -> vector<8x8xf32>
    %52 = arith.addf %47, %51 : vector<8x8xf32>
    %c0_32 = arith.constant 0 : index
    %c0_33 = arith.constant 0 : index
    %c0_34 = arith.constant 0 : index
    %53 = vector.load %arg15[%c0_32, %c0_33, %c0_34] : memref<4x8x8xf32, #tpu.memory_space<vmem>>, vector<1x8x8xf32>
    %54 = vector.shape_cast %53 : vector<1x8x8xf32> to vector<8x8xf32>
    %55 = vector.shape_cast %52 : vector<8x8xf32> to vector<1x8x8xf32>
    tpu.vector_store %arg15[%c0_32, %c0_33, %c0_34], %55 {strides = array<i32>} : memref<4x8x8xf32, #tpu.memory_space<vmem>>, vector<1x8x8xf32>,
    %c0_35 = arith.constant 0 : index
    %c0_36 = arith.constant 0 : index
    %c0_37 = arith.constant 0 : index
    %56 = vector.load %arg13[%c0_35, %c0_36, %c0_37] : memref<4x8x1xf32, #tpu.memory_space<vmem>>, vector<1x8x1xf32>
    %57 = vector.shape_cast %56 : vector<1x8x1xf32> to vector<8x1xf32>
    %58 = vector.shape_cast %29 : vector<8x1xf32> to vector<1x8x1xf32>
    tpu.vector_store %arg13[%c0_35, %c0_36, %c0_37], %58 {strides = array<i32>} : memref<4x8x1xf32, #tpu.memory_space<vmem>>, vector<1x8x1xf32>,
    %59 = vector.extract_strided_slice %6 {offsets = [0, 1, 0], sizes = [8, 1, 8], strides = [1, 1, 1]} : vector<8x4x8xbf16> to vector<8x1x8xbf16>
    %60 = vector.shape_cast %59 : vector<8x1x8xbf16> to vector<8x8xbf16>
    %61 = arith.extf %60 : vector<8x8xbf16> to vector<8x8xf32>
    %62 = vector.extract_strided_slice %61 {offsets = [0, 0], sizes = [8, 4], strides = [1, 1]} : vector<8x8xf32> to vector<8x4xf32>
    %63 = vector.extract_strided_slice %61 {offsets = [0, 4], sizes = [8, 4], strides = [1, 1]} : vector<8x8xf32> to vector<8x4xf32>
    %64 = arith.mulf %62, %3 : vector<8x4xf32>
    %65 = arith.mulf %63, %4 : vector<8x4xf32>
    %66 = arith.subf %64, %65 : vector<8x4xf32>
    %67 = arith.mulf %63, %3 : vector<8x4xf32>
    %68 = arith.mulf %62, %4 : vector<8x4xf32>
    %69 = arith.addf %67, %68 : vector<8x4xf32>
    %70 = tpu.concatenate %66, %69 in 1 : vector<8x4xf32>, vector<8x4xf32> -> vector<8x8xf32>
    %71 = arith.truncf %70 : vector<8x8xf32> to vector<8x8xbf16>
    %c1 = arith.constant 1 : index
    %c0_38 = arith.constant 0 : index
    %c0_39 = arith.constant 0 : index
    %72 = vector.load %arg12[%c1, %c0_38, %c0_39] : memref<4x8x8xbf16, #tpu.memory_space<vmem>>, vector<1x8x8xbf16>
    %73 = vector.shape_cast %72 : vector<1x8x8xbf16> to vector<8x8xbf16>
    %cst_40 = arith.constant dense<0.000000e+00> : vector<8x8xf32>
    %74 = tpu.matmul %73, %71, %cst_40 {dimension_numbers = #tpu.dot_dimension_numbers<[1], [1], [0], [0], [0, 0, 1, 0], [], []>} : vector<8x8xbf16>, vector<8x8xbf16>, vector<8x8xf32> -> vector<8x8xf32>
    %c1_41 = arith.constant 1 : index
    %c0_42 = arith.constant 0 : index
    %c0_43 = arith.constant 0 : index
    %75 = vector.load %arg13[%c1_41, %c0_42, %c0_43] : memref<4x8x1xf32, #tpu.memory_space<vmem>>, vector<1x8x1xf32>
    %76 = vector.shape_cast %75 : vector<1x8x1xf32> to vector<8x1xf32>
    %cst_44 = arith.constant dense<0xFF800000> : vector<8xf32>
    %77 = vector.multi_reduction <maximumf>, %74, %cst_44 [1] : vector<8x8xf32> to vector<8xf32>
    %78 = vector.shape_cast %77 : vector<8xf32> to vector<8x1xf32>
    %79 = arith.maximumf %76, %78 : vector<8x1xf32>
    %80 = arith.subf %76, %79 : vector<8x1xf32>
    %81 = math.exp %80 : vector<8x1xf32>
    %82 = vector.broadcast %79 : vector<8x1xf32> to vector<8x8xf32>
    %83 = arith.subf %74, %82 : vector<8x8xf32>
    %84 = math.exp %83 : vector<8x8xf32>
    %c1_45 = arith.constant 1 : index
    %c0_46 = arith.constant 0 : index
    %c0_47 = arith.constant 0 : index
    %85 = vector.load %arg14[%c1_45, %c0_46, %c0_47] : memref<4x8x1xf32, #tpu.memory_space<vmem>>, vector<1x8x1xf32>
    %86 = vector.shape_cast %85 : vector<1x8x1xf32> to vector<8x1xf32>
    %87 = arith.mulf %81, %86 : vector<8x1xf32>
    %cst_48 = arith.constant dense<0.000000e+00> : vector<8xf32>
    %88 = vector.multi_reduction <add>, %84, %cst_48 [1] : vector<8x8xf32> to vector<8xf32>
    %89 = vector.shape_cast %88 : vector<8xf32> to vector<8x1xf32>
    %90 = arith.addf %87, %89 : vector<8x1xf32>
    %c1_49 = arith.constant 1 : index
    %c0_50 = arith.constant 0 : index
    %c0_51 = arith.constant 0 : index
    %91 = vector.load %arg14[%c1_49, %c0_50, %c0_51] : memref<4x8x1xf32, #tpu.memory_space<vmem>>, vector<1x8x1xf32>
    %92 = vector.shape_cast %91 : vector<1x8x1xf32> to vector<8x1xf32>
    %93 = vector.shape_cast %90 : vector<8x1xf32> to vector<1x8x1xf32>
    tpu.vector_store %arg14[%c1_49, %c0_50, %c0_51], %93 {strides = array<i32>} : memref<4x8x1xf32, #tpu.memory_space<vmem>>, vector<1x8x1xf32>,
    %c1_52 = arith.constant 1 : index
    %c0_53 = arith.constant 0 : index
    %c0_54 = arith.constant 0 : index
    %94 = vector.load %arg15[%c1_52, %c0_53, %c0_54] : memref<4x8x8xf32, #tpu.memory_space<vmem>>, vector<1x8x8xf32>
    %95 = vector.shape_cast %94 : vector<1x8x8xf32> to vector<8x8xf32>
    %96 = vector.broadcast %81 : vector<8x1xf32> to vector<8x8xf32>
    %97 = arith.mulf %96, %95 : vector<8x8xf32>
    %98 = arith.truncf %84 : vector<8x8xf32> to vector<8x8xbf16>
    %99 = vector.extract_strided_slice %8 {offsets = [0, 1, 0], sizes = [8, 1, 8], strides = [1, 1, 1]} : vector<8x4x8xbf16> to vector<8x1x8xbf16>
    %100 = vector.shape_cast %99 : vector<8x1x8xbf16> to vector<8x8xbf16>
    %cst_55 = arith.constant dense<0.000000e+00> : vector<8x8xf32>
    %101 = tpu.matmul %98, %100, %cst_55 {dimension_numbers = #tpu.dot_dimension_numbers<[1], [0], [0], [1], [0, 0, 1, 1], [], []>} : vector<8x8xbf16>, vector<8x8xbf16>, vector<8x8xf32> -> vector<8x8xf32>
    %102 = arith.addf %97, %101 : vector<8x8xf32>
    %c1_56 = arith.constant 1 : index
    %c0_57 = arith.constant 0 : index
    %c0_58 = arith.constant 0 : index
    %103 = vector.load %arg15[%c1_56, %c0_57, %c0_58] : memref<4x8x8xf32, #tpu.memory_space<vmem>>, vector<1x8x8xf32>
    %104 = vector.shape_cast %103 : vector<1x8x8xf32> to vector<8x8xf32>
    %105 = vector.shape_cast %102 : vector<8x8xf32> to vector<1x8x8xf32>
    tpu.vector_store %arg15[%c1_56, %c0_57, %c0_58], %105 {strides = array<i32>} : memref<4x8x8xf32, #tpu.memory_space<vmem>>, vector<1x8x8xf32>,
    %c1_59 = arith.constant 1 : index
    %c0_60 = arith.constant 0 : index
    %c0_61 = arith.constant 0 : index
    %106 = vector.load %arg13[%c1_59, %c0_60, %c0_61] : memref<4x8x1xf32, #tpu.memory_space<vmem>>, vector<1x8x1xf32>
    %107 = vector.shape_cast %106 : vector<1x8x1xf32> to vector<8x1xf32>
    %108 = vector.shape_cast %79 : vector<8x1xf32> to vector<1x8x1xf32>
    tpu.vector_store %arg13[%c1_59, %c0_60, %c0_61], %108 {strides = array<i32>} : memref<4x8x1xf32, #tpu.memory_space<vmem>>, vector<1x8x1xf32>,
    %109 = vector.extract_strided_slice %6 {offsets = [0, 2, 0], sizes = [8, 1, 8], strides = [1, 1, 1]} : vector<8x4x8xbf16> to vector<8x1x8xbf16>
    %110 = vector.shape_cast %109 : vector<8x1x8xbf16> to vector<8x8xbf16>
    %111 = arith.extf %110 : vector<8x8xbf16> to vector<8x8xf32>
    %112 = vector.extract_strided_slice %111 {offsets = [0, 0], sizes = [8, 4], strides = [1, 1]} : vector<8x8xf32> to vector<8x4xf32>
    %113 = vector.extract_strided_slice %111 {offsets = [0, 4], sizes = [8, 4], strides = [1, 1]} : vector<8x8xf32> to vector<8x4xf32>
    %114 = arith.mulf %112, %3 : vector<8x4xf32>
    %115 = arith.mulf %113, %4 : vector<8x4xf32>
    %116 = arith.subf %114, %115 : vector<8x4xf32>
    %117 = arith.mulf %113, %3 : vector<8x4xf32>
    %118 = arith.mulf %112, %4 : vector<8x4xf32>
    %119 = arith.addf %117, %118 : vector<8x4xf32>
    %120 = tpu.concatenate %116, %119 in 1 : vector<8x4xf32>, vector<8x4xf32> -> vector<8x8xf32>
    %121 = arith.truncf %120 : vector<8x8xf32> to vector<8x8xbf16>
    %c2 = arith.constant 2 : index
    %c0_62 = arith.constant 0 : index
    %c0_63 = arith.constant 0 : index
    %122 = vector.load %arg12[%c2, %c0_62, %c0_63] : memref<4x8x8xbf16, #tpu.memory_space<vmem>>, vector<1x8x8xbf16>
    %123 = vector.shape_cast %122 : vector<1x8x8xbf16> to vector<8x8xbf16>
    %cst_64 = arith.constant dense<0.000000e+00> : vector<8x8xf32>
    %124 = tpu.matmul %123, %121, %cst_64 {dimension_numbers = #tpu.dot_dimension_numbers<[1], [1], [0], [0], [0, 0, 1, 0], [], []>} : vector<8x8xbf16>, vector<8x8xbf16>, vector<8x8xf32> -> vector<8x8xf32>
    %c2_65 = arith.constant 2 : index
    %c0_66 = arith.constant 0 : index
    %c0_67 = arith.constant 0 : index
    %125 = vector.load %arg13[%c2_65, %c0_66, %c0_67] : memref<4x8x1xf32, #tpu.memory_space<vmem>>, vector<1x8x1xf32>
    %126 = vector.shape_cast %125 : vector<1x8x1xf32> to vector<8x1xf32>
    %cst_68 = arith.constant dense<0xFF800000> : vector<8xf32>
    %127 = vector.multi_reduction <maximumf>, %124, %cst_68 [1] : vector<8x8xf32> to vector<8xf32>
    %128 = vector.shape_cast %127 : vector<8xf32> to vector<8x1xf32>
    %129 = arith.maximumf %126, %128 : vector<8x1xf32>
    %130 = arith.subf %126, %129 : vector<8x1xf32>
    %131 = math.exp %130 : vector<8x1xf32>
    %132 = vector.broadcast %129 : vector<8x1xf32> to vector<8x8xf32>
    %133 = arith.subf %124, %132 : vector<8x8xf32>
    %134 = math.exp %133 : vector<8x8xf32>
    %c2_69 = arith.constant 2 : index
    %c0_70 = arith.constant 0 : index
    %c0_71 = arith.constant 0 : index
    %135 = vector.load %arg14[%c2_69, %c0_70, %c0_71] : memref<4x8x1xf32, #tpu.memory_space<vmem>>, vector<1x8x1xf32>
    %136 = vector.shape_cast %135 : vector<1x8x1xf32> to vector<8x1xf32>
    %137 = arith.mulf %131, %136 : vector<8x1xf32>
    %cst_72 = arith.constant dense<0.000000e+00> : vector<8xf32>
    %138 = vector.multi_reduction <add>, %134, %cst_72 [1] : vector<8x8xf32> to vector<8xf32>
    %139 = vector.shape_cast %138 : vector<8xf32> to vector<8x1xf32>
    %140 = arith.addf %137, %139 : vector<8x1xf32>
    %c2_73 = arith.constant 2 : index
    %c0_74 = arith.constant 0 : index
    %c0_75 = arith.constant 0 : index
    %141 = vector.load %arg14[%c2_73, %c0_74, %c0_75] : memref<4x8x1xf32, #tpu.memory_space<vmem>>, vector<1x8x1xf32>
    %142 = vector.shape_cast %141 : vector<1x8x1xf32> to vector<8x1xf32>
    %143 = vector.shape_cast %140 : vector<8x1xf32> to vector<1x8x1xf32>
    tpu.vector_store %arg14[%c2_73, %c0_74, %c0_75], %143 {strides = array<i32>} : memref<4x8x1xf32, #tpu.memory_space<vmem>>, vector<1x8x1xf32>,
    %c2_76 = arith.constant 2 : index
    %c0_77 = arith.constant 0 : index
    %c0_78 = arith.constant 0 : index
    %144 = vector.load %arg15[%c2_76, %c0_77, %c0_78] : memref<4x8x8xf32, #tpu.memory_space<vmem>>, vector<1x8x8xf32>
    %145 = vector.shape_cast %144 : vector<1x8x8xf32> to vector<8x8xf32>
    %146 = vector.broadcast %131 : vector<8x1xf32> to vector<8x8xf32>
    %147 = arith.mulf %146, %145 : vector<8x8xf32>
    %148 = arith.truncf %134 : vector<8x8xf32> to vector<8x8xbf16>
    %149 = vector.extract_strided_slice %8 {offsets = [0, 2, 0], sizes = [8, 1, 8], strides = [1, 1, 1]} : vector<8x4x8xbf16> to vector<8x1x8xbf16>
    %150 = vector.shape_cast %149 : vector<8x1x8xbf16> to vector<8x8xbf16>
    %cst_79 = arith.constant dense<0.000000e+00> : vector<8x8xf32>
    %151 = tpu.matmul %148, %150, %cst_79 {dimension_numbers = #tpu.dot_dimension_numbers<[1], [0], [0], [1], [0, 0, 1, 1], [], []>} : vector<8x8xbf16>, vector<8x8xbf16>, vector<8x8xf32> -> vector<8x8xf32>
    %152 = arith.addf %147, %151 : vector<8x8xf32>
    %c2_80 = arith.constant 2 : index
    %c0_81 = arith.constant 0 : index
    %c0_82 = arith.constant 0 : index
    %153 = vector.load %arg15[%c2_80, %c0_81, %c0_82] : memref<4x8x8xf32, #tpu.memory_space<vmem>>, vector<1x8x8xf32>
    %154 = vector.shape_cast %153 : vector<1x8x8xf32> to vector<8x8xf32>
    %155 = vector.shape_cast %152 : vector<8x8xf32> to vector<1x8x8xf32>
    tpu.vector_store %arg15[%c2_80, %c0_81, %c0_82], %155 {strides = array<i32>} : memref<4x8x8xf32, #tpu.memory_space<vmem>>, vector<1x8x8xf32>,
    %c2_83 = arith.constant 2 : index
    %c0_84 = arith.constant 0 : index
    %c0_85 = arith.constant 0 : index
    %156 = vector.load %arg13[%c2_83, %c0_84, %c0_85] : memref<4x8x1xf32, #tpu.memory_space<vmem>>, vector<1x8x1xf32>
    %157 = vector.shape_cast %156 : vector<1x8x1xf32> to vector<8x1xf32>
    %158 = vector.shape_cast %129 : vector<8x1xf32> to vector<1x8x1xf32>
    tpu.vector_store %arg13[%c2_83, %c0_84, %c0_85], %158 {strides = array<i32>} : memref<4x8x1xf32, #tpu.memory_space<vmem>>, vector<1x8x1xf32>,
    %159 = vector.extract_strided_slice %6 {offsets = [0, 3, 0], sizes = [8, 1, 8], strides = [1, 1, 1]} : vector<8x4x8xbf16> to vector<8x1x8xbf16>
    %160 = vector.shape_cast %159 : vector<8x1x8xbf16> to vector<8x8xbf16>
    %161 = arith.extf %160 : vector<8x8xbf16> to vector<8x8xf32>
    %162 = vector.extract_strided_slice %161 {offsets = [0, 0], sizes = [8, 4], strides = [1, 1]} : vector<8x8xf32> to vector<8x4xf32>
    %163 = vector.extract_strided_slice %161 {offsets = [0, 4], sizes = [8, 4], strides = [1, 1]} : vector<8x8xf32> to vector<8x4xf32>
    %164 = arith.mulf %162, %3 : vector<8x4xf32>
    %165 = arith.mulf %163, %4 : vector<8x4xf32>
    %166 = arith.subf %164, %165 : vector<8x4xf32>
    %167 = arith.mulf %163, %3 : vector<8x4xf32>
    %168 = arith.mulf %162, %4 : vector<8x4xf32>
    %169 = arith.addf %167, %168 : vector<8x4xf32>
    %170 = tpu.concatenate %166, %169 in 1 : vector<8x4xf32>, vector<8x4xf32> -> vector<8x8xf32>
    %171 = arith.truncf %170 : vector<8x8xf32> to vector<8x8xbf16>
    %c3 = arith.constant 3 : index
    %c0_86 = arith.constant 0 : index
    %c0_87 = arith.constant 0 : index
    %172 = vector.load %arg12[%c3, %c0_86, %c0_87] : memref<4x8x8xbf16, #tpu.memory_space<vmem>>, vector<1x8x8xbf16>
    %173 = vector.shape_cast %172 : vector<1x8x8xbf16> to vector<8x8xbf16>
    %cst_88 = arith.constant dense<0.000000e+00> : vector<8x8xf32>
    %174 = tpu.matmul %173, %171, %cst_88 {dimension_numbers = #tpu.dot_dimension_numbers<[1], [1], [0], [0], [0, 0, 1, 0], [], []>} : vector<8x8xbf16>, vector<8x8xbf16>, vector<8x8xf32> -> vector<8x8xf32>
    %c3_89 = arith.constant 3 : index
    %c0_90 = arith.constant 0 : index
    %c0_91 = arith.constant 0 : index
    %175 = vector.load %arg13[%c3_89, %c0_90, %c0_91] : memref<4x8x1xf32, #tpu.memory_space<vmem>>, vector<1x8x1xf32>
    %176 = vector.shape_cast %175 : vector<1x8x1xf32> to vector<8x1xf32>
    %cst_92 = arith.constant dense<0xFF800000> : vector<8xf32>
    %177 = vector.multi_reduction <maximumf>, %174, %cst_92 [1] : vector<8x8xf32> to vector<8xf32>
    %178 = vector.shape_cast %177 : vector<8xf32> to vector<8x1xf32>
    %179 = arith.maximumf %176, %178 : vector<8x1xf32>
    %180 = arith.subf %176, %179 : vector<8x1xf32>
    %181 = math.exp %180 : vector<8x1xf32>
    %182 = vector.broadcast %179 : vector<8x1xf32> to vector<8x8xf32>
    %183 = arith.subf %174, %182 : vector<8x8xf32>
    %184 = math.exp %183 : vector<8x8xf32>
    %c3_93 = arith.constant 3 : index
    %c0_94 = arith.constant 0 : index
    %c0_95 = arith.constant 0 : index
    %185 = vector.load %arg14[%c3_93, %c0_94, %c0_95] : memref<4x8x1xf32, #tpu.memory_space<vmem>>, vector<1x8x1xf32>
    %186 = vector.shape_cast %185 : vector<1x8x1xf32> to vector<8x1xf32>
    %187 = arith.mulf %181, %186 : vector<8x1xf32>
    %cst_96 = arith.constant dense<0.000000e+00> : vector<8xf32>
    %188 = vector.multi_reduction <add>, %184, %cst_96 [1] : vector<8x8xf32> to vector<8xf32>
    %189 = vector.shape_cast %188 : vector<8xf32> to vector<8x1xf32>
    %190 = arith.addf %187, %189 : vector<8x1xf32>
    %c3_97 = arith.constant 3 : index
    %c0_98 = arith.constant 0 : index
    %c0_99 = arith.constant 0 : index
    %191 = vector.load %arg14[%c3_97, %c0_98, %c0_99] : memref<4x8x1xf32, #tpu.memory_space<vmem>>, vector<1x8x1xf32>
    %192 = vector.shape_cast %191 : vector<1x8x1xf32> to vector<8x1xf32>
    %193 = vector.shape_cast %190 : vector<8x1xf32> to vector<1x8x1xf32>
    tpu.vector_store %arg14[%c3_97, %c0_98, %c0_99], %193 {strides = array<i32>} : memref<4x8x1xf32, #tpu.memory_space<vmem>>, vector<1x8x1xf32>,
    %c3_100 = arith.constant 3 : index
    %c0_101 = arith.constant 0 : index
    %c0_102 = arith.constant 0 : index
    %194 = vector.load %arg15[%c3_100, %c0_101, %c0_102] : memref<4x8x8xf32, #tpu.memory_space<vmem>>, vector<1x8x8xf32>
    %195 = vector.shape_cast %194 : vector<1x8x8xf32> to vector<8x8xf32>
    %196 = vector.broadcast %181 : vector<8x1xf32> to vector<8x8xf32>
    %197 = arith.mulf %196, %195 : vector<8x8xf32>
    %198 = arith.truncf %184 : vector<8x8xf32> to vector<8x8xbf16>
    %199 = vector.extract_strided_slice %8 {offsets = [0, 3, 0], sizes = [8, 1, 8], strides = [1, 1, 1]} : vector<8x4x8xbf16> to vector<8x1x8xbf16>
    %200 = vector.shape_cast %199 : vector<8x1x8xbf16> to vector<8x8xbf16>
    %cst_103 = arith.constant dense<0.000000e+00> : vector<8x8xf32>
    %201 = tpu.matmul %198, %200, %cst_103 {dimension_numbers = #tpu.dot_dimension_numbers<[1], [0], [0], [1], [0, 0, 1, 1], [], []>} : vector<8x8xbf16>, vector<8x8xbf16>, vector<8x8xf32> -> vector<8x8xf32>
    %202 = arith.addf %197, %201 : vector<8x8xf32>
    %c3_104 = arith.constant 3 : index
    %c0_105 = arith.constant 0 : index
    %c0_106 = arith.constant 0 : index
    %203 = vector.load %arg15[%c3_104, %c0_105, %c0_106] : memref<4x8x8xf32, #tpu.memory_space<vmem>>, vector<1x8x8xf32>
    %204 = vector.shape_cast %203 : vector<1x8x8xf32> to vector<8x8xf32>
    %205 = vector.shape_cast %202 : vector<8x8xf32> to vector<1x8x8xf32>
    tpu.vector_store %arg15[%c3_104, %c0_105, %c0_106], %205 {strides = array<i32>} : memref<4x8x8xf32, #tpu.memory_space<vmem>>, vector<1x8x8xf32>,
    %c3_107 = arith.constant 3 : index
    %c0_108 = arith.constant 0 : index
    %c0_109 = arith.constant 0 : index
    %206 = vector.load %arg13[%c3_107, %c0_108, %c0_109] : memref<4x8x1xf32, #tpu.memory_space<vmem>>, vector<1x8x1xf32>
    %207 = vector.shape_cast %206 : vector<1x8x1xf32> to vector<8x1xf32>
    %208 = vector.shape_cast %179 : vector<8x1xf32> to vector<1x8x1xf32>
    tpu.vector_store %arg13[%c3_107, %c0_108, %c0_109], %208 {strides = array<i32>} : memref<4x8x1xf32, #tpu.memory_space<vmem>>, vector<1x8x1xf32>,
    %c0_i32_110 = arith.constant 0 : i32
    %209 = arith.cmpi eq, %arg3, %c0_i32_110 : i32
    %210 = arith.extui %209 : i1 to i32
    %c0_i32_111 = arith.constant 0 : i32
    %211 = arith.cmpi ne, %210, %c0_i32_111 : i32
    scf.if %211 {
      %c0_112 = arith.constant 0 : index
      %c0_113 = arith.constant 0 : index
      %c0_114 = arith.constant 0 : index
      %212 = vector.load %arg15[%c0_112, %c0_113, %c0_114] : memref<4x8x8xf32, #tpu.memory_space<vmem>>, vector<1x8x8xf32>
      %213 = vector.shape_cast %212 : vector<1x8x8xf32> to vector<8x8xf32>
      %c0_115 = arith.constant 0 : index
      %c0_116 = arith.constant 0 : index
      %c0_117 = arith.constant 0 : index
      %214 = vector.load %arg14[%c0_115, %c0_116, %c0_117] : memref<4x8x1xf32, #tpu.memory_space<vmem>>, vector<1x8x1xf32>
      %215 = vector.shape_cast %214 : vector<1x8x1xf32> to vector<8x1xf32>
      %216 = vector.broadcast %215 : vector<8x1xf32> to vector<8x8xf32>
      %217 = arith.divf %213, %216 : vector<8x8xf32>
      %218 = arith.truncf %217 : vector<8x8xf32> to vector<8x8xbf16>
      %c0_118 = arith.constant 0 : index
      %c0_119 = arith.constant 0 : index
      %c0_120 = arith.constant 0 : index
      %c0_121 = arith.constant 0 : index
      %219 = vector.load %arg11[%c0_118, %c0_119, %c0_120, %c0_121] : memref<1x8x4x8xbf16, #tpu.memory_space<vmem>>, vector<1x8x1x8xbf16>
      %220 = vector.shape_cast %219 : vector<1x8x1x8xbf16> to vector<8x8xbf16>
      %221 = vector.shape_cast %218 : vector<8x8xbf16> to vector<1x8x1x8xbf16>
      tpu.vector_store %arg11[%c0_118, %c0_119, %c0_120, %c0_121], %221 {strides = array<i32>} : memref<1x8x4x8xbf16, #tpu.memory_space<vmem>>, vector<1x8x1x8xbf16>,
      %c1_122 = arith.constant 1 : index
      %c0_123 = arith.constant 0 : index
      %c0_124 = arith.constant 0 : index
      %222 = vector.load %arg15[%c1_122, %c0_123, %c0_124] : memref<4x8x8xf32, #tpu.memory_space<vmem>>, vector<1x8x8xf32>
      %223 = vector.shape_cast %222 : vector<1x8x8xf32> to vector<8x8xf32>
      %c1_125 = arith.constant 1 : index
      %c0_126 = arith.constant 0 : index
      %c0_127 = arith.constant 0 : index
      %224 = vector.load %arg14[%c1_125, %c0_126, %c0_127] : memref<4x8x1xf32, #tpu.memory_space<vmem>>, vector<1x8x1xf32>
      %225 = vector.shape_cast %224 : vector<1x8x1xf32> to vector<8x1xf32>
      %226 = vector.broadcast %225 : vector<8x1xf32> to vector<8x8xf32>
      %227 = arith.divf %223, %226 : vector<8x8xf32>
      %228 = arith.truncf %227 : vector<8x8xf32> to vector<8x8xbf16>
      %c0_128 = arith.constant 0 : index
      %c0_129 = arith.constant 0 : index
      %c1_130 = arith.constant 1 : index
      %c0_131 = arith.constant 0 : index
      %229 = vector.load %arg11[%c0_128, %c0_129, %c1_130, %c0_131] : memref<1x8x4x8xbf16, #tpu.memory_space<vmem>>, vector<1x8x1x8xbf16>
      %230 = vector.shape_cast %229 : vector<1x8x1x8xbf16> to vector<8x8xbf16>
      %231 = vector.shape_cast %228 : vector<8x8xbf16> to vector<1x8x1x8xbf16>
      tpu.vector_store %arg11[%c0_128, %c0_129, %c1_130, %c0_131], %231 {strides = array<i32>} : memref<1x8x4x8xbf16, #tpu.memory_space<vmem>>, vector<1x8x1x8xbf16>,
      %c2_132 = arith.constant 2 : index
      %c0_133 = arith.constant 0 : index
      %c0_134 = arith.constant 0 : index
      %232 = vector.load %arg15[%c2_132, %c0_133, %c0_134] : memref<4x8x8xf32, #tpu.memory_space<vmem>>, vector<1x8x8xf32>
      %233 = vector.shape_cast %232 : vector<1x8x8xf32> to vector<8x8xf32>
      %c2_135 = arith.constant 2 : index
      %c0_136 = arith.constant 0 : index
      %c0_137 = arith.constant 0 : index
      %234 = vector.load %arg14[%c2_135, %c0_136, %c0_137] : memref<4x8x1xf32, #tpu.memory_space<vmem>>, vector<1x8x1xf32>
      %235 = vector.shape_cast %234 : vector<1x8x1xf32> to vector<8x1xf32>
      %236 = vector.broadcast %235 : vector<8x1xf32> to vector<8x8xf32>
      %237 = arith.divf %233, %236 : vector<8x8xf32>
      %238 = arith.truncf %237 : vector<8x8xf32> to vector<8x8xbf16>
      %c0_138 = arith.constant 0 : index
      %c0_139 = arith.constant 0 : index
      %c2_140 = arith.constant 2 : index
      %c0_141 = arith.constant 0 : index
      %239 = vector.load %arg11[%c0_138, %c0_139, %c2_140, %c0_141] : memref<1x8x4x8xbf16, #tpu.memory_space<vmem>>, vector<1x8x1x8xbf16>
      %240 = vector.shape_cast %239 : vector<1x8x1x8xbf16> to vector<8x8xbf16>
      %241 = vector.shape_cast %238 : vector<8x8xbf16> to vector<1x8x1x8xbf16>
      tpu.vector_store %arg11[%c0_138, %c0_139, %c2_140, %c0_141], %241 {strides = array<i32>} : memref<1x8x4x8xbf16, #tpu.memory_space<vmem>>, vector<1x8x1x8xbf16>,
      %c3_142 = arith.constant 3 : index
      %c0_143 = arith.constant 0 : index
      %c0_144 = arith.constant 0 : index
      %242 = vector.load %arg15[%c3_142, %c0_143, %c0_144] : memref<4x8x8xf32, #tpu.memory_space<vmem>>, vector<1x8x8xf32>
      %243 = vector.shape_cast %242 : vector<1x8x8xf32> to vector<8x8xf32>
      %c3_145 = arith.constant 3 : index
      %c0_146 = arith.constant 0 : index
      %c0_147 = arith.constant 0 : index
      %244 = vector.load %arg14[%c3_145, %c0_146, %c0_147] : memref<4x8x1xf32, #tpu.memory_space<vmem>>, vector<1x8x1xf32>
      %245 = vector.shape_cast %244 : vector<1x8x1xf32> to vector<8x1xf32>
      %246 = vector.broadcast %245 : vector<8x1xf32> to vector<8x8xf32>
      %247 = arith.divf %243, %246 : vector<8x8xf32>
      %248 = arith.truncf %247 : vector<8x8xf32> to vector<8x8xbf16>
      %c0_148 = arith.constant 0 : index
      %c0_149 = arith.constant 0 : index
      %c3_150 = arith.constant 3 : index
      %c0_151 = arith.constant 0 : index
      %249 = vector.load %arg11[%c0_148, %c0_149, %c3_150, %c0_151] : memref<1x8x4x8xbf16, #tpu.memory_space<vmem>>, vector<1x8x1x8xbf16>
      %250 = vector.shape_cast %249 : vector<1x8x1x8xbf16> to vector<8x8xbf16>
      %251 = vector.shape_cast %248 : vector<8x8xbf16> to vector<1x8x1x8xbf16>
      tpu.vector_store %arg11[%c0_148, %c0_149, %c3_150, %c0_151], %251 {strides = array<i32>} : memref<1x8x4x8xbf16, #tpu.memory_space<vmem>>, vector<1x8x1x8xbf16>,
    } else {
    }
    return
  }
  func.func @transform_0(%arg0: i32, %arg1: i32, %arg2: i32, %arg3: i32) -> (i32, i32, i32, i32, i32) {
    %c0_i32 = arith.constant 0 : i32
    %c0_i32_0 = arith.constant 0 : i32
    %c0_i32_1 = arith.constant 0 : i32
    return %arg0, %arg2, %c0_i32, %arg1, %c0_i32_0 : i32, i32, i32, i32, i32
  }
  func.func @transform_1(%arg0: i32, %arg1: i32, %arg2: i32, %arg3: i32) -> (i32, i32, i32, i32, i32) {
    %c1_i32 = arith.constant 1 : i32
    %c0_i32 = arith.constant 0 : i32
    %c0_i32_0 = arith.constant 0 : i32
    return %arg0, %arg3, %c1_i32, %arg1, %c0_i32 : i32, i32, i32, i32, i32
  }
  func.func @transform_2(%arg0: i32, %arg1: i32, %arg2: i32, %arg3: i32) -> (i32, i32, i32, i32, i32) {
    %c2_i32 = arith.constant 2 : i32
    %c0_i32 = arith.constant 0 : i32
    %c0_i32_0 = arith.constant 0 : i32
    return %arg0, %arg3, %c2_i32, %arg1, %c0_i32 : i32, i32, i32, i32, i32
  }
  func.func @transform_3(%arg0: i32, %arg1: i32, %arg2: i32, %arg3: i32) -> (i32, i32) {
    %c0_i32 = arith.constant 0 : i32
    %c0_i32_0 = arith.constant 0 : i32
    return %arg2, %c0_i32 : i32, i32
  }
  func.func @transform_4(%arg0: i32, %arg1: i32, %arg2: i32, %arg3: i32) -> (i32, i32) {
    %c0_i32 = arith.constant 0 : i32
    %c0_i32_0 = arith.constant 0 : i32
    return %arg2, %c0_i32 : i32, i32
  }
  func.func @transform_5(%arg0: i32, %arg1: i32, %arg2: i32, %arg3: i32) -> (i32, i32) {
    %c0_i32 = arith.constant 0 : i32
    %c0_i32_0 = arith.constant 0 : i32
    return %arg3, %c0_i32 : i32, i32
  }
  func.func @transform_6(%arg0: i32, %arg1: i32, %arg2: i32, %arg3: i32) -> (i32, i32) {
    %c0_i32 = arith.constant 0 : i32
    %c0_i32_0 = arith.constant 0 : i32
    return %arg3, %c0_i32 : i32, i32
  }
  func.func @transform_7(%arg0: i32, %arg1: i32, %arg2: i32, %arg3: i32) -> (i32, i32, i32, i32) {
    %c0_i32 = arith.constant 0 : i32
    %c0_i32_0 = arith.constant 0 : i32
    return %arg0, %arg2, %arg1, %c0_i32 : i32, i32, i32, i32
  }
}

module attributes {stable_mosaic.version = 11 : i64} {
  func.func @kernel(%arg0: i32, %arg1: i32, %arg2: i32, %arg3: memref<16x32xbf16, #tpu.memory_space<vmem>>, %arg4: memref<32x32xbf16, #tpu.memory_space<vmem>>, %arg5: memref<16x32xf32, #tpu.memory_space<vmem>>, %arg6: memref<16x32xf32, #tpu.memory_space<vmem>>, %arg7: memref<16x32xf32, #tpu.memory_space<vmem>>) attributes {dimension_semantics = [#tpu.dimension_semantics<parallel>, #tpu.dimension_semantics<parallel>, #tpu.dimension_semantics<arbitrary>], iteration_bounds = array<i64: 1, 1, 1>, scalar_prefetch = 0 : i64, scratch_operands = 1 : i64, tpu.core_type = #tpu.core_type<tc>, window_params = [{transform_indices = @transform_0, window_bounds = array<i64: 16, 32>}, {transform_indices = @transform_1, window_bounds = array<i64: 32, 32>}, {transform_indices = @transform_2, window_bounds = array<i64: 16, 32>}, {transform_indices = @transform_3, window_bounds = array<i64: 16, 32>}]} {
    %c0_i32 = arith.constant 0 : i32
    %0 = arith.cmpi eq, %arg2, %c0_i32 : i32
    %1 = arith.extui %0 : i1 to i32
    %c0_i32_0 = arith.constant 0 : i32
    %2 = arith.cmpi ne, %1, %c0_i32_0 : i32
    scf.if %2 {
      %cst_10 = arith.constant 0.000000e+00 : f32
      %12 = vector.broadcast %cst_10 : f32 to vector<16x32xf32>
      %c0_11 = arith.constant 0 : index
      %c0_12 = arith.constant 0 : index
      %13 = vector.load %arg7[%c0_11, %c0_12] : memref<16x32xf32, #tpu.memory_space<vmem>>, vector<16x32xf32>
      tpu.vector_store %arg7[%c0_11, %c0_12], %12 {strides = array<i32>} : memref<16x32xf32, #tpu.memory_space<vmem>>, vector<16x32xf32>,
    } else {
    }
    %c0 = arith.constant 0 : index
    %c0_1 = arith.constant 0 : index
    %3 = vector.load %arg7[%c0, %c0_1] : memref<16x32xf32, #tpu.memory_space<vmem>>, vector<16x32xf32>
    %c0_2 = arith.constant 0 : index
    %c0_3 = arith.constant 0 : index
    %4 = vector.load %arg3[%c0_2, %c0_3] : memref<16x32xbf16, #tpu.memory_space<vmem>>, vector<16x32xbf16>
    %c0_4 = arith.constant 0 : index
    %c0_5 = arith.constant 0 : index
    %5 = vector.load %arg4[%c0_4, %c0_5] : memref<32x32xbf16, #tpu.memory_space<vmem>>, vector<32x32xbf16>
    %cst = arith.constant dense<0.000000e+00> : vector<16x32xf32>
    %6 = tpu.matmul %4, %5, %cst {dimension_numbers = #tpu.dot_dimension_numbers<[1], [0], [0], [1], [0, 0, 1, 1], [], []>} : vector<16x32xbf16>, vector<32x32xbf16>, vector<16x32xf32> -> vector<16x32xf32>
    %7 = arith.addf %3, %6 : vector<16x32xf32>
    %c0_6 = arith.constant 0 : index
    %c0_7 = arith.constant 0 : index
    %8 = vector.load %arg7[%c0_6, %c0_7] : memref<16x32xf32, #tpu.memory_space<vmem>>, vector<16x32xf32>
    tpu.vector_store %arg7[%c0_6, %c0_7], %7 {strides = array<i32>} : memref<16x32xf32, #tpu.memory_space<vmem>>, vector<16x32xf32>,
    %c0_i32_8 = arith.constant 0 : i32
    %9 = arith.cmpi eq, %arg2, %c0_i32_8 : i32
    %10 = arith.extui %9 : i1 to i32
    %c0_i32_9 = arith.constant 0 : i32
    %11 = arith.cmpi ne, %10, %c0_i32_9 : i32
    scf.if %11 {
      %c0_10 = arith.constant 0 : index
      %c0_11 = arith.constant 0 : index
      %12 = vector.load %arg7[%c0_10, %c0_11] : memref<16x32xf32, #tpu.memory_space<vmem>>, vector<16x32xf32>
      %c0_12 = arith.constant 0 : index
      %c0_13 = arith.constant 0 : index
      %13 = vector.load %arg5[%c0_12, %c0_13] : memref<16x32xf32, #tpu.memory_space<vmem>>, vector<16x32xf32>
      %14 = arith.addf %12, %13 : vector<16x32xf32>
      %c0_14 = arith.constant 0 : index
      %c0_15 = arith.constant 0 : index
      %15 = vector.load %arg6[%c0_14, %c0_15] : memref<16x32xf32, #tpu.memory_space<vmem>>, vector<16x32xf32>
      tpu.vector_store %arg6[%c0_14, %c0_15], %14 {strides = array<i32>} : memref<16x32xf32, #tpu.memory_space<vmem>>, vector<16x32xf32>,
    } else {
    }
    return
  }
  func.func @transform_0(%arg0: i32, %arg1: i32, %arg2: i32) -> (i32, i32) {
    %c0_i32 = arith.constant 0 : i32
    return %arg0, %arg2 : i32, i32
  }
  func.func @transform_1(%arg0: i32, %arg1: i32, %arg2: i32) -> (i32, i32) {
    %c0_i32 = arith.constant 0 : i32
    return %arg2, %arg1 : i32, i32
  }
  func.func @transform_2(%arg0: i32, %arg1: i32, %arg2: i32) -> (i32, i32) {
    %c0_i32 = arith.constant 0 : i32
    return %arg0, %arg1 : i32, i32
  }
  func.func @transform_3(%arg0: i32, %arg1: i32, %arg2: i32) -> (i32, i32) {
    %c0_i32 = arith.constant 0 : i32
    return %arg0, %arg1 : i32, i32
  }
}

module attributes {stable_mosaic.version = 11 : i64} {
  func.func @kernel(%arg0: i32, %arg1: i32, %arg2: i32, %arg3: memref<16x32xbf16, #tpu.memory_space<vmem>>, %arg4: memref<32x4xbf16, #tpu.memory_space<vmem>>, %arg5: memref<1x4xf32, #tpu.memory_space<vmem>>, %arg6: memref<16x4xf32, #tpu.memory_space<vmem>>, %arg7: memref<16x4xf32, #tpu.memory_space<vmem>>) attributes {dimension_semantics = [#tpu.dimension_semantics<parallel>, #tpu.dimension_semantics<parallel>, #tpu.dimension_semantics<arbitrary>], iteration_bounds = array<i64: 1, 1, 1>, scalar_prefetch = 0 : i64, scratch_operands = 1 : i64, tpu.core_type = #tpu.core_type<tc>, window_params = [{transform_indices = @transform_0, window_bounds = array<i64: 16, 32>}, {transform_indices = @transform_1, window_bounds = array<i64: 32, 4>}, {transform_indices = @transform_2, window_bounds = array<i64: 1, 4>}, {transform_indices = @transform_3, window_bounds = array<i64: 16, 4>}]} {
    %c0_i32 = arith.constant 0 : i32
    %0 = arith.cmpi eq, %arg2, %c0_i32 : i32
    %1 = arith.extui %0 : i1 to i32
    %c0_i32_0 = arith.constant 0 : i32
    %2 = arith.cmpi ne, %1, %c0_i32_0 : i32
    scf.if %2 {
      %cst_10 = arith.constant 0.000000e+00 : f32
      %12 = vector.broadcast %cst_10 : f32 to vector<16x4xf32>
      %c0_11 = arith.constant 0 : index
      %c0_12 = arith.constant 0 : index
      %13 = vector.load %arg7[%c0_11, %c0_12] : memref<16x4xf32, #tpu.memory_space<vmem>>, vector<16x4xf32>
      tpu.vector_store %arg7[%c0_11, %c0_12], %12 {strides = array<i32>} : memref<16x4xf32, #tpu.memory_space<vmem>>, vector<16x4xf32>,
    } else {
    }
    %c0 = arith.constant 0 : index
    %c0_1 = arith.constant 0 : index
    %3 = vector.load %arg7[%c0, %c0_1] : memref<16x4xf32, #tpu.memory_space<vmem>>, vector<16x4xf32>
    %c0_2 = arith.constant 0 : index
    %c0_3 = arith.constant 0 : index
    %4 = vector.load %arg3[%c0_2, %c0_3] : memref<16x32xbf16, #tpu.memory_space<vmem>>, vector<16x32xbf16>
    %c0_4 = arith.constant 0 : index
    %c0_5 = arith.constant 0 : index
    %5 = vector.load %arg4[%c0_4, %c0_5] : memref<32x4xbf16, #tpu.memory_space<vmem>>, vector<32x4xbf16>
    %cst = arith.constant dense<0.000000e+00> : vector<16x4xf32>
    %6 = tpu.matmul %4, %5, %cst {dimension_numbers = #tpu.dot_dimension_numbers<[1], [0], [0], [1], [0, 0, 1, 1], [], []>} : vector<16x32xbf16>, vector<32x4xbf16>, vector<16x4xf32> -> vector<16x4xf32>
    %7 = arith.addf %3, %6 : vector<16x4xf32>
    %c0_6 = arith.constant 0 : index
    %c0_7 = arith.constant 0 : index
    %8 = vector.load %arg7[%c0_6, %c0_7] : memref<16x4xf32, #tpu.memory_space<vmem>>, vector<16x4xf32>
    tpu.vector_store %arg7[%c0_6, %c0_7], %7 {strides = array<i32>} : memref<16x4xf32, #tpu.memory_space<vmem>>, vector<16x4xf32>,
    %c0_i32_8 = arith.constant 0 : i32
    %9 = arith.cmpi eq, %arg2, %c0_i32_8 : i32
    %10 = arith.extui %9 : i1 to i32
    %c0_i32_9 = arith.constant 0 : i32
    %11 = arith.cmpi ne, %10, %c0_i32_9 : i32
    scf.if %11 {
      %c0_10 = arith.constant 0 : index
      %c0_11 = arith.constant 0 : index
      %12 = vector.load %arg7[%c0_10, %c0_11] : memref<16x4xf32, #tpu.memory_space<vmem>>, vector<16x4xf32>
      %c0_12 = arith.constant 0 : index
      %c0_13 = arith.constant 0 : index
      %13 = vector.load %arg5[%c0_12, %c0_13] : memref<1x4xf32, #tpu.memory_space<vmem>>, vector<1x4xf32>
      %14 = vector.broadcast %13 : vector<1x4xf32> to vector<16x4xf32>
      %15 = arith.addf %12, %14 : vector<16x4xf32>
      %c0_14 = arith.constant 0 : index
      %c0_15 = arith.constant 0 : index
      %16 = vector.load %arg6[%c0_14, %c0_15] : memref<16x4xf32, #tpu.memory_space<vmem>>, vector<16x4xf32>
      tpu.vector_store %arg6[%c0_14, %c0_15], %15 {strides = array<i32>} : memref<16x4xf32, #tpu.memory_space<vmem>>, vector<16x4xf32>,
    } else {
    }
    return
  }
  func.func @transform_0(%arg0: i32, %arg1: i32, %arg2: i32) -> (i32, i32) {
    %c0_i32 = arith.constant 0 : i32
    return %arg0, %arg2 : i32, i32
  }
  func.func @transform_1(%arg0: i32, %arg1: i32, %arg2: i32) -> (i32, i32) {
    %c0_i32 = arith.constant 0 : i32
    return %arg2, %arg1 : i32, i32
  }
  func.func @transform_2(%arg0: i32, %arg1: i32, %arg2: i32) -> (i32, i32) {
    %c0_i32 = arith.constant 0 : i32
    %c0_i32_0 = arith.constant 0 : i32
    return %c0_i32, %arg1 : i32, i32
  }
  func.func @transform_3(%arg0: i32, %arg1: i32, %arg2: i32) -> (i32, i32) {
    %c0_i32 = arith.constant 0 : i32
    return %arg0, %arg1 : i32, i32
  }
}

module attributes {stable_mosaic.version = 11 : i64} {
  func.func @_moe_kernel(%arg0: i32, %arg1: i32, %arg2: i32, %arg3: memref<16x32xbf16, #tpu.memory_space<vmem>>, %arg4: memref<1x32x16xbf16, #tpu.memory_space<vmem>>, %arg5: memref<1x32x16xbf16, #tpu.memory_space<vmem>>, %arg6: memref<1x16x32xbf16, #tpu.memory_space<vmem>>, %arg7: memref<16x4xf32, #tpu.memory_space<vmem>>, %arg8: memref<16x32xf32, #tpu.memory_space<vmem>>, %arg9: memref<16x32xf32, #tpu.memory_space<vmem>>, %arg10: memref<16x32xf32, #tpu.memory_space<vmem>>) attributes {dimension_semantics = [#tpu.dimension_semantics<parallel>, #tpu.dimension_semantics<arbitrary>, #tpu.dimension_semantics<arbitrary>], iteration_bounds = array<i64: 1, 4, 1>, scalar_prefetch = 0 : i64, scratch_operands = 1 : i64, tpu.core_type = #tpu.core_type<tc>, window_params = [{transform_indices = @transform_0, window_bounds = array<i64: 16, 32>}, {transform_indices = @transform_1, window_bounds = array<i64: 1, 32, 16>}, {transform_indices = @transform_2, window_bounds = array<i64: 1, 32, 16>}, {transform_indices = @transform_3, window_bounds = array<i64: 1, 16, 32>}, {transform_indices = @transform_4, window_bounds = array<i64: 16, 4>}, {transform_indices = @transform_5, window_bounds = array<i64: 16, 32>}, {transform_indices = @transform_6, window_bounds = array<i64: 16, 32>}]} {
    %c0_i32 = arith.constant 0 : i32
    %0 = arith.cmpi eq, %arg1, %c0_i32 : i32
    %c0_i32_0 = arith.constant 0 : i32
    %1 = arith.cmpi eq, %arg2, %c0_i32_0 : i32
    %2 = arith.andi %0, %1 : i1
    %3 = arith.extui %2 : i1 to i32
    %c0_i32_1 = arith.constant 0 : i32
    %4 = arith.cmpi ne, %3, %c0_i32_1 : i32
    scf.if %4 {
      %cst_25 = arith.constant 0.000000e+00 : f32
      %41 = vector.broadcast %cst_25 : f32 to vector<16x32xf32>
      %c0_26 = arith.constant 0 : index
      %c0_27 = arith.constant 0 : index
      %42 = vector.load %arg10[%c0_26, %c0_27] : memref<16x32xf32, #tpu.memory_space<vmem>>, vector<16x32xf32>
      tpu.vector_store %arg10[%c0_26, %c0_27], %41 {strides = array<i32>} : memref<16x32xf32, #tpu.memory_space<vmem>>, vector<16x32xf32>,
    } else {
    }
    %c0 = arith.constant 0 : index
    %c0_2 = arith.constant 0 : index
    %5 = vector.load %arg3[%c0, %c0_2] : memref<16x32xbf16, #tpu.memory_space<vmem>>, vector<16x32xbf16>
    %c0_3 = arith.constant 0 : index
    %c0_4 = arith.constant 0 : index
    %c0_5 = arith.constant 0 : index
    %6 = vector.load %arg4[%c0_3, %c0_4, %c0_5] : memref<1x32x16xbf16, #tpu.memory_space<vmem>>, vector<1x32x16xbf16>
    %7 = vector.shape_cast %6 : vector<1x32x16xbf16> to vector<32x16xbf16>
    %cst = arith.constant dense<0.000000e+00> : vector<16x16xf32>
    %8 = tpu.matmul %5, %7, %cst {dimension_numbers = #tpu.dot_dimension_numbers<[1], [0], [0], [1], [0, 0, 1, 1], [], []>} : vector<16x32xbf16>, vector<32x16xbf16>, vector<16x16xf32> -> vector<16x16xf32>
    %c0_6 = arith.constant 0 : index
    %c0_7 = arith.constant 0 : index
    %c0_8 = arith.constant 0 : index
    %9 = vector.load %arg5[%c0_6, %c0_7, %c0_8] : memref<1x32x16xbf16, #tpu.memory_space<vmem>>, vector<1x32x16xbf16>
    %10 = vector.shape_cast %9 : vector<1x32x16xbf16> to vector<32x16xbf16>
    %cst_9 = arith.constant dense<0.000000e+00> : vector<16x16xf32>
    %11 = tpu.matmul %5, %10, %cst_9 {dimension_numbers = #tpu.dot_dimension_numbers<[1], [0], [0], [1], [0, 0, 1, 1], [], []>} : vector<16x32xbf16>, vector<32x16xbf16>, vector<16x16xf32> -> vector<16x16xf32>
    %12 = arith.negf %8 : vector<16x16xf32>
    %13 = math.exp %12 : vector<16x16xf32>
    %cst_10 = arith.constant 1.000000e+00 : f32
    %14 = vector.broadcast %cst_10 : f32 to vector<16x16xf32>
    %15 = arith.addf %14, %13 : vector<16x16xf32>
    %16 = arith.divf %14, %15 : vector<16x16xf32>
    %17 = arith.mulf %8, %16 : vector<16x16xf32>
    %18 = arith.mulf %17, %11 : vector<16x16xf32>
    %c0_11 = arith.constant 0 : index
    %c0_12 = arith.constant 0 : index
    %19 = vector.load %arg7[%c0_11, %c0_12] : memref<16x4xf32, #tpu.memory_space<vmem>>, vector<16x4xf32>
    %20 = tpu.iota {dimensions = array<i32: 1>} : vector<16x4xi32>
    %21 = vector.broadcast %arg1 : i32 to vector<16x4xi32>
    %22 = arith.cmpi eq, %20, %21 : vector<16x4xi32>
    %cst_13 = arith.constant 0.000000e+00 : f32
    %23 = vector.broadcast %cst_13 : f32 to vector<16x4xf32>
    %24 = arith.select %22, %19, %23 : vector<16x4xi1>, vector<16x4xf32>
    %cst_14 = arith.constant dense<0.000000e+00> : vector<16xf32>
    %25 = vector.multi_reduction <add>, %24, %cst_14 [1] : vector<16x4xf32> to vector<16xf32>
    %26 = vector.shape_cast %25 : vector<16xf32> to vector<16x1xf32>
    %27 = vector.broadcast %26 : vector<16x1xf32> to vector<16x16xf32>
    %28 = arith.mulf %18, %27 : vector<16x16xf32>
    %29 = arith.truncf %28 : vector<16x16xf32> to vector<16x16xbf16>
    %c0_15 = arith.constant 0 : index
    %c0_16 = arith.constant 0 : index
    %30 = vector.load %arg10[%c0_15, %c0_16] : memref<16x32xf32, #tpu.memory_space<vmem>>, vector<16x32xf32>
    %c0_17 = arith.constant 0 : index
    %c0_18 = arith.constant 0 : index
    %c0_19 = arith.constant 0 : index
    %31 = vector.load %arg6[%c0_17, %c0_18, %c0_19] : memref<1x16x32xbf16, #tpu.memory_space<vmem>>, vector<1x16x32xbf16>
    %32 = vector.shape_cast %31 : vector<1x16x32xbf16> to vector<16x32xbf16>
    %cst_20 = arith.constant dense<0.000000e+00> : vector<16x32xf32>
    %33 = tpu.matmul %29, %32, %cst_20 {dimension_numbers = #tpu.dot_dimension_numbers<[1], [0], [0], [1], [0, 0, 1, 1], [], []>} : vector<16x16xbf16>, vector<16x32xbf16>, vector<16x32xf32> -> vector<16x32xf32>
    %34 = arith.addf %30, %33 : vector<16x32xf32>
    %c0_21 = arith.constant 0 : index
    %c0_22 = arith.constant 0 : index
    %35 = vector.load %arg10[%c0_21, %c0_22] : memref<16x32xf32, #tpu.memory_space<vmem>>, vector<16x32xf32>
    tpu.vector_store %arg10[%c0_21, %c0_22], %34 {strides = array<i32>} : memref<16x32xf32, #tpu.memory_space<vmem>>, vector<16x32xf32>,
    %c3_i32 = arith.constant 3 : i32
    %36 = arith.cmpi eq, %arg1, %c3_i32 : i32
    %c0_i32_23 = arith.constant 0 : i32
    %37 = arith.cmpi eq, %arg2, %c0_i32_23 : i32
    %38 = arith.andi %36, %37 : i1
    %39 = arith.extui %38 : i1 to i32
    %c0_i32_24 = arith.constant 0 : i32
    %40 = arith.cmpi ne, %39, %c0_i32_24 : i32
    scf.if %40 {
      %c0_25 = arith.constant 0 : index
      %c0_26 = arith.constant 0 : index
      %41 = vector.load %arg10[%c0_25, %c0_26] : memref<16x32xf32, #tpu.memory_space<vmem>>, vector<16x32xf32>
      %c0_27 = arith.constant 0 : index
      %c0_28 = arith.constant 0 : index
      %42 = vector.load %arg8[%c0_27, %c0_28] : memref<16x32xf32, #tpu.memory_space<vmem>>, vector<16x32xf32>
      %43 = arith.addf %41, %42 : vector<16x32xf32>
      %c0_29 = arith.constant 0 : index
      %c0_30 = arith.constant 0 : index
      %44 = vector.load %arg9[%c0_29, %c0_30] : memref<16x32xf32, #tpu.memory_space<vmem>>, vector<16x32xf32>
      tpu.vector_store %arg9[%c0_29, %c0_30], %43 {strides = array<i32>} : memref<16x32xf32, #tpu.memory_space<vmem>>, vector<16x32xf32>,
    } else {
    }
    return
  }
  func.func @transform_0(%arg0: i32, %arg1: i32, %arg2: i32) -> (i32, i32) {
    %c0_i32 = arith.constant 0 : i32
    %c0_i32_0 = arith.constant 0 : i32
    return %arg0, %c0_i32 : i32, i32
  }
  func.func @transform_1(%arg0: i32, %arg1: i32, %arg2: i32) -> (i32, i32, i32) {
    %c0_i32 = arith.constant 0 : i32
    %c0_i32_0 = arith.constant 0 : i32
    return %arg1, %c0_i32, %arg2 : i32, i32, i32
  }
  func.func @transform_2(%arg0: i32, %arg1: i32, %arg2: i32) -> (i32, i32, i32) {
    %c0_i32 = arith.constant 0 : i32
    %c0_i32_0 = arith.constant 0 : i32
    return %arg1, %c0_i32, %arg2 : i32, i32, i32
  }
  func.func @transform_3(%arg0: i32, %arg1: i32, %arg2: i32) -> (i32, i32, i32) {
    %c0_i32 = arith.constant 0 : i32
    %c0_i32_0 = arith.constant 0 : i32
    return %arg1, %arg2, %c0_i32 : i32, i32, i32
  }
  func.func @transform_4(%arg0: i32, %arg1: i32, %arg2: i32) -> (i32, i32) {
    %c0_i32 = arith.constant 0 : i32
    %c0_i32_0 = arith.constant 0 : i32
    return %arg0, %c0_i32 : i32, i32
  }
  func.func @transform_5(%arg0: i32, %arg1: i32, %arg2: i32) -> (i32, i32) {
    %c0_i32 = arith.constant 0 : i32
    %c0_i32_0 = arith.constant 0 : i32
    return %arg0, %c0_i32 : i32, i32
  }
  func.func @transform_6(%arg0: i32, %arg1: i32, %arg2: i32) -> (i32, i32) {
    %c0_i32 = arith.constant 0 : i32
    %c0_i32_0 = arith.constant 0 : i32
    return %arg0, %c0_i32 : i32, i32
  }
}

module attributes {stable_mosaic.version = 11 : i64} {
  func.func @kernel(%arg0: i32, %arg1: i32, %arg2: i32, %arg3: memref<16x32xbf16, #tpu.memory_space<vmem>>, %arg4: memref<32x16xbf16, #tpu.memory_space<vmem>>, %arg5: memref<1x16xf32, #tpu.memory_space<vmem>>, %arg6: memref<16x16xf32, #tpu.memory_space<vmem>>, %arg7: memref<16x16xf32, #tpu.memory_space<vmem>>) attributes {dimension_semantics = [#tpu.dimension_semantics<parallel>, #tpu.dimension_semantics<parallel>, #tpu.dimension_semantics<arbitrary>], iteration_bounds = array<i64: 1, 1, 1>, scalar_prefetch = 0 : i64, scratch_operands = 1 : i64, tpu.core_type = #tpu.core_type<tc>, window_params = [{transform_indices = @transform_0, window_bounds = array<i64: 16, 32>}, {transform_indices = @transform_1, window_bounds = array<i64: 32, 16>}, {transform_indices = @transform_2, window_bounds = array<i64: 1, 16>}, {transform_indices = @transform_3, window_bounds = array<i64: 16, 16>}]} {
    %c0_i32 = arith.constant 0 : i32
    %0 = arith.cmpi eq, %arg2, %c0_i32 : i32
    %1 = arith.extui %0 : i1 to i32
    %c0_i32_0 = arith.constant 0 : i32
    %2 = arith.cmpi ne, %1, %c0_i32_0 : i32
    scf.if %2 {
      %cst_10 = arith.constant 0.000000e+00 : f32
      %12 = vector.broadcast %cst_10 : f32 to vector<16x16xf32>
      %c0_11 = arith.constant 0 : index
      %c0_12 = arith.constant 0 : index
      %13 = vector.load %arg7[%c0_11, %c0_12] : memref<16x16xf32, #tpu.memory_space<vmem>>, vector<16x16xf32>
      tpu.vector_store %arg7[%c0_11, %c0_12], %12 {strides = array<i32>} : memref<16x16xf32, #tpu.memory_space<vmem>>, vector<16x16xf32>,
    } else {
    }
    %c0 = arith.constant 0 : index
    %c0_1 = arith.constant 0 : index
    %3 = vector.load %arg7[%c0, %c0_1] : memref<16x16xf32, #tpu.memory_space<vmem>>, vector<16x16xf32>
    %c0_2 = arith.constant 0 : index
    %c0_3 = arith.constant 0 : index
    %4 = vector.load %arg3[%c0_2, %c0_3] : memref<16x32xbf16, #tpu.memory_space<vmem>>, vector<16x32xbf16>
    %c0_4 = arith.constant 0 : index
    %c0_5 = arith.constant 0 : index
    %5 = vector.load %arg4[%c0_4, %c0_5] : memref<32x16xbf16, #tpu.memory_space<vmem>>, vector<32x16xbf16>
    %cst = arith.constant dense<0.000000e+00> : vector<16x16xf32>
    %6 = tpu.matmul %4, %5, %cst {dimension_numbers = #tpu.dot_dimension_numbers<[1], [0], [0], [1], [0, 0, 1, 1], [], []>} : vector<16x32xbf16>, vector<32x16xbf16>, vector<16x16xf32> -> vector<16x16xf32>
    %7 = arith.addf %3, %6 : vector<16x16xf32>
    %c0_6 = arith.constant 0 : index
    %c0_7 = arith.constant 0 : index
    %8 = vector.load %arg7[%c0_6, %c0_7] : memref<16x16xf32, #tpu.memory_space<vmem>>, vector<16x16xf32>
    tpu.vector_store %arg7[%c0_6, %c0_7], %7 {strides = array<i32>} : memref<16x16xf32, #tpu.memory_space<vmem>>, vector<16x16xf32>,
    %c0_i32_8 = arith.constant 0 : i32
    %9 = arith.cmpi eq, %arg2, %c0_i32_8 : i32
    %10 = arith.extui %9 : i1 to i32
    %c0_i32_9 = arith.constant 0 : i32
    %11 = arith.cmpi ne, %10, %c0_i32_9 : i32
    scf.if %11 {
      %c0_10 = arith.constant 0 : index
      %c0_11 = arith.constant 0 : index
      %12 = vector.load %arg7[%c0_10, %c0_11] : memref<16x16xf32, #tpu.memory_space<vmem>>, vector<16x16xf32>
      %c0_12 = arith.constant 0 : index
      %c0_13 = arith.constant 0 : index
      %13 = vector.load %arg5[%c0_12, %c0_13] : memref<1x16xf32, #tpu.memory_space<vmem>>, vector<1x16xf32>
      %14 = vector.broadcast %13 : vector<1x16xf32> to vector<16x16xf32>
      %15 = arith.addf %12, %14 : vector<16x16xf32>
      %c0_14 = arith.constant 0 : index
      %c0_15 = arith.constant 0 : index
      %16 = vector.load %arg6[%c0_14, %c0_15] : memref<16x16xf32, #tpu.memory_space<vmem>>, vector<16x16xf32>
      tpu.vector_store %arg6[%c0_14, %c0_15], %15 {strides = array<i32>} : memref<16x16xf32, #tpu.memory_space<vmem>>, vector<16x16xf32>,
    } else {
    }
    return
  }
  func.func @transform_0(%arg0: i32, %arg1: i32, %arg2: i32) -> (i32, i32) {
    %c0_i32 = arith.constant 0 : i32
    return %arg0, %arg2 : i32, i32
  }
  func.func @transform_1(%arg0: i32, %arg1: i32, %arg2: i32) -> (i32, i32) {
    %c0_i32 = arith.constant 0 : i32
    return %arg2, %arg1 : i32, i32
  }
  func.func @transform_2(%arg0: i32, %arg1: i32, %arg2: i32) -> (i32, i32) {
    %c0_i32 = arith.constant 0 : i32
    %c0_i32_0 = arith.constant 0 : i32
    return %c0_i32, %arg1 : i32, i32
  }
  func.func @transform_3(%arg0: i32, %arg1: i32, %arg2: i32) -> (i32, i32) {
    %c0_i32 = arith.constant 0 : i32
    return %arg0, %arg1 : i32, i32
  }
}

</mosaic_0001>

<llo_original>
// kernel: moe_model_forward.17
$region0: #{moe_model_forward.17}
  #allocation0 [shape = 'u32[]', space=smem, size = 0x4, offset = 0x4, fixed_abs, tag = 'smem constant byte address 0x4 - core index']
  #allocation1 [shape = 'u32[72,128]{1,0:T(1,128)}', space=vmem, size = 0x9000, scoped, tag = 'internal scratch']
  #allocation2 [shape = 'f32[16,96]{1,0:T(8,128)}', space=vmem, size = 0x2000, scoped, tag = 'scratch operand']
  %s0 = inlined_call_operand.vmem [shape: bf16[16,32], index: 0, kind: input, shape index: {}]
  %s1 = inlined_call_operand.vmem [shape: bf16[32,96], index: 1, kind: input, shape index: {}]
  %s2 = inlined_call_operand.vmem [shape: bf16[16,96], index: 2, kind: output, shape index: {}]
  %s3 = sld [smem:[#allocation0]]
  $region26: #{moe_model_forward.17} parent=0
    _
  %s5 = ssub.s32 1, %s3
  %s6 = scalar_select 0, %s5, %s3
  // Predicated region
  $region2: #{moe_model_forward.17} parent=0 // pred_check
    _
  $region3: #{moe_model_forward.17} parent=0 // pred_check_branch
    %8 = sbr.rel (0) target = $region5
  $region4: #{moe_model_forward.17} parent=0 // pred_region
    _
  $region5: #{moe_model_forward.17} parent=0 // pred_fallthru
    _
  // Predicated region
  $region6: #{moe_model_forward.17} parent=0 // pred_check
    _
  $region7: #{moe_model_forward.17} parent=0 // pred_check_branch
    %10 = sbr.rel (0) target = $region9
  $region8: #{moe_model_forward.17} parent=0 // pred_region
    _
  $region9: #{moe_model_forward.17} parent=0 // pred_fallthru
    _
  %p12 = scmp.eq.s32.totalorder 0, 0
  // Predicated region
  $region10: #{moe_model_forward.17} parent=0 // pred_check
    %p13 = pneg %p12
  $region11: #{moe_model_forward.17} parent=0 // pred_check_branch
    %15 = sbr.rel (%p13) target = $region13
  $region12: #{moe_model_forward.17} parent=0 // pred_region
    %vm16 = vcmask 785408
    %17 = vst.msk [vmem:[#allocation2] sm:$0xff] %vm16, 0.0
    %18 = vst.msk [vmem:[#allocation2 + $0x8] sm:$0xff] %vm16, 0.0
  $region13: #{moe_model_forward.17} parent=0 // pred_fallthru
    _
  %v19 = vld [vmem:[#allocation2] sm:$0xff]
  %v20 = vld [vmem:[#allocation2 + $0x8] sm:$0xff]
  %v21 = vld [vmem:[%s0] sm:$0xf]
  %v22 = vld [vmem:[%s0 + $0x4] sm:$0xf]
  %v23 = vld [vmem:[%s1] sm:$0xf]
  %v24 = vld [vmem:[%s1 + $0x4] sm:$0xf]
  %v25 = vld [vmem:[%s1 + $0x8] sm:$0xf]
  %v26 = vld [vmem:[%s1 + $0xc] sm:$0xf]
  %v29 = vunpack.c.l.b16 %v21
  %v30 = vunpack.c.l.b16 %v22
  %v31 = vpack.c.b16 %v30, %v29
  %v36 = vunpack.c.l.b16 %v23
  %v37 = vunpack.c.l.b16 %v24
  %v38 = vunpack.c.l.b16 %v25
  %v39 = vunpack.c.l.b16 %v26
  %v40 = vpack.c.b16 %v37, %v36
  %v41 = vpack.c.b16 %v39, %v38
  %vm44 = vcmask 261120
  %v46 = vsel %vm44, %v31, 0
  %48 = vmatpush.bf16.msra.mxu0 0
  %49 = vmatpush.bf16.msra.mxu0 0
  %50 = vmatpush.bf16.msra.mxu0 0
  %51 = vmatpush.bf16.msra.mxu0 0
  %52 = vmatpush.bf16.msra.mxu0 0
  %53 = vmatpush.bf16.msra.mxu0 0
  %54 = vmatpush.bf16.msra.mxu0 %v41
  %55 = vmatpush.bf16.msra.mxu0 %v40
  %56 = vmatmul.bf16.gmra.mxu0 %v46
  %v57 = vpop.f32.mrf.mxu0
  %v58 = vadd.f32 0.0, %v57
  %v59 = vpop.f32.mrf.mxu0
  %v60 = vadd.f32 0.0, %v59
  %61 = vdwg.mxu0
  %v62 = vadd.f32 %v19, %v58
  %v63 = vadd.f32 %v20, %v60
  %vm64 = vcmask 785408
  %65 = vst.msk [vmem:[#allocation2] sm:$0xff] %vm64, %v62
  %66 = vst.msk [vmem:[#allocation2 + $0x8] sm:$0xff] %vm64, %v63
  // Predicated region
  $region14: #{moe_model_forward.17} parent=0 // pred_check
    %p67 = pneg %p12
  $region15: #{moe_model_forward.17} parent=0 // pred_check_branch
    %69 = sbr.rel (%p67) target = $region17
  $region16: #{moe_model_forward.17} parent=0 // pred_region
    %v70 = vld [vmem:[#allocation2] sm:$0xff]
    %v71 = vld [vmem:[#allocation2 + $0x8] sm:$0xff]
    %v72 = vpack.c.bf16 %v70, %v70
    %v73 = vpack.c.bf16 %v71, %v71
    %vm74 = vcmask 781312
    %75 = vst.msk [vmem:[%s2] sm:$0xf] %vm74, %v72
    %76 = vst.msk [vmem:[%s2 + $0x4] sm:$0xf] %vm74, %v73
  $region17: #{moe_model_forward.17} parent=0 // pred_fallthru
    _
  // Predicated region
  $region18: #{moe_model_forward.17} parent=0 // pred_check
    _
  $region19: #{moe_model_forward.17} parent=0 // pred_check_branch
    %78 = sbr.rel (0) target = $region21
  $region20: #{moe_model_forward.17} parent=0 // pred_region
    _
  $region21: #{moe_model_forward.17} parent=0 // pred_fallthru
    _
  // Predicated region
  $region22: #{moe_model_forward.17} parent=0 // pred_check
    _
  $region23: #{moe_model_forward.17} parent=0 // pred_check_branch
    %80 = sbr.rel (0) target = $region25
  $region24: #{moe_model_forward.17} parent=0 // pred_region
    _
  $region25: #{moe_model_forward.17} parent=0 // pred_fallthru
    _

// kernel: moe_model_forward.16
$region0: #{moe_model_forward.16}
  #allocation0 [shape = 'u32[]', space=smem, size = 0x4, offset = 0x4, fixed_abs, tag = 'smem constant byte address 0x4 - core index']
  #allocation1 [shape = 'u32[72,128]{1,0:T(1,128)}', space=vmem, size = 0x9000, scoped, tag = 'internal scratch']
  %s0 = inlined_call_operand.vmem [shape: f32[16,32], index: 0, kind: input, shape index: {}]
  %s1 = inlined_call_operand.vmem [shape: f32[1,32], index: 1, kind: input, shape index: {}]
  %s2 = inlined_call_operand.vmem [shape: f32[1,32], index: 2, kind: input, shape index: {}]
  %s3 = inlined_call_operand.vmem [shape: bf16[16,32], index: 3, kind: output, shape index: {}]
  %s4 = sld [smem:[#allocation0]]
  $region22: #{moe_model_forward.16} parent=0
    _
  %s6 = ssub.s32 1, %s4
  %s7 = scalar_select 0, %s6, %s4
  // Predicated region
  $region2: #{moe_model_forward.16} parent=0 // pred_check
    _
  $region3: #{moe_model_forward.16} parent=0 // pred_check_branch
    %9 = sbr.rel (0) target = $region5
  $region4: #{moe_model_forward.16} parent=0 // pred_region
    _
  $region5: #{moe_model_forward.16} parent=0 // pred_fallthru
    _
  // Predicated region
  $region6: #{moe_model_forward.16} parent=0 // pred_check
    _
  $region7: #{moe_model_forward.16} parent=0 // pred_check_branch
    %11 = sbr.rel (0) target = $region9
  $region8: #{moe_model_forward.16} parent=0 // pred_region
    _
  $region9: #{moe_model_forward.16} parent=0 // pred_fallthru
    _
  // Predicated region
  $region10: #{moe_model_forward.16} parent=0 // pred_check
    _
  $region11: #{moe_model_forward.16} parent=0 // pred_check_branch
    %13 = sbr.rel (0) target = $region13
  $region12: #{moe_model_forward.16} parent=0 // pred_region
    _
  $region13: #{moe_model_forward.16} parent=0 // pred_fallthru
    _
  %v14 = vld [vmem:[%s0] sm:$0xff]
  %v15 = vld [vmem:[%s0 + $0x8] sm:$0xff]
  %vm16 = vcmask 261120
  %v17 = vsel %vm16, %v14, 0.0
  %18 = vadd.xlane.f32.xlu0 %v17
  %v19 = vpop.xlane.xlu0 %18
  %v20 = vsel %vm16, %v15, 0.0
  %21 = vadd.xlane.f32.xlu0 %v20
  %v22 = vpop.xlane.xlu0 %21
  %v23 = vrcp.pop 32.0
  %v24 = vmul.f32 32.0, %v23
  %v25 = vsub.f32 1.0, %v24
  %v26 = vmul.f32 %v23, %v25
  %v27 = vadd.f32 %v23, %v26
  %vm28 = vweird.f32 %v23
  %v29 = vsel %vm28, %v23, %v27
  %v30 = vmul.f32 %v19, %v29
  %v31 = vmul.f32 %v22, %v29
  %v32 = vsub.f32 %v14, %v30
  %v33 = vsub.f32 %v15, %v31
  %v34 = vmul.f32 %v32, %v32
  %v35 = vmul.f32 %v33, %v33
  %v36 = vsel %vm16, %v34, 0.0
  %37 = vadd.xlane.f32.xlu0 %v36
  %v38 = vpop.xlane.xlu0 %37
  %v39 = vsel %vm16, %v35, 0.0
  %40 = vadd.xlane.f32.xlu0 %v39
  %v41 = vpop.xlane.xlu0 %40
  %v42 = vmul.f32 %v38, %v29
  %v43 = vmul.f32 %v41, %v29
  %v44 = vadd.f32 %v42, 1e-05
  %v45 = vadd.f32 %v43, 1e-05
  %v46 = vrsqrt.pop %v44
  %v47 = vmul.f32 %v46, %v44
  %v48 = vmul.f32 %v47, %v46
  %v49 = vmul.f32 0.5, %v48
  %v50 = vsub.f32 1.5, %v49
  %v51 = vmul.f32 %v46, %v50
  %vm52 = vweird.f32 %v44
  %vm53 = vweird.f32 %v46
  %vm54 = vmor %vm52, %vm53
  %v55 = vsel %vm54, %v46, %v51
  %v56 = vrsqrt.pop %v45
  %v57 = vmul.f32 %v56, %v45
  %v58 = vmul.f32 %v57, %v56
  %v59 = vmul.f32 0.5, %v58
  %v60 = vsub.f32 1.5, %v59
  %v61 = vmul.f32 %v56, %v60
  %vm62 = vweird.f32 %v45
  %vm63 = vweird.f32 %v56
  %vm64 = vmor %vm62, %vm63
  %v65 = vsel %vm64, %v56, %v61
  %v66 = vmul.f32 %v32, %v55
  %v67 = vmul.f32 %v33, %v65
  %v68 = vld [vmem:[%s1] sm:$0x1]
  %v70 = vperm.slane %v68, 0
  %v72 = vmul.f32 %v66, %v70
  %v73 = vmul.f32 %v67, %v70
  %v74 = vld [vmem:[%s2] sm:$0x1]
  %v76 = vperm.slane %v74, 0
  %v78 = vadd.f32 %v72, %v76
  %v79 = vadd.f32 %v73, %v76
  %v80 = vpack.c.bf16 %v78, %v78
  %v81 = vpack.c.bf16 %v79, %v79
  %vm82 = vcmask 257024
  %83 = vst.msk [vmem:[%s3] sm:$0xf] %vm82, %v80
  %84 = vst.msk [vmem:[%s3 + $0x4] sm:$0xf] %vm82, %v81
  // Predicated region
  $region14: #{moe_model_forward.16} parent=0 // pred_check
    _
  $region15: #{moe_model_forward.16} parent=0 // pred_check_branch
    %86 = sbr.rel (0) target = $region17
  $region16: #{moe_model_forward.16} parent=0 // pred_region
    _
  $region17: #{moe_model_forward.16} parent=0 // pred_fallthru
    _
  // Predicated region
  $region18: #{moe_model_forward.16} parent=0 // pred_check
    _
  $region19: #{moe_model_forward.16} parent=0 // pred_check_branch
    %88 = sbr.rel (0) target = $region21
  $region20: #{moe_model_forward.16} parent=0 // pred_region
    _
  $region21: #{moe_model_forward.16} parent=0 // pred_fallthru
    _

// kernel: moe_model_forward.19
$region0: #{moe_model_forward.19}
  #allocation0 [shape = 'u32[]', space=smem, size = 0x4, offset = 0x4, fixed_abs, tag = 'smem constant byte address 0x4 - core index']
  #allocation1 [shape = 'u32[72,128]{1,0:T(1,128)}', space=vmem, size = 0x9000, scoped, tag = 'internal scratch']
  #allocation2 [shape = 'f32[16,32]{1,0:T(8,128)}', space=vmem, size = 0x2000, scoped, tag = 'scratch operand']
  %s0 = inlined_call_operand.vmem [shape: bf16[16,32], index: 0, kind: input, shape index: {}]
  %s1 = inlined_call_operand.vmem [shape: bf16[32,32], index: 1, kind: input, shape index: {}]
  %s2 = inlined_call_operand.vmem [shape: f32[16,32], index: 2, kind: input, shape index: {}]
  %s3 = inlined_call_operand.vmem [shape: f32[16,32], index: 3, kind: output, shape index: {}]
  %s4 = sld [smem:[#allocation0]]
  $region30: #{moe_model_forward.19} parent=0
    _
  %s6 = ssub.s32 1, %s4
  %s7 = scalar_select 0, %s6, %s4
  // Predicated region
  $region2: #{moe_model_forward.19} parent=0 // pred_check
    _
  $region3: #{moe_model_forward.19} parent=0 // pred_check_branch
    %9 = sbr.rel (0) target = $region5
  $region4: #{moe_model_forward.19} parent=0 // pred_region
    _
  $region5: #{moe_model_forward.19} parent=0 // pred_fallthru
    _
  // Predicated region
  $region6: #{moe_model_forward.19} parent=0 // pred_check
    _
  $region7: #{moe_model_forward.19} parent=0 // pred_check_branch
    %11 = sbr.rel (0) target = $region9
  $region8: #{moe_model_forward.19} parent=0 // pred_region
    _
  $region9: #{moe_model_forward.19} parent=0 // pred_fallthru
    _
  // Predicated region
  $region10: #{moe_model_forward.19} parent=0 // pred_check
    _
  $region11: #{moe_model_forward.19} parent=0 // pred_check_branch
    %13 = sbr.rel (0) target = $region13
  $region12: #{moe_model_forward.19} parent=0 // pred_region
    _
  $region13: #{moe_model_forward.19} parent=0 // pred_fallthru
    _
  %p15 = scmp.eq.s32.totalorder 0, 0
  // Predicated region
  $region14: #{moe_model_forward.19} parent=0 // pred_check
    %p16 = pneg %p15
  $region15: #{moe_model_forward.19} parent=0 // pred_check_branch
    %18 = sbr.rel (%p16) target = $region17
  $region16: #{moe_model_forward.19} parent=0 // pred_region
    %vm19 = vcmask 261120
    %20 = vst.msk [vmem:[#allocation2] sm:$0xff] %vm19, 0.0
    %21 = vst.msk [vmem:[#allocation2 + $0x8] sm:$0xff] %vm19, 0.0
  $region17: #{moe_model_forward.19} parent=0 // pred_fallthru
    _
  %v22 = vld [vmem:[#allocation2] sm:$0xff]
  %v23 = vld [vmem:[#allocation2 + $0x8] sm:$0xff]
  %v24 = vld [vmem:[%s0] sm:$0xf]
  %v25 = vld [vmem:[%s0 + $0x4] sm:$0xf]
  %v26 = vld [vmem:[%s1] sm:$0xf]
  %v27 = vld [vmem:[%s1 + $0x4] sm:$0xf]
  %v28 = vld [vmem:[%s1 + $0x8] sm:$0xf]
  %v29 = vld [vmem:[%s1 + $0xc] sm:$0xf]
  %v32 = vunpack.c.l.b16 %v24
  %v33 = vunpack.c.l.b16 %v25
  %v34 = vpack.c.b16 %v33, %v32
  %v39 = vunpack.c.l.b16 %v26
  %v40 = vunpack.c.l.b16 %v27
  %v41 = vunpack.c.l.b16 %v28
  %v42 = vunpack.c.l.b16 %v29
  %v43 = vpack.c.b16 %v40, %v39
  %v44 = vpack.c.b16 %v42, %v41
  %vm47 = vcmask 261120
  %v49 = vsel %vm47, %v34, 0
  %51 = vmatpush.bf16.msra.mxu0 0
  %52 = vmatpush.bf16.msra.mxu0 0
  %53 = vmatpush.bf16.msra.mxu0 0
  %54 = vmatpush.bf16.msra.mxu0 0
  %55 = vmatpush.bf16.msra.mxu0 0
  %56 = vmatpush.bf16.msra.mxu0 0
  %57 = vmatpush.bf16.msra.mxu0 %v44
  %58 = vmatpush.bf16.msra.mxu0 %v43
  %59 = vmatmul.bf16.gmra.mxu0 %v49
  %v60 = vpop.f32.mrf.mxu0
  %v61 = vadd.f32 0.0, %v60
  %v62 = vpop.f32.mrf.mxu0
  %v63 = vadd.f32 0.0, %v62
  %64 = vdwg.mxu0
  %v65 = vadd.f32 %v22, %v61
  %v66 = vadd.f32 %v23, %v63
  %67 = vst.msk [vmem:[#allocation2] sm:$0xff] %vm47, %v65
  %68 = vst.msk [vmem:[#allocation2 + $0x8] sm:$0xff] %vm47, %v66
  // Predicated region
  $region18: #{moe_model_forward.19} parent=0 // pred_check
    %p69 = pneg %p15
  $region19: #{moe_model_forward.19} parent=0 // pred_check_branch
    %71 = sbr.rel (%p69) target = $region21
  $region20: #{moe_model_forward.19} parent=0 // pred_region
    %v72 = vld [vmem:[#allocation2] sm:$0xff]
    %v73 = vld [vmem:[#allocation2 + $0x8] sm:$0xff]
    %v74 = vld [vmem:[%s2] sm:$0xff]
    %v75 = vld [vmem:[%s2 + $0x8] sm:$0xff]
    %v76 = vadd.f32 %v72, %v74
    %v77 = vadd.f32 %v73, %v75
    %78 = vst.msk [vmem:[%s3] sm:$0xff] %vm47, %v76
    %79 = vst.msk [vmem:[%s3 + $0x8] sm:$0xff] %vm47, %v77
  $region21: #{moe_model_forward.19} parent=0 // pred_fallthru
    _
  // Predicated region
  $region22: #{moe_model_forward.19} parent=0 // pred_check
    _
  $region23: #{moe_model_forward.19} parent=0 // pred_check_branch
    %81 = sbr.rel (0) target = $region25
  $region24: #{moe_model_forward.19} parent=0 // pred_region
    _
  $region25: #{moe_model_forward.19} parent=0 // pred_fallthru
    _
  // Predicated region
  $region26: #{moe_model_forward.19} parent=0 // pred_check
    _
  $region27: #{moe_model_forward.19} parent=0 // pred_check_branch
    %83 = sbr.rel (0) target = $region29
  $region28: #{moe_model_forward.19} parent=0 // pred_region
    _
  $region29: #{moe_model_forward.19} parent=0 // pred_fallthru
    _

// kernel: moe_model_forward.21
$region0: #{moe_model_forward.21}
  #allocation0 [shape = 'u32[]', space=smem, size = 0x4, offset = 0x4, fixed_abs, tag = 'smem constant byte address 0x4 - core index']
  #allocation1 [shape = 'u32[72,128]{1,0:T(1,128)}', space=vmem, size = 0x9000, scoped, tag = 'internal scratch']
  #allocation2 [shape = 'f32[16,4]{1,0:T(8,128)}', space=vmem, size = 0x2000, scoped, tag = 'scratch operand']
  %s0 = inlined_call_operand.vmem [shape: bf16[16,32], index: 0, kind: input, shape index: {}]
  %s1 = inlined_call_operand.vmem [shape: bf16[32,4], index: 1, kind: input, shape index: {}]
  %s2 = inlined_call_operand.vmem [shape: f32[1,4], index: 2, kind: input, shape index: {}]
  %s3 = inlined_call_operand.vmem [shape: f32[16,4], index: 3, kind: output, shape index: {}]
  %s4 = sld [smem:[#allocation0]]
  $region30: #{moe_model_forward.21} parent=0
    _
  %s6 = ssub.s32 1, %s4
  %s7 = scalar_select 0, %s6, %s4
  // Predicated region
  $region2: #{moe_model_forward.21} parent=0 // pred_check
    _
  $region3: #{moe_model_forward.21} parent=0 // pred_check_branch
    %9 = sbr.rel (0) target = $region5
  $region4: #{moe_model_forward.21} parent=0 // pred_region
    _
  $region5: #{moe_model_forward.21} parent=0 // pred_fallthru
    _
  // Predicated region
  $region6: #{moe_model_forward.21} parent=0 // pred_check
    _
  $region7: #{moe_model_forward.21} parent=0 // pred_check_branch
    %11 = sbr.rel (0) target = $region9
  $region8: #{moe_model_forward.21} parent=0 // pred_region
    _
  $region9: #{moe_model_forward.21} parent=0 // pred_fallthru
    _
  // Predicated region
  $region10: #{moe_model_forward.21} parent=0 // pred_check
    _
  $region11: #{moe_model_forward.21} parent=0 // pred_check_branch
    %13 = sbr.rel (0) target = $region13
  $region12: #{moe_model_forward.21} parent=0 // pred_region
    _
  $region13: #{moe_model_forward.21} parent=0 // pred_fallthru
    _
  %p15 = scmp.eq.s32.totalorder 0, 0
  // Predicated region
  $region14: #{moe_model_forward.21} parent=0 // pred_check
    %p16 = pneg %p15
  $region15: #{moe_model_forward.21} parent=0 // pred_check_branch
    %18 = sbr.rel (%p16) target = $region17
  $region16: #{moe_model_forward.21} parent=0 // pred_region
    %vm19 = vcmask 31744
    %20 = vst.msk [vmem:[#allocation2] sm:$0xff] %vm19, 0.0
    %21 = vst.msk [vmem:[#allocation2 + $0x8] sm:$0xff] %vm19, 0.0
  $region17: #{moe_model_forward.21} parent=0 // pred_fallthru
    _
  %v22 = vld [vmem:[#allocation2] sm:$0xff]
  %v23 = vld [vmem:[#allocation2 + $0x8] sm:$0xff]
  %v24 = vld [vmem:[%s0] sm:$0xf]
  %v25 = vld [vmem:[%s0 + $0x4] sm:$0xf]
  %v26 = vld [vmem:[%s1] sm:$0xf]
  %v27 = vld [vmem:[%s1 + $0x4] sm:$0xf]
  %v28 = vld [vmem:[%s1 + $0x8] sm:$0xf]
  %v29 = vld [vmem:[%s1 + $0xc] sm:$0xf]
  %v32 = vunpack.c.l.b16 %v24
  %v33 = vunpack.c.l.b16 %v25
  %v34 = vpack.c.b16 %v33, %v32
  %v39 = vunpack.c.l.b16 %v26
  %v40 = vunpack.c.l.b16 %v27
  %v41 = vunpack.c.l.b16 %v28
  %v42 = vunpack.c.l.b16 %v29
  %v43 = vpack.c.b16 %v40, %v39
  %v44 = vpack.c.b16 %v42, %v41
  %vm47 = vcmask 261120
  %v49 = vsel %vm47, %v34, 0
  %51 = vmatpush.bf16.msra.mxu0 0
  %52 = vmatpush.bf16.msra.mxu0 0
  %53 = vmatpush.bf16.msra.mxu0 0
  %54 = vmatpush.bf16.msra.mxu0 0
  %55 = vmatpush.bf16.msra.mxu0 0
  %56 = vmatpush.bf16.msra.mxu0 0
  %57 = vmatpush.bf16.msra.mxu0 %v44
  %58 = vmatpush.bf16.msra.mxu0 %v43
  %59 = vmatmul.bf16.gmra.mxu0 %v49
  %v60 = vpop.f32.mrf.mxu0
  %v61 = vadd.f32 0.0, %v60
  %v62 = vpop.f32.mrf.mxu0
  %v63 = vadd.f32 0.0, %v62
  %64 = vdwg.mxu0
  %v65 = vadd.f32 %v22, %v61
  %v66 = vadd.f32 %v23, %v63
  %vm67 = vcmask 31744
  %68 = vst.msk [vmem:[#allocation2] sm:$0xff] %vm67, %v65
  %69 = vst.msk [vmem:[#allocation2 + $0x8] sm:$0xff] %vm67, %v66
  // Predicated region
  $region18: #{moe_model_forward.21} parent=0 // pred_check
    %p70 = pneg %p15
  $region19: #{moe_model_forward.21} parent=0 // pred_check_branch
    %72 = sbr.rel (%p70) target = $region21
  $region20: #{moe_model_forward.21} parent=0 // pred_region
    %v73 = vld [vmem:[#allocation2] sm:$0xff]
    %v74 = vld [vmem:[#allocation2 + $0x8] sm:$0xff]
    %v75 = vld [vmem:[%s2] sm:$0x1]
    %v77 = vperm.slane %v75, 0
    %v79 = vadd.f32 %v73, %v77
    %v80 = vadd.f32 %v74, %v77
    %81 = vst.msk [vmem:[%s3] sm:$0xff] %vm67, %v79
    %82 = vst.msk [vmem:[%s3 + $0x8] sm:$0xff] %vm67, %v80
  $region21: #{moe_model_forward.21} parent=0 // pred_fallthru
    _
  // Predicated region
  $region22: #{moe_model_forward.21} parent=0 // pred_check
    _
  $region23: #{moe_model_forward.21} parent=0 // pred_check_branch
    %84 = sbr.rel (0) target = $region25
  $region24: #{moe_model_forward.21} parent=0 // pred_region
    _
  $region25: #{moe_model_forward.21} parent=0 // pred_fallthru
    _
  // Predicated region
  $region26: #{moe_model_forward.21} parent=0 // pred_check
    _
  $region27: #{moe_model_forward.21} parent=0 // pred_check_branch
    %86 = sbr.rel (0) target = $region29
  $region28: #{moe_model_forward.21} parent=0 // pred_region
    _
  $region29: #{moe_model_forward.21} parent=0 // pred_fallthru
    _

// kernel: moe_model_forward.22
$region0: #{moe_model_forward.22}
  #allocation0 [shape = 'u32[]', space=smem, size = 0x4, offset = 0x4, fixed_abs, tag = 'smem constant byte address 0x4 - core index']
  #allocation1 [shape = 'u32[72,128]{1,0:T(1,128)}', space=vmem, size = 0x9000, scoped, tag = 'internal scratch']
  #allocation2 [shape = 'f32[16,32]{1,0:T(8,128)}', space=vmem, size = 0x2000, scoped, tag = 'scratch operand']
  %s0 = inlined_call_operand.vmem [shape: bf16[16,32], index: 0, kind: input, shape index: {}]
  %s1 = inlined_call_operand.vmem [shape: bf16[4,32,16], index: 1, kind: input, shape index: {}]
  %s2 = inlined_call_operand.vmem [shape: bf16[4,32,16], index: 2, kind: input, shape index: {}]
  %s3 = inlined_call_operand.vmem [shape: bf16[4,16,32], index: 3, kind: input, shape index: {}]
  %s4 = inlined_call_operand.vmem [shape: f32[16,4], index: 4, kind: input, shape index: {}]
  %s5 = inlined_call_operand.vmem [shape: f32[16,32], index: 5, kind: input, shape index: {}]
  %s6 = inlined_call_operand.vmem [shape: f32[16,32], index: 6, kind: output, shape index: {}]
  %s7 = sld [smem:[#allocation0]]
  $region65: #{moe_model_forward.22} parent=0
    _
  %s9 = ssub.s32 1, %s7
  %s10 = scalar_select 0, %s9, %s7
  loop: start=0, step=1, limit=6
  $region2: #{moe_model_forward.22} parent=0 // loop_pre_header
    _
  $region3: #{moe_model_forward.22} parent=0 // loop_header
    %s12 = sphi 0, %s16
    %p13 = scmp.ge.s32.totalorder %s12, 6
    %s19 = sphi 0, %s38
    %s20 = sphi 0, %s34
    %s21 = sphi 0, %s30
    %s22 = sphi 0, %s19
    %s23 = sphi 0, %s20
    %s24 = sphi 0, %s21
    %s25 = sphi 0, %s22
    %s26 = sphi 0, %s23
    %s27 = sphi 0, %s24
    %s41 = sphi 0, %s43
    %s44 = sphi 0, %s41
    %s45 = sphi 0, %s44
    %s61 = sphi 0, %s45
    %s69 = sphi 0, %s71
    %s72 = sphi 0, %s69
    %s73 = sphi 0, %s72
    %s89 = sphi 0, %s73
    %s97 = sphi 0, %s99
    %s100 = sphi 0, %s97
    %s101 = sphi 0, %s100
    %s117 = sphi 0, %s101
    %s125 = sphi 0, %s127
    %s128 = sphi 0, %s125
    %s129 = sphi 0, %s128
    %s145 = sphi 0, %s129
    %s151 = sphi 0, %s153
    %s154 = sphi 0, %s151
    %s155 = sphi 0, %s154
    %s171 = sphi 0, %s155
    %s177 = sphi 0, %s179
    %s180 = sphi 0, %s177
    %s181 = sphi 0, %s180
    %s197 = sphi 0, %s181
    %s203 = sphi 0, %s205
    %s206 = sphi 0, %s203
    %s207 = sphi 0, %s206
    %s223 = sphi 0, %s207
  $region4: #{moe_model_forward.22} parent=0 // loop_header_branch
    %15 = sbr.rel (%p13) target = $region8
  $region5: #{moe_model_forward.22} parent=0 // loop_body
    %s17 = ssub.s32 %s12, 1
    %s18 = ssub.s32 %s12, 2
    %s28 = sadd.s32 1, %s21
    %p29 = scmp.ge.s32.totalorder %s28, 1
    %s30 = scalar_select %p29, 0, %s28
    %s31 = sadd.s32 1, %s20
    %s32 = scalar_select %p29, %s31, %s20
    %p33 = scmp.ge.s32.totalorder %s32, 4
    %s34 = scalar_select %p33, 0, %s32
    %s35 = sadd.s32 1, %s19
    %s36 = scalar_select %p33, %s35, %s19
    %p37 = scmp.ge.s32.totalorder %s36, 1
    %s38 = scalar_select %p37, 0, %s36
    %s39 = ssub.s32 %s19, %s38
    %p40 = scmp.eq.s32.totalorder %s39, 0
    %s42 = sadd.s32 %s41, 1
    %s43 = scalar_select %p40, %s41, %s42
    %p46 = pneg %p40
    %p47 = scmp.eq.s32.totalorder %s12, 3
    %p48 = por %p46, %p47
    %p49 = scmp.ne.s32.totalorder %s41, %s44
    %p50 = scmp.eq.s32.totalorder %s12, 0
    %p51 = por %p49, %p50
    %p52 = scmp.ne.s32.totalorder %s41, %s44
    %p53 = scmp.eq.s32.totalorder %s17, 3
    %p54 = por %p52, %p53
    %p55 = scmp.ne.s32.totalorder %s44, %s45
    %p56 = scmp.eq.s32.totalorder %s17, 0
    %p57 = por %p55, %p56
    %p58 = scmp.ne.s32.totalorder %s44, %s45
    %p59 = scmp.eq.s32.totalorder %s18, 3
    %p60 = por %p58, %p59
    %p62 = scmp.ne.s32.totalorder %s45, %s61
    %p63 = scmp.eq.s32.totalorder %s18, 0
    %p64 = por %p62, %p63
    %s65 = ssub.s32 %s20, %s34
    %s66 = ssub.s32 %s21, %s30
    %s67 = sor.u32 %s65, %s66
    %p68 = scmp.eq.s32.totalorder %s67, 0
    %s70 = sadd.s32 %s69, 1
    %s71 = scalar_select %p68, %s69, %s70
    %p74 = pneg %p68
    %p75 = scmp.eq.s32.totalorder %s12, 3
    %p76 = por %p74, %p75
    %p77 = scmp.ne.s32.totalorder %s69, %s72
    %p78 = scmp.eq.s32.totalorder %s12, 0
    %p79 = por %p77, %p78
    %p80 = scmp.ne.s32.totalorder %s69, %s72
    %p81 = scmp.eq.s32.totalorder %s17, 3
    %p82 = por %p80, %p81
    %p83 = scmp.ne.s32.totalorder %s72, %s73
    %p84 = scmp.eq.s32.totalorder %s17, 0
    %p85 = por %p83, %p84
    %p86 = scmp.ne.s32.totalorder %s72, %s73
    %p87 = scmp.eq.s32.totalorder %s18, 3
    %p88 = por %p86, %p87
    %p90 = scmp.ne.s32.totalorder %s73, %s89
    %p91 = scmp.eq.s32.totalorder %s18, 0
    %p92 = por %p90, %p91
    %s93 = ssub.s32 %s20, %s34
    %s94 = ssub.s32 %s21, %s30
    %s95 = sor.u32 %s93, %s94
    %p96 = scmp.eq.s32.totalorder %s95, 0
    %s98 = sadd.s32 %s97, 1
    %s99 = scalar_select %p96, %s97, %s98
    %p102 = pneg %p96
    %p103 = scmp.eq.s32.totalorder %s12, 3
    %p104 = por %p102, %p103
    %p105 = scmp.ne.s32.totalorder %s97, %s100
    %p106 = scmp.eq.s32.totalorder %s12, 0
    %p107 = por %p105, %p106
    %p108 = scmp.ne.s32.totalorder %s97, %s100
    %p109 = scmp.eq.s32.totalorder %s17, 3
    %p110 = por %p108, %p109
    %p111 = scmp.ne.s32.totalorder %s100, %s101
    %p112 = scmp.eq.s32.totalorder %s17, 0
    %p113 = por %p111, %p112
    %p114 = scmp.ne.s32.totalorder %s100, %s101
    %p115 = scmp.eq.s32.totalorder %s18, 3
    %p116 = por %p114, %p115
    %p118 = scmp.ne.s32.totalorder %s101, %s117
    %p119 = scmp.eq.s32.totalorder %s18, 0
    %p120 = por %p118, %p119
    %s121 = ssub.s32 %s20, %s34
    %s122 = ssub.s32 %s21, %s30
    %s123 = sor.u32 %s121, %s122
    %p124 = scmp.eq.s32.totalorder %s123, 0
    %s126 = sadd.s32 %s125, 1
    %s127 = scalar_select %p124, %s125, %s126
    %p130 = pneg %p124
    %p131 = scmp.eq.s32.totalorder %s12, 3
    %p132 = por %p130, %p131
    %p133 = scmp.ne.s32.totalorder %s125, %s128
    %p134 = scmp.eq.s32.totalorder %s12, 0
    %p135 = por %p133, %p134
    %p136 = scmp.ne.s32.totalorder %s125, %s128
    %p137 = scmp.eq.s32.totalorder %s17, 3
    %p138 = por %p136, %p137
    %p139 = scmp.ne.s32.totalorder %s128, %s129
    %p140 = scmp.eq.s32.totalorder %s17, 0
    %p141 = por %p139, %p140
    %p142 = scmp.ne.s32.totalorder %s128, %s129
    %p143 = scmp.eq.s32.totalorder %s18, 3
    %p144 = por %p142, %p143
    %p146 = scmp.ne.s32.totalorder %s129, %s145
    %p147 = scmp.eq.s32.totalorder %s18, 0
    %p148 = por %p146, %p147
    %s149 = ssub.s32 %s19, %s38
    %p150 = scmp.eq.s32.totalorder %s149, 0
    %s152 = sadd.s32 %s151, 1
    %s153 = scalar_select %p150, %s151, %s152
    %p156 = pneg %p150
    %p157 = scmp.eq.s32.totalorder %s12, 3
    %p158 = por %p156, %p157
    %p159 = scmp.ne.s32.totalorder %s151, %s154
    %p160 = scmp.eq.s32.totalorder %s12, 0
    %p161 = por %p159, %p160
    %p162 = scmp.ne.s32.totalorder %s151, %s154
    %p163 = scmp.eq.s32.totalorder %s17, 3
    %p164 = por %p162, %p163
    %p165 = scmp.ne.s32.totalorder %s154, %s155
    %p166 = scmp.eq.s32.totalorder %s17, 0
    %p167 = por %p165, %p166
    %p168 = scmp.ne.s32.totalorder %s154, %s155
    %p169 = scmp.eq.s32.totalorder %s18, 3
    %p170 = por %p168, %p169
    %p172 = scmp.ne.s32.totalorder %s155, %s171
    %p173 = scmp.eq.s32.totalorder %s18, 0
    %p174 = por %p172, %p173
    %s175 = ssub.s32 %s19, %s38
    %p176 = scmp.eq.s32.totalorder %s175, 0
    %s178 = sadd.s32 %s177, 1
    %s179 = scalar_select %p176, %s177, %s178
    %p182 = pneg %p176
    %p183 = scmp.eq.s32.totalorder %s12, 3
    %p184 = por %p182, %p183
    %p185 = scmp.ne.s32.totalorder %s177, %s180
    %p186 = scmp.eq.s32.totalorder %s12, 0
    %p187 = por %p185, %p186
    %p188 = scmp.ne.s32.totalorder %s177, %s180
    %p189 = scmp.eq.s32.totalorder %s17, 3
    %p190 = por %p188, %p189
    %p191 = scmp.ne.s32.totalorder %s180, %s181
    %p192 = scmp.eq.s32.totalorder %s17, 0
    %p193 = por %p191, %p192
    %p194 = scmp.ne.s32.totalorder %s180, %s181
    %p195 = scmp.eq.s32.totalorder %s18, 3
    %p196 = por %p194, %p195
    %p198 = scmp.ne.s32.totalorder %s181, %s197
    %p199 = scmp.eq.s32.totalorder %s18, 0
    %p200 = por %p198, %p199
    %s201 = ssub.s32 %s19, %s38
    %p202 = scmp.eq.s32.totalorder %s201, 0
    %s204 = sadd.s32 %s203, 1
    %s205 = scalar_select %p202, %s203, %s204
    %p208 = pneg %p202
    %p209 = scmp.eq.s32.totalorder %s12, 3
    %p210 = por %p208, %p209
    %p211 = scmp.ne.s32.totalorder %s203, %s206
    %p212 = scmp.eq.s32.totalorder %s12, 0
    %p213 = por %p211, %p212
    %p214 = scmp.ne.s32.totalorder %s203, %s206
    %p215 = scmp.eq.s32.totalorder %s17, 3
    %p216 = por %p214, %p215
    %p217 = scmp.ne.s32.totalorder %s206, %s207
    %p218 = scmp.eq.s32.totalorder %s17, 0
    %p219 = por %p217, %p218
    %p220 = scmp.ne.s32.totalorder %s206, %s207
    %p221 = scmp.eq.s32.totalorder %s18, 3
    %p222 = por %p220, %p221
    %p224 = scmp.ne.s32.totalorder %s207, %s223
    %p225 = scmp.eq.s32.totalorder %s18, 0
    %p226 = por %p224, %p225
    %p227 = scmp.le.s32.totalorder 1, %s12
    %p228 = scmp.lt.s32.totalorder %s12, 5
    %p229 = pnand %p227, %p228
    %p230 = pneg %p229
    // Predicated region
    $region9: #{moe_model_forward.22} parent=5 // pred_check
      _
    $region10: #{moe_model_forward.22} parent=5 // pred_check_branch
      %232 = sbr.rel (%p229) target = $region12
    $region11: #{moe_model_forward.22} parent=5 // pred_region
      %s233 = ssub.s32 %s12, 1
      // Predicated region
      $region13: #{moe_model_forward.22} parent=11 // pred_check
        %p234 = pneg %p57
      $region14: #{moe_model_forward.22} parent=11 // pred_check_branch
        %236 = sbr.rel (%p234) target = $region16
      $region15: #{moe_model_forward.22} parent=11 // pred_region
        %s237 = smul.u32 2, %s22
        %p238 = scmp.lt.s32.totalorder %s237, 1
        %s239 = scalar_select %p238, %s237, 1
        %s240 = smul.addr %s239, 4
        %s241 = scalar_lea.vmem %s0, %s240
        %s242 = smul.u32 2, %s22
      $region16: #{moe_model_forward.22} parent=11 // pred_fallthru
        _
      // Predicated region
      $region17: #{moe_model_forward.22} parent=11 // pred_check
        %p243 = pneg %p167
      $region18: #{moe_model_forward.22} parent=11 // pred_check_branch
        %245 = sbr.rel (%p243) target = $region20
      $region19: #{moe_model_forward.22} parent=11 // pred_region
        %s246 = smul.u32 2, %s22
        %p247 = scmp.lt.s32.totalorder %s246, 1
        %s248 = scalar_select %p247, %s246, 1
        %s249 = smul.addr %s248, 8
        %s250 = scalar_lea.vmem %s4, %s249
        %s251 = smul.u32 2, %s22
      $region20: #{moe_model_forward.22} parent=11 // pred_fallthru
        _
      // Predicated region
      $region21: #{moe_model_forward.22} parent=11 // pred_check
        %p252 = pneg %p193
      $region22: #{moe_model_forward.22} parent=11 // pred_check_branch
        %254 = sbr.rel (%p252) target = $region24
      $region23: #{moe_model_forward.22} parent=11 // pred_region
        %s255 = smul.u32 2, %s22
        %p256 = scmp.lt.s32.totalorder %s255, 1
        %s257 = scalar_select %p256, %s255, 1
        %s258 = smul.addr %s257, 8
        %s259 = scalar_lea.vmem %s5, %s258
        %s260 = smul.u32 2, %s22
      $region24: #{moe_model_forward.22} parent=11 // pred_fallthru
        _
    $region12: #{moe_model_forward.22} parent=5 // pred_fallthru
      _
    %p261 = scmp.lt.s32.totalorder %s12, 4
    // Predicated region
    $region25: #{moe_model_forward.22} parent=5 // pred_check
      %p262 = pneg %p261
    $region26: #{moe_model_forward.22} parent=5 // pred_check_branch
      %264 = sbr.rel (%p262) target = $region28
    $region27: #{moe_model_forward.22} parent=5 // pred_region
      // Predicated region
      $region29: #{moe_model_forward.22} parent=27 // pred_check
        %p265 = pneg %p79
      $region30: #{moe_model_forward.22} parent=27 // pred_check_branch
        %267 = sbr.rel (%p265) target = $region32
      $region31: #{moe_model_forward.22} parent=27 // pred_region
        %p268 = scmp.lt.s32.totalorder %s20, 3
        %s269 = scalar_select %p268, %s20, 3
        %p270 = scmp.lt.s32.totalorder %s21, 0
        %s271 = scalar_select %p270, %s21, 0
        %s272 = smul.addr %s269, 4
        %s273 = sadd.s32 %s271, %s272
        %s274 = smul.addr %s273, 4
        %s275 = scalar_lea.vmem %s1, %s274
      $region32: #{moe_model_forward.22} parent=27 // pred_fallthru
        _
      // Predicated region
      $region33: #{moe_model_forward.22} parent=27 // pred_check
        %p276 = pneg %p107
      $region34: #{moe_model_forward.22} parent=27 // pred_check_branch
        %278 = sbr.rel (%p276) target = $region36
      $region35: #{moe_model_forward.22} parent=27 // pred_region
        %p279 = scmp.lt.s32.totalorder %s20, 3
        %s280 = scalar_select %p279, %s20, 3
        %p281 = scmp.lt.s32.totalorder %s21, 0
        %s282 = scalar_select %p281, %s21, 0
        %s283 = smul.addr %s280, 4
        %s284 = sadd.s32 %s282, %s283
        %s285 = smul.addr %s284, 4
        %s286 = scalar_lea.vmem %s2, %s285
      $region36: #{moe_model_forward.22} parent=27 // pred_fallthru
        _
      // Predicated region
      $region37: #{moe_model_forward.22} parent=27 // pred_check
        %p287 = pneg %p135
      $region38: #{moe_model_forward.22} parent=27 // pred_check_branch
        %289 = sbr.rel (%p287) target = $region40
      $region39: #{moe_model_forward.22} parent=27 // pred_region
        %s290 = smul.u32 2, %s21
        %p291 = scmp.lt.s32.totalorder %s20, 3
        %s292 = scalar_select %p291, %s20, 3
        %p293 = scmp.lt.s32.totalorder %s290, 1
        %s294 = scalar_select %p293, %s290, 1
        %s295 = smul.addr %s292, 2
        %s296 = sadd.s32 %s294, %s295
        %s297 = smul.addr %s296, 4
        %s298 = scalar_lea.vmem %s3, %s297
        %s299 = smul.u32 2, %s21
      $region40: #{moe_model_forward.22} parent=27 // pred_fallthru
        _
    $region28: #{moe_model_forward.22} parent=5 // pred_fallthru
      _
    %p300 = scmp.le.s32.totalorder 1, %s12
    %p301 = scmp.lt.s32.totalorder %s12, 5
    %p302 = pnand %p300, %p301
    %p303 = pneg %p302
    // Predicated region
    $region41: #{moe_model_forward.22} parent=5 // pred_check
      _
    $region42: #{moe_model_forward.22} parent=5 // pred_check_branch
      %305 = sbr.rel (%p302) target = $region44
    $region43: #{moe_model_forward.22} parent=5 // pred_region
      %s306 = ssub.s32 %s12, 1
      %s307 = smul.u32 2, %s22
      %p308 = scmp.lt.s32.totalorder %s307, 1
      %s309 = scalar_select %p308, %s307, 1
      %s310 = smul.addr %s309, 4
      %s311 = scalar_lea.vmem %s0, %s310
      %p312 = pneg %p57
      %p313 = pneg %p54
      %p314 = scmp.lt.s32.totalorder %s23, 3
      %s315 = scalar_select %p314, %s23, 3
      %p316 = scmp.lt.s32.totalorder %s24, 0
      %s317 = scalar_select %p316, %s24, 0
      %s318 = smul.addr %s315, 4
      %s319 = sadd.s32 %s317, %s318
      %s320 = smul.addr %s319, 4
      %s321 = scalar_lea.vmem %s1, %s320
      %p322 = pneg %p85
      %p323 = pneg %p82
      %p324 = scmp.lt.s32.totalorder %s23, 3
      %s325 = scalar_select %p324, %s23, 3
      %p326 = scmp.lt.s32.totalorder %s24, 0
      %s327 = scalar_select %p326, %s24, 0
      %s328 = smul.addr %s325, 4
      %s329 = sadd.s32 %s327, %s328
      %s330 = smul.addr %s329, 4
      %s331 = scalar_lea.vmem %s2, %s330
      %p332 = pneg %p113
      %p333 = pneg %p110
      %s334 = smul.u32 2, %s24
      %p335 = scmp.lt.s32.totalorder %s23, 3
      %s336 = scalar_select %p335, %s23, 3
      %p337 = scmp.lt.s32.totalorder %s334, 1
      %s338 = scalar_select %p337, %s334, 1
      %s339 = smul.addr %s336, 2
      %s340 = sadd.s32 %s338, %s339
      %s341 = smul.addr %s340, 4
      %s342 = scalar_lea.vmem %s3, %s341
      %p343 = pneg %p141
      %p344 = pneg %p138
      %s345 = smul.u32 2, %s22
      %p346 = scmp.lt.s32.totalorder %s345, 1
      %s347 = scalar_select %p346, %s345, 1
      %s348 = smul.addr %s347, 8
      %s349 = scalar_lea.vmem %s4, %s348
      %p350 = pneg %p167
      %p351 = pneg %p164
      %s352 = smul.u32 2, %s22
      %p353 = scmp.lt.s32.totalorder %s352, 1
      %s354 = scalar_select %p353, %s352, 1
      %s355 = smul.addr %s354, 8
      %s356 = scalar_lea.vmem %s5, %s355
      %p357 = pneg %p193
      %p358 = pneg %p190
      %p359 = pneg %p219
      %p360 = pneg %p216
      %s361 = smul.u32 2, %s22
      %p362 = scmp.lt.s32.totalorder %s361, 1
      %s363 = scalar_select %p362, %s361, 1
      %s364 = smul.addr %s363, 8
      %s365 = scalar_lea.vmem %s6, %s364
      %s366 = smul.u32 2, %s22
      %p367 = scmp.lt.s32.totalorder %s366, 1
      %s368 = scalar_select %p367, %s366, 1
      %s369 = smul.addr %s368, 4
      %s370 = scalar_lea.vmem %s0, %s369
      %s371 = smul.u32 2, %s22
      %p372 = scmp.lt.s32.totalorder %s23, 3
      %s373 = scalar_select %p372, %s23, 3
      %p374 = scmp.lt.s32.totalorder %s24, 0
      %s375 = scalar_select %p374, %s24, 0
      %s376 = smul.addr %s373, 4
      %s377 = sadd.s32 %s375, %s376
      %s378 = smul.addr %s377, 4
      %s379 = scalar_lea.vmem %s1, %s378
      %p380 = scmp.lt.s32.totalorder %s23, 3
      %s381 = scalar_select %p380, %s23, 3
      %p382 = scmp.lt.s32.totalorder %s24, 0
      %s383 = scalar_select %p382, %s24, 0
      %s384 = smul.addr %s381, 4
      %s385 = sadd.s32 %s383, %s384
      %s386 = smul.addr %s385, 4
      %s387 = scalar_lea.vmem %s2, %s386
      %s388 = smul.u32 2, %s24
      %p389 = scmp.lt.s32.totalorder %s23, 3
      %s390 = scalar_select %p389, %s23, 3
      %p391 = scmp.lt.s32.totalorder %s388, 1
      %s392 = scalar_select %p391, %s388, 1
      %s393 = smul.addr %s390, 2
      %s394 = sadd.s32 %s392, %s393
      %s395 = smul.addr %s394, 4
      %s396 = scalar_lea.vmem %s3, %s395
      %s397 = smul.u32 2, %s24
      %s398 = smul.u32 2, %s22
      %p399 = scmp.lt.s32.totalorder %s398, 1
      %s400 = scalar_select %p399, %s398, 1
      %s401 = smul.addr %s400, 8
      %s402 = scalar_lea.vmem %s4, %s401
      %s403 = smul.u32 2, %s22
      %s404 = smul.u32 2, %s22
      %p405 = scmp.lt.s32.totalorder %s404, 1
      %s406 = scalar_select %p405, %s404, 1
      %s407 = smul.addr %s406, 8
      %s408 = scalar_lea.vmem %s5, %s407
      %s409 = smul.u32 2, %s22
      %s410 = smul.u32 2, %s22
      %p411 = scmp.lt.s32.totalorder %s410, 1
      %s412 = scalar_select %p411, %s410, 1
      %s413 = smul.addr %s412, 8
      %s414 = scalar_lea.vmem %s6, %s413
      %s415 = smul.u32 2, %s22
      %p417 = scmp.eq.s32.totalorder %s23, 0
      %p418 = scmp.eq.s32.totalorder %s24, 0
      %p419 = pnand %p417, %p418
      %p420 = pneg %p419
      // Predicated region
      $region45: #{moe_model_forward.22} parent=43 // pred_check
        _
      $region46: #{moe_model_forward.22} parent=43 // pred_check_branch
        %422 = sbr.rel (%p419) target = $region48
      $region47: #{moe_model_forward.22} parent=43 // pred_region
        %vm423 = vcmask 261120
        %424 = vst.msk [vmem:[#allocation2] sm:$0xff] %vm423, 0.0
        %425 = vst.msk [vmem:[#allocation2 + $0x8] sm:$0xff] %vm423, 0.0
      $region48: #{moe_model_forward.22} parent=43 // pred_fallthru
        _
      %v426 = vld [vmem:[%s370] sm:$0xf]
      %v427 = vld [vmem:[%s370 + $0x4] sm:$0xf]
      %v428 = vld [vmem:[%s379] sm:$0xf]
      %v429 = vld [vmem:[%s379 + $0x4] sm:$0xf]
      %v430 = vld [vmem:[%s379 + $0x8] sm:$0xf]
      %v431 = vld [vmem:[%s379 + $0xc] sm:$0xf]
      %v434 = vunpack.c.l.b16 %v426
      %v435 = vunpack.c.l.b16 %v427
      %v436 = vpack.c.b16 %v435, %v434
      %v441 = vunpack.c.l.b16 %v428
      %v442 = vunpack.c.l.b16 %v429
      %v443 = vunpack.c.l.b16 %v430
      %v444 = vunpack.c.l.b16 %v431
      %v445 = vpack.c.b16 %v442, %v441
      %v446 = vpack.c.b16 %v444, %v443
      %vm449 = vcmask 261120
      %v451 = vsel %vm449, %v436, 0
      %453 = vmatpush.bf16.msra.mxu0 0
      %454 = vmatpush.bf16.msra.mxu0 0
      %455 = vmatpush.bf16.msra.mxu0 0
      %456 = vmatpush.bf16.msra.mxu0 0
      %457 = vmatpush.bf16.msra.mxu0 0
      %458 = vmatpush.bf16.msra.mxu0 0
      %459 = vmatpush.bf16.msra.mxu0 %v446
      %460 = vmatpush.bf16.msra.mxu0 %v445
      %461 = vmatmul.bf16.gmra.mxu0 %v451
      %v462 = vpop.f32.mrf.mxu0
      %v463 = vadd.f32 0.0, %v462
      %v464 = vpop.f32.mrf.mxu0
      %v465 = vadd.f32 0.0, %v464
      %466 = vdwg.mxu0
      %v467 = vld [vmem:[%s387] sm:$0xf]
      %v468 = vld [vmem:[%s387 + $0x4] sm:$0xf]
      %v469 = vld [vmem:[%s387 + $0x8] sm:$0xf]
      %v470 = vld [vmem:[%s387 + $0xc] sm:$0xf]
      %v475 = vunpack.c.l.b16 %v467
      %v476 = vunpack.c.l.b16 %v468
      %v477 = vunpack.c.l.b16 %v469
      %v478 = vunpack.c.l.b16 %v470
      %v479 = vpack.c.b16 %v476, %v475
      %v480 = vpack.c.b16 %v478, %v477
      %483 = vmatpush.bf16.msra.mxu0 0
      %484 = vmatpush.bf16.msra.mxu0 0
      %485 = vmatpush.bf16.msra.mxu0 0
      %486 = vmatpush.bf16.msra.mxu0 0
      %487 = vmatpush.bf16.msra.mxu0 0
      %488 = vmatpush.bf16.msra.mxu0 0
      %489 = vmatpush.bf16.msra.mxu0 %v480
      %490 = vmatpush.bf16.msra.mxu0 %v479
      %491 = vmatmul.bf16.gmra.mxu0 %v451
      %v492 = vpop.f32.mrf.mxu0
      %v493 = vadd.f32 0.0, %v492
      %v494 = vpop.f32.mrf.mxu0
      %v495 = vadd.f32 0.0, %v494
      %496 = vdwg.mxu0
      %v497 = vxor.u32 %v463, 2147483648
      %v498 = vxor.u32 %v465, 2147483648
      %v499 = vmul.f32 %v497, 1.442695
      %v500 = vpow.pop %v499
      %v501 = vmul.f32 %v498, 1.442695
      %v502 = vpow.pop %v501
      %v503 = vadd.f32 %v500, 1.0
      %v504 = vadd.f32 %v502, 1.0
      %v505 = vrcp.pop %v503
      %v506 = vmul.f32 %v503, %v505
      %v507 = vsub.f32 1.0, %v506
      %v508 = vmul.f32 %v505, %v507
      %v509 = vadd.f32 %v505, %v508
      %vm510 = vweird.f32 %v503
      %vm511 = vweird.f32 %v505
      %vm512 = vmor %vm510, %vm511
      %v513 = vsel %vm512, %v505, %v509
      %v514 = vand.u32 2147483647, %v503
      %vm515 = vcmp.eq.f32.partialorder %v514, 8.507059e+37
      %v516 = vand.u32 %v503, 2147483648
      %v517 = vor.u32 1.1754944e-38, %v516
      %v518 = vsel %vm515, %v517, %v513
      %v519 = vmul.f32 1.0, %v518
      %v520 = vrcp.pop %v504
      %v521 = vmul.f32 %v504, %v520
      %v522 = vsub.f32 1.0, %v521
      %v523 = vmul.f32 %v520, %v522
      %v524 = vadd.f32 %v520, %v523
      %vm525 = vweird.f32 %v504
      %vm526 = vweird.f32 %v520
      %vm527 = vmor %vm525, %vm526
      %v528 = vsel %vm527, %v520, %v524
      %v529 = vand.u32 2147483647, %v504
      %vm530 = vcmp.eq.f32.partialorder %v529, 8.507059e+37
      %v531 = vand.u32 %v504, 2147483648
      %v532 = vor.u32 1.1754944e-38, %v531
      %v533 = vsel %vm530, %v532, %v528
      %v534 = vmul.f32 1.0, %v533
      %v535 = vmul.f32 %v463, %v519
      %v536 = vmul.f32 %v465, %v534
      %v537 = vmul.f32 %v535, %v493
      %v538 = vmul.f32 %v536, %v495
      %v539 = vld [vmem:[%s402] sm:$0xff]
      %v540 = vld [vmem:[%s402 + $0x8] sm:$0xff]
      %v541 = vlaneseq
      %v542 = vand.u32 %v541, 127
      %v543 = vstv %s23
      %vm544 = vcmp.eq.s32.totalorder %v542, %v543
      %v545 = vsel %vm544, %v539, 0.0
      %v546 = vsel %vm544, %v540, 0.0
      %vm547 = vcmask 31744
      %v548 = vsel %vm547, %v545, 0.0
      %549 = vadd.xlane.f32.xlu0 %v548
      %v550 = vpop.xlane.xlu0 %549
      %v551 = vsel %vm547, %v546, 0.0
      %552 = vadd.xlane.f32.xlu0 %v551
      %v553 = vpop.xlane.xlu0 %552
      %v554 = vmul.f32 %v537, %v550
      %v555 = vmul.f32 %v538, %v553
      %v556 = vpack.c.bf16 %v555, %v554
      %v557 = vld [vmem:[#allocation2] sm:$0xff]
      %v558 = vld [vmem:[#allocation2 + $0x8] sm:$0xff]
      %v559 = vld [vmem:[%s396] sm:$0xf]
      %v560 = vld [vmem:[%s396 + $0x4] sm:$0xf]
      %v563 = vunpack.c.l.b16 %v559
      %v564 = vunpack.c.l.b16 %v560
      %v565 = vpack.c.b16 %v564, %v563
      %vm567 = vcmask 130048
      %v569 = vsel %vm567, %v556, 0
      %571 = vmatpush.bf16.msra.mxu0 0
      %572 = vmatpush.bf16.msra.mxu0 0
      %573 = vmatpush.bf16.msra.mxu0 0
      %574 = vmatpush.bf16.msra.mxu0 0
      %575 = vmatpush.bf16.msra.mxu0 0
      %576 = vmatpush.bf16.msra.mxu0 0
      %577 = vmatpush.bf16.msra.mxu0 0
      %578 = vmatpush.bf16.msra.mxu0 %v565
      %579 = vmatmul.bf16.gmra.mxu0 %v569
      %v580 = vpop.f32.mrf.mxu0
      %v581 = vadd.f32 0.0, %v580
      %v582 = vpop.f32.mrf.mxu0
      %v583 = vadd.f32 0.0, %v582
      %584 = vdwg.mxu0
      %v585 = vadd.f32 %v557, %v581
      %v586 = vadd.f32 %v558, %v583
      %587 = vst.msk [vmem:[#allocation2] sm:$0xff] %vm449, %v585
      %588 = vst.msk [vmem:[#allocation2 + $0x8] sm:$0xff] %vm449, %v586
      %p589 = scmp.eq.s32.totalorder %s23, 3
      %p590 = pnand %p589, %p418
      %p591 = pneg %p590
      // Predicated region
      $region49: #{moe_model_forward.22} parent=43 // pred_check
        _
      $region50: #{moe_model_forward.22} parent=43 // pred_check_branch
        %593 = sbr.rel (%p590) target = $region52
      $region51: #{moe_model_forward.22} parent=43 // pred_region
        %v594 = vld [vmem:[#allocation2] sm:$0xff]
        %v595 = vld [vmem:[#allocation2 + $0x8] sm:$0xff]
        %v596 = vld [vmem:[%s408] sm:$0xff]
        %v597 = vld [vmem:[%s408 + $0x8] sm:$0xff]
        %v598 = vadd.f32 %v594, %v596
        %v599 = vadd.f32 %v595, %v597
        %600 = vst.msk [vmem:[%s414] sm:$0xff] %vm449, %v598
        %601 = vst.msk [vmem:[%s414 + $0x8] sm:$0xff] %vm449, %v599
      $region52: #{moe_model_forward.22} parent=43 // pred_fallthru
        _
      %s602 = smul.u32 2, %s22
      %p603 = scmp.lt.s32.totalorder %s602, 1
      %s604 = scalar_select %p603, %s602, 1
      %s605 = smul.addr %s604, 8
      %s606 = scalar_lea.vmem %s6, %s605
      // Predicated region
      $region53: #{moe_model_forward.22} parent=43 // pred_check
        %p607 = pneg %p216
      $region54: #{moe_model_forward.22} parent=43 // pred_check_branch
        %609 = sbr.rel (%p607) target = $region56
      $region55: #{moe_model_forward.22} parent=43 // pred_region
        %s610 = smul.u32 2, %s22
      $region56: #{moe_model_forward.22} parent=43 // pred_fallthru
        _
      // Predicated region
      $region57: #{moe_model_forward.22} parent=43 // pred_check
        %p611 = pneg %p216
      $region58: #{moe_model_forward.22} parent=43 // pred_check_branch
        %613 = sbr.rel (%p611) target = $region60
      $region59: #{moe_model_forward.22} parent=43 // pred_region
        %s614 = smul.u32 2, %s22
        %p615 = scmp.lt.s32.totalorder %s614, 1
        %s616 = scalar_select %p615, %s614, 1
        %s617 = smul.addr %s616, 8
        %s618 = scalar_lea.vmem %s6, %s617
      $region60: #{moe_model_forward.22} parent=43 // pred_fallthru
        _
    $region44: #{moe_model_forward.22} parent=5 // pred_fallthru
      _
    %p619 = scmp.le.s32.totalorder 2, %s12
    // Predicated region
    $region61: #{moe_model_forward.22} parent=5 // pred_check
      %p620 = pneg %p619
    $region62: #{moe_model_forward.22} parent=5 // pred_check_branch
      %622 = sbr.rel (%p620) target = $region64
    $region63: #{moe_model_forward.22} parent=5 // pred_region
      %s623 = ssub.s32 %s12, 2
    $region64: #{moe_model_forward.22} parent=5 // pred_fallthru
      _
  $region6: #{moe_model_forward.22} parent=0 // loop_footer
    %s16 = sadd.s32 1, %s12
  $region7: #{moe_model_forward.22} parent=0 // loop_footer_branch
    %11 = sbr.rel target = $region3
  $region8: #{moe_model_forward.22} parent=0 // loop_exit
    _

// kernel: moe_model_forward.31
$region0: #{moe_model_forward.31}
  #allocation0 [shape = 'u32[]', space=smem, size = 0x4, offset = 0x4, fixed_abs, tag = 'smem constant byte address 0x4 - core index']
  #allocation1 [shape = 'u32[72,128]{1,0:T(1,128)}', space=vmem, size = 0x9000, scoped, tag = 'internal scratch']
  #allocation2 [shape = 'f32[16,16]{1,0:T(8,128)}', space=vmem, size = 0x2000, scoped, tag = 'scratch operand']
  %s0 = inlined_call_operand.vmem [shape: bf16[16,32], index: 0, kind: input, shape index: {}]
  %s1 = inlined_call_operand.vmem [shape: bf16[32,16], index: 1, kind: input, shape index: {}]
  %s2 = inlined_call_operand.vmem [shape: f32[1,16], index: 2, kind: input, shape index: {}]
  %s3 = inlined_call_operand.hbm [shape: f32[16,16], index: 3, kind: output, shape index: {}]
  %s4 = sld [smem:[#allocation0]]
  $region30: #{moe_model_forward.31} parent=0
    _
  %s6 = ssub.s32 1, %s4
  %s7 = scalar_select 0, %s6, %s4
  $region1: #{moe_model_forward.31} parent=0
    #allocation3 [shape = 'u8[8192]{0}', space=vmem, size = 0x2000, scoped, tag = 'output window, operand 0, single buffered']
    #allocation4 [shape = 's32[1]{0}', space=sflag, size = 0x4, scoped, tag = 'scoped memory for moe_model_forward.31']
    %8 = vsyncpa [#allocation4], 0
    // Predicated region
    $region2: #{moe_model_forward.31} parent=1 // pred_check
      _
    $region3: #{moe_model_forward.31} parent=1 // pred_check_branch
      %10 = sbr.rel (0) target = $region5
    $region4: #{moe_model_forward.31} parent=1 // pred_region
      _
    $region5: #{moe_model_forward.31} parent=1 // pred_fallthru
      _
    // Predicated region
    $region6: #{moe_model_forward.31} parent=1 // pred_check
      _
    $region7: #{moe_model_forward.31} parent=1 // pred_check_branch
      %12 = sbr.rel (0) target = $region9
    $region8: #{moe_model_forward.31} parent=1 // pred_region
      _
    $region9: #{moe_model_forward.31} parent=1 // pred_fallthru
      _
    // Predicated region
    $region10: #{moe_model_forward.31} parent=1 // pred_check
      _
    $region11: #{moe_model_forward.31} parent=1 // pred_check_branch
      %14 = sbr.rel (0) target = $region13
    $region12: #{moe_model_forward.31} parent=1 // pred_region
      _
    $region13: #{moe_model_forward.31} parent=1 // pred_fallthru
      _
    %p16 = scmp.eq.s32.totalorder 0, 0
    // Predicated region
    $region14: #{moe_model_forward.31} parent=1 // pred_check
      %p17 = pneg %p16
    $region15: #{moe_model_forward.31} parent=1 // pred_check_branch
      %19 = sbr.rel (%p17) target = $region17
    $region16: #{moe_model_forward.31} parent=1 // pred_region
      %vm20 = vcmask 130048
      %21 = vst.msk [vmem:[#allocation2] sm:$0xff] %vm20, 0.0
      %22 = vst.msk [vmem:[#allocation2 + $0x8] sm:$0xff] %vm20, 0.0
    $region17: #{moe_model_forward.31} parent=1 // pred_fallthru
      _
    %v23 = vld [vmem:[#allocation2] sm:$0xff]
    %v24 = vld [vmem:[#allocation2 + $0x8] sm:$0xff]
    %v25 = vld [vmem:[%s0] sm:$0xf]
    %v26 = vld [vmem:[%s0 + $0x4] sm:$0xf]
    %v27 = vld [vmem:[%s1] sm:$0xf]
    %v28 = vld [vmem:[%s1 + $0x4] sm:$0xf]
    %v29 = vld [vmem:[%s1 + $0x8] sm:$0xf]
    %v30 = vld [vmem:[%s1 + $0xc] sm:$0xf]
    %v33 = vunpack.c.l.b16 %v25
    %v34 = vunpack.c.l.b16 %v26
    %v35 = vpack.c.b16 %v34, %v33
    %v40 = vunpack.c.l.b16 %v27
    %v41 = vunpack.c.l.b16 %v28
    %v42 = vunpack.c.l.b16 %v29
    %v43 = vunpack.c.l.b16 %v30
    %v44 = vpack.c.b16 %v41, %v40
    %v45 = vpack.c.b16 %v43, %v42
    %vm48 = vcmask 261120
    %v50 = vsel %vm48, %v35, 0
    %52 = vmatpush.bf16.msra.mxu0 0
    %53 = vmatpush.bf16.msra.mxu0 0
    %54 = vmatpush.bf16.msra.mxu0 0
    %55 = vmatpush.bf16.msra.mxu0 0
    %56 = vmatpush.bf16.msra.mxu0 0
    %57 = vmatpush.bf16.msra.mxu0 0
    %58 = vmatpush.bf16.msra.mxu0 %v45
    %59 = vmatpush.bf16.msra.mxu0 %v44
    %60 = vmatmul.bf16.gmra.mxu0 %v50
    %v61 = vpop.f32.mrf.mxu0
    %v62 = vadd.f32 0.0, %v61
    %v63 = vpop.f32.mrf.mxu0
    %v64 = vadd.f32 0.0, %v63
    %65 = vdwg.mxu0
    %v66 = vadd.f32 %v23, %v62
    %v67 = vadd.f32 %v24, %v64
    %vm68 = vcmask 130048
    %69 = vst.msk [vmem:[#allocation2] sm:$0xff] %vm68, %v66
    %70 = vst.msk [vmem:[#allocation2 + $0x8] sm:$0xff] %vm68, %v67
    // Predicated region
    $region18: #{moe_model_forward.31} parent=1 // pred_check
      %p71 = pneg %p16
    $region19: #{moe_model_forward.31} parent=1 // pred_check_branch
      %73 = sbr.rel (%p71) target = $region21
    $region20: #{moe_model_forward.31} parent=1 // pred_region
      %v74 = vld [vmem:[#allocation2] sm:$0xff]
      %v75 = vld [vmem:[#allocation2 + $0x8] sm:$0xff]
      %v76 = vld [vmem:[%s2] sm:$0x1]
      %v78 = vperm.slane %v76, 0
      %v80 = vadd.f32 %v74, %v78
      %v81 = vadd.f32 %v75, %v78
      %82 = vst.msk [vmem:[#allocation3] sm:$0xff] %vm68, %v80
      %83 = vst.msk [vmem:[#allocation3 + $0x8] sm:$0xff] %vm68, %v81
    $region21: #{moe_model_forward.31} parent=1 // pred_fallthru
      _
    // Predicated region
    $region22: #{moe_model_forward.31} parent=1 // pred_check
      _
    $region23: #{moe_model_forward.31} parent=1 // pred_check_branch
      %85 = sbr.rel (0) target = $region25
    $region24: #{moe_model_forward.31} parent=1 // pred_region
      %87 = vsyncadd [#allocation4], 0
      %s88 = sshll.u32 [#allocation3], 4
      %s89 = int_to_ptr.vmem [resolvable:$true] %s88
      %s90 = sshll.u32 %s3, 4
      %s91 = int_to_ptr.hbm [resolvable:$true] %s90
      %96 = dma.vmem_to_hbm [thread:$0]  %s89, 256, %s91, [#allocation4], 128, 128, 8
    $region25: #{moe_model_forward.31} parent=1 // pred_fallthru
      _
    // Predicated region
    $region26: #{moe_model_forward.31} parent=1 // pred_check
      _
    $region27: #{moe_model_forward.31} parent=1 // pred_check_branch
      %98 = sbr.rel (0) target = $region29
    $region28: #{moe_model_forward.31} parent=1 // pred_region
      %100 = dma.done [#allocation4], 256
    $region29: #{moe_model_forward.31} parent=1 // pred_fallthru
      _
    %101 = vsyncpa [#allocation4], 1

// kernel: moe_model_forward.18
$region0: #{moe_model_forward.18}
  #allocation0 [shape = 'u32[]', space=smem, size = 0x4, offset = 0x4, fixed_abs, tag = 'smem constant byte address 0x4 - core index']
  #allocation1 [shape = 'u32[72,128]{1,0:T(1,128)}', space=vmem, size = 0x9000, scoped, tag = 'internal scratch']
  #allocation2 [shape = 'bf16[4,8,8]{2,1,0:T(8,128)(2,1)}', space=vmem, size = 0x2000, scoped, tag = 'scratch operand']
  #allocation3 [shape = 'f32[4,8,1]{2,1,0:T(8,128)}', space=vmem, size = 0x4000, scoped, tag = 'scratch operand']
  #allocation4 [shape = 'f32[4,8,1]{2,1,0:T(8,128)}', space=vmem, size = 0x4000, scoped, tag = 'scratch operand']
  #allocation5 [shape = 'f32[4,8,8]{2,1,0:T(8,128)}', space=vmem, size = 0x4000, scoped, tag = 'scratch operand']
  %s0 = inlined_call_operand.vmem [shape: bf16[2,8,3,4,8], index: 0, kind: input, shape index: {}, may-alias: {0,1,2}]
  %s1 = inlined_call_operand.vmem [shape: bf16[2,8,3,4,8], index: 1, kind: input, shape index: {}, may-alias: {0,1,2}]
  %s2 = inlined_call_operand.vmem [shape: bf16[2,8,3,4,8], index: 2, kind: input, shape index: {}, may-alias: {0,1,2}]
  %s3 = inlined_call_operand.vmem [shape: f32[8,4], index: 3, kind: input, shape index: {}]
  %s4 = inlined_call_operand.vmem [shape: f32[8,4], index: 4, kind: input, shape index: {}]
  %s5 = inlined_call_operand.vmem [shape: f32[8,4], index: 5, kind: input, shape index: {}]
  %s6 = inlined_call_operand.vmem [shape: f32[8,4], index: 6, kind: input, shape index: {}]
  %s7 = inlined_call_operand.vmem [shape: bf16[2,8,4,8], index: 7, kind: output, shape index: {}]
  %s8 = sld [smem:[#allocation0]]
  $region192: #{moe_model_forward.18} parent=0
    _
  %s10 = ssub.s32 1, %s8
  %s11 = scalar_select 0, %s10, %s8
  $region1: #{moe_model_forward.18} parent=0
    #allocation6 [shape = 'u8[16384]{0}', space=vmem, size = 0x4000, scoped, tag = 'input window, operand 0']
    #allocation7 [shape = 'u8[16384]{0}', space=vmem, size = 0x4000, scoped, tag = 'input window, operand 1']
    #allocation8 [shape = 'u8[16384]{0}', space=vmem, size = 0x4000, scoped, tag = 'input window, operand 2']
    loop: start=0, step=1, limit=4
    $region2: #{moe_model_forward.18} parent=1 // loop_pre_header
      _
    $region3: #{moe_model_forward.18} parent=1 // loop_header
      %s13 = sphi 0, %s17
      %p14 = scmp.ge.s32.totalorder %s13, 4
      %s20 = sphi 0, %s46
      %s21 = sphi 0, %s42
      %s22 = sphi 0, %s38
      %s23 = sphi 0, %s34
      %s24 = sphi 0, %s20
      %s25 = sphi 0, %s21
      %s26 = sphi 0, %s22
      %s27 = sphi 0, %s23
      %s28 = sphi 0, %s24
      %s29 = sphi 0, %s25
      %s30 = sphi 0, %s26
      %s31 = sphi 0, %s27
      %s53 = sphi 0, %s55
      %s56 = sphi 0, %s53
      %s57 = sphi 0, %s56
      %s73 = sphi 0, %s57
      %s83 = sphi 0, %s85
      %s86 = sphi 0, %s83
      %s87 = sphi 0, %s86
      %s103 = sphi 0, %s87
      %s113 = sphi 0, %s115
      %s116 = sphi 0, %s113
      %s117 = sphi 0, %s116
      %s133 = sphi 0, %s117
      %s139 = sphi 0, %s141
      %s142 = sphi 0, %s139
      %s143 = sphi 0, %s142
      %s159 = sphi 0, %s143
      %s165 = sphi 0, %s167
      %s168 = sphi 0, %s165
      %s169 = sphi 0, %s168
      %s185 = sphi 0, %s169
      %s191 = sphi 0, %s193
      %s194 = sphi 0, %s191
      %s195 = sphi 0, %s194
      %s211 = sphi 0, %s195
      %s217 = sphi 0, %s219
      %s220 = sphi 0, %s217
      %s221 = sphi 0, %s220
      %s237 = sphi 0, %s221
      %s247 = sphi 0, %s249
      %s250 = sphi 0, %s247
      %s251 = sphi 0, %s250
      %s267 = sphi 0, %s251
    $region4: #{moe_model_forward.18} parent=1 // loop_header_branch
      %16 = sbr.rel (%p14) target = $region8
    $region5: #{moe_model_forward.18} parent=1 // loop_body
      %s18 = ssub.s32 %s13, 1
      %s19 = ssub.s32 %s13, 2
      %s32 = sadd.s32 1, %s23
      %p33 = scmp.ge.s32.totalorder %s32, 1
      %s34 = scalar_select %p33, 0, %s32
      %s35 = sadd.s32 1, %s22
      %s36 = scalar_select %p33, %s35, %s22
      %p37 = scmp.ge.s32.totalorder %s36, 1
      %s38 = scalar_select %p37, 0, %s36
      %s39 = sadd.s32 1, %s21
      %s40 = scalar_select %p37, %s39, %s21
      %p41 = scmp.ge.s32.totalorder %s40, 1
      %s42 = scalar_select %p41, 0, %s40
      %s43 = sadd.s32 1, %s20
      %s44 = scalar_select %p41, %s43, %s20
      %p45 = scmp.ge.s32.totalorder %s44, 2
      %s46 = scalar_select %p45, 0, %s44
      %s47 = ssub.s32 %s20, %s46
      %s48 = ssub.s32 %s22, %s38
      %s49 = sor.u32 %s47, %s48
      %s50 = ssub.s32 %s21, %s42
      %s51 = sor.u32 %s49, %s50
      %p52 = scmp.eq.s32.totalorder %s51, 0
      %s54 = sadd.s32 %s53, 1
      %s55 = scalar_select %p52, %s53, %s54
      %p58 = pneg %p52
      %p59 = scmp.eq.s32.totalorder %s13, 1
      %p60 = por %p58, %p59
      %p61 = scmp.ne.s32.totalorder %s53, %s56
      %p62 = scmp.eq.s32.totalorder %s13, 0
      %p63 = por %p61, %p62
      %p64 = scmp.ne.s32.totalorder %s53, %s56
      %p65 = scmp.eq.s32.totalorder %s18, 1
      %p66 = por %p64, %p65
      %p67 = scmp.ne.s32.totalorder %s56, %s57
      %p68 = scmp.eq.s32.totalorder %s18, 0
      %p69 = por %p67, %p68
      %p70 = scmp.ne.s32.totalorder %s56, %s57
      %p71 = scmp.eq.s32.totalorder %s19, 1
      %p72 = por %p70, %p71
      %p74 = scmp.ne.s32.totalorder %s57, %s73
      %p75 = scmp.eq.s32.totalorder %s19, 0
      %p76 = por %p74, %p75
      %s77 = ssub.s32 %s20, %s46
      %s78 = ssub.s32 %s23, %s34
      %s79 = sor.u32 %s77, %s78
      %s80 = ssub.s32 %s21, %s42
      %s81 = sor.u32 %s79, %s80
      %p82 = scmp.eq.s32.totalorder %s81, 0
      %s84 = sadd.s32 %s83, 1
      %s85 = scalar_select %p82, %s83, %s84
      %p88 = pneg %p82
      %p89 = scmp.eq.s32.totalorder %s13, 1
      %p90 = por %p88, %p89
      %p91 = scmp.ne.s32.totalorder %s83, %s86
      %p92 = scmp.eq.s32.totalorder %s13, 0
      %p93 = por %p91, %p92
      %p94 = scmp.ne.s32.totalorder %s83, %s86
      %p95 = scmp.eq.s32.totalorder %s18, 1
      %p96 = por %p94, %p95
      %p97 = scmp.ne.s32.totalorder %s86, %s87
      %p98 = scmp.eq.s32.totalorder %s18, 0
      %p99 = por %p97, %p98
      %p100 = scmp.ne.s32.totalorder %s86, %s87
      %p101 = scmp.eq.s32.totalorder %s19, 1
      %p102 = por %p100, %p101
      %p104 = scmp.ne.s32.totalorder %s87, %s103
      %p105 = scmp.eq.s32.totalorder %s19, 0
      %p106 = por %p104, %p105
      %s107 = ssub.s32 %s20, %s46
      %s108 = ssub.s32 %s23, %s34
      %s109 = sor.u32 %s107, %s108
      %s110 = ssub.s32 %s21, %s42
      %s111 = sor.u32 %s109, %s110
      %p112 = scmp.eq.s32.totalorder %s111, 0
      %s114 = sadd.s32 %s113, 1
      %s115 = scalar_select %p112, %s113, %s114
      %p118 = pneg %p112
      %p119 = scmp.eq.s32.totalorder %s13, 1
      %p120 = por %p118, %p119
      %p121 = scmp.ne.s32.totalorder %s113, %s116
      %p122 = scmp.eq.s32.totalorder %s13, 0
      %p123 = por %p121, %p122
      %p124 = scmp.ne.s32.totalorder %s113, %s116
      %p125 = scmp.eq.s32.totalorder %s18, 1
      %p126 = por %p124, %p125
      %p127 = scmp.ne.s32.totalorder %s116, %s117
      %p128 = scmp.eq.s32.totalorder %s18, 0
      %p129 = por %p127, %p128
      %p130 = scmp.ne.s32.totalorder %s116, %s117
      %p131 = scmp.eq.s32.totalorder %s19, 1
      %p132 = por %p130, %p131
      %p134 = scmp.ne.s32.totalorder %s117, %s133
      %p135 = scmp.eq.s32.totalorder %s19, 0
      %p136 = por %p134, %p135
      %s137 = ssub.s32 %s22, %s38
      %p138 = scmp.eq.s32.totalorder %s137, 0
      %s140 = sadd.s32 %s139, 1
      %s141 = scalar_select %p138, %s139, %s140
      %p144 = pneg %p138
      %p145 = scmp.eq.s32.totalorder %s13, 1
      %p146 = por %p144, %p145
      %p147 = scmp.ne.s32.totalorder %s139, %s142
      %p148 = scmp.eq.s32.totalorder %s13, 0
      %p149 = por %p147, %p148
      %p150 = scmp.ne.s32.totalorder %s139, %s142
      %p151 = scmp.eq.s32.totalorder %s18, 1
      %p152 = por %p150, %p151
      %p153 = scmp.ne.s32.totalorder %s142, %s143
      %p154 = scmp.eq.s32.totalorder %s18, 0
      %p155 = por %p153, %p154
      %p156 = scmp.ne.s32.totalorder %s142, %s143
      %p157 = scmp.eq.s32.totalorder %s19, 1
      %p158 = por %p156, %p157
      %p160 = scmp.ne.s32.totalorder %s143, %s159
      %p161 = scmp.eq.s32.totalorder %s19, 0
      %p162 = por %p160, %p161
      %s163 = ssub.s32 %s22, %s38
      %p164 = scmp.eq.s32.totalorder %s163, 0
      %s166 = sadd.s32 %s165, 1
      %s167 = scalar_select %p164, %s165, %s166
      %p170 = pneg %p164
      %p171 = scmp.eq.s32.totalorder %s13, 1
      %p172 = por %p170, %p171
      %p173 = scmp.ne.s32.totalorder %s165, %s168
      %p174 = scmp.eq.s32.totalorder %s13, 0
      %p175 = por %p173, %p174
      %p176 = scmp.ne.s32.totalorder %s165, %s168
      %p177 = scmp.eq.s32.totalorder %s18, 1
      %p178 = por %p176, %p177
      %p179 = scmp.ne.s32.totalorder %s168, %s169
      %p180 = scmp.eq.s32.totalorder %s18, 0
      %p181 = por %p179, %p180
      %p182 = scmp.ne.s32.totalorder %s168, %s169
      %p183 = scmp.eq.s32.totalorder %s19, 1
      %p184 = por %p182, %p183
      %p186 = scmp.ne.s32.totalorder %s169, %s185
      %p187 = scmp.eq.s32.totalorder %s19, 0
      %p188 = por %p186, %p187
      %s189 = ssub.s32 %s23, %s34
      %p190 = scmp.eq.s32.totalorder %s189, 0
      %s192 = sadd.s32 %s191, 1
      %s193 = scalar_select %p190, %s191, %s192
      %p196 = pneg %p190
      %p197 = scmp.eq.s32.totalorder %s13, 1
      %p198 = por %p196, %p197
      %p199 = scmp.ne.s32.totalorder %s191, %s194
      %p200 = scmp.eq.s32.totalorder %s13, 0
      %p201 = por %p199, %p200
      %p202 = scmp.ne.s32.totalorder %s191, %s194
      %p203 = scmp.eq.s32.totalorder %s18, 1
      %p204 = por %p202, %p203
      %p205 = scmp.ne.s32.totalorder %s194, %s195
      %p206 = scmp.eq.s32.totalorder %s18, 0
      %p207 = por %p205, %p206
      %p208 = scmp.ne.s32.totalorder %s194, %s195
      %p209 = scmp.eq.s32.totalorder %s19, 1
      %p210 = por %p208, %p209
      %p212 = scmp.ne.s32.totalorder %s195, %s211
      %p213 = scmp.eq.s32.totalorder %s19, 0
      %p214 = por %p212, %p213
      %s215 = ssub.s32 %s23, %s34
      %p216 = scmp.eq.s32.totalorder %s215, 0
      %s218 = sadd.s32 %s217, 1
      %s219 = scalar_select %p216, %s217, %s218
      %p222 = pneg %p216
      %p223 = scmp.eq.s32.totalorder %s13, 1
      %p224 = por %p222, %p223
      %p225 = scmp.ne.s32.totalorder %s217, %s220
      %p226 = scmp.eq.s32.totalorder %s13, 0
      %p227 = por %p225, %p226
      %p228 = scmp.ne.s32.totalorder %s217, %s220
      %p229 = scmp.eq.s32.totalorder %s18, 1
      %p230 = por %p228, %p229
      %p231 = scmp.ne.s32.totalorder %s220, %s221
      %p232 = scmp.eq.s32.totalorder %s18, 0
      %p233 = por %p231, %p232
      %p234 = scmp.ne.s32.totalorder %s220, %s221
      %p235 = scmp.eq.s32.totalorder %s19, 1
      %p236 = por %p234, %p235
      %p238 = scmp.ne.s32.totalorder %s221, %s237
      %p239 = scmp.eq.s32.totalorder %s19, 0
      %p240 = por %p238, %p239
      %s241 = ssub.s32 %s20, %s46
      %s242 = ssub.s32 %s22, %s38
      %s243 = sor.u32 %s241, %s242
      %s244 = ssub.s32 %s21, %s42
      %s245 = sor.u32 %s243, %s244
      %p246 = scmp.eq.s32.totalorder %s245, 0
      %s248 = sadd.s32 %s247, 1
      %s249 = scalar_select %p246, %s247, %s248
      %p252 = pneg %p246
      %p253 = scmp.eq.s32.totalorder %s13, 1
      %p254 = por %p252, %p253
      %p255 = scmp.ne.s32.totalorder %s247, %s250
      %p256 = scmp.eq.s32.totalorder %s13, 0
      %p257 = por %p255, %p256
      %p258 = scmp.ne.s32.totalorder %s247, %s250
      %p259 = scmp.eq.s32.totalorder %s18, 1
      %p260 = por %p258, %p259
      %p261 = scmp.ne.s32.totalorder %s250, %s251
      %p262 = scmp.eq.s32.totalorder %s18, 0
      %p263 = por %p261, %p262
      %p264 = scmp.ne.s32.totalorder %s250, %s251
      %p265 = scmp.eq.s32.totalorder %s19, 1
      %p266 = por %p264, %p265
      %p268 = scmp.ne.s32.totalorder %s251, %s267
      %p269 = scmp.eq.s32.totalorder %s19, 0
      %p270 = por %p268, %p269
      %p271 = scmp.le.s32.totalorder 1, %s13
      %p272 = scmp.lt.s32.totalorder %s13, 3
      %p273 = pnand %p271, %p272
      %p274 = pneg %p273
      // Predicated region
      $region9: #{moe_model_forward.18} parent=5 // pred_check
        _
      $region10: #{moe_model_forward.18} parent=5 // pred_check_branch
        %276 = sbr.rel (%p273) target = $region12
      $region11: #{moe_model_forward.18} parent=5 // pred_region
        %s277 = ssub.s32 %s13, 1
        // Predicated region
        $region13: #{moe_model_forward.18} parent=11 // pred_check
          %p278 = pneg %p155
        $region14: #{moe_model_forward.18} parent=11 // pred_check_branch
          %280 = sbr.rel (%p278) target = $region16
        $region15: #{moe_model_forward.18} parent=11 // pred_region
          %p281 = scmp.lt.s32.totalorder %s26, 0
          %s282 = scalar_select %p281, %s26, 0
          %s283 = smul.addr %s282, 8
          %s284 = scalar_lea.vmem %s3, %s283
        $region16: #{moe_model_forward.18} parent=11 // pred_fallthru
          _
        // Predicated region
        $region17: #{moe_model_forward.18} parent=11 // pred_check
          %p285 = pneg %p181
        $region18: #{moe_model_forward.18} parent=11 // pred_check_branch
          %287 = sbr.rel (%p285) target = $region20
        $region19: #{moe_model_forward.18} parent=11 // pred_region
          %p288 = scmp.lt.s32.totalorder %s26, 0
          %s289 = scalar_select %p288, %s26, 0
          %s290 = smul.addr %s289, 8
          %s291 = scalar_lea.vmem %s4, %s290
        $region20: #{moe_model_forward.18} parent=11 // pred_fallthru
          _
        // Predicated region
        $region21: #{moe_model_forward.18} parent=11 // pred_check
          %p292 = pneg %p207
        $region22: #{moe_model_forward.18} parent=11 // pred_check_branch
          %294 = sbr.rel (%p292) target = $region24
        $region23: #{moe_model_forward.18} parent=11 // pred_region
          %p295 = scmp.lt.s32.totalorder %s27, 0
          %s296 = scalar_select %p295, %s27, 0
          %s297 = smul.addr %s296, 8
          %s298 = scalar_lea.vmem %s5, %s297
        $region24: #{moe_model_forward.18} parent=11 // pred_fallthru
          _
        // Predicated region
        $region25: #{moe_model_forward.18} parent=11 // pred_check
          %p299 = pneg %p233
        $region26: #{moe_model_forward.18} parent=11 // pred_check_branch
          %301 = sbr.rel (%p299) target = $region28
        $region27: #{moe_model_forward.18} parent=11 // pred_region
          %p302 = scmp.lt.s32.totalorder %s27, 0
          %s303 = scalar_select %p302, %s27, 0
          %s304 = smul.addr %s303, 8
          %s305 = scalar_lea.vmem %s6, %s304
        $region28: #{moe_model_forward.18} parent=11 // pred_fallthru
          _
      $region12: #{moe_model_forward.18} parent=5 // pred_fallthru
        _
      %p306 = scmp.lt.s32.totalorder %s13, 2
      // Predicated region
      $region29: #{moe_model_forward.18} parent=5 // pred_check
        %p307 = pneg %p306
      $region30: #{moe_model_forward.18} parent=5 // pred_check_branch
        %309 = sbr.rel (%p307) target = $region32
      $region31: #{moe_model_forward.18} parent=5 // pred_region
        // Predicated region
        $region33: #{moe_model_forward.18} parent=31 // pred_check
          %p310 = pneg %p63
        $region34: #{moe_model_forward.18} parent=31 // pred_check_branch
          %312 = sbr.rel (%p310) target = $region36
        $region35: #{moe_model_forward.18} parent=31 // pred_region
          %s313 = sand.u32 %s53, 1
          %s314 = sand.u32 %s53, 1
          %s315 = smul.addr %s314, 16
          %s316 = scalar_lea.vmem [#allocation6], %s315
          %s317 = smul.u32 8, %s22
          %s318 = smul.addr %s317, 3
          %s319 = sadd.s32 %s21, %s318
          %s320 = smul.addr %s20, 24
          %s321 = sadd.s32 %s319, %s320
          %s322 = smul.addr %s321, 2
          %s323 = scalar_lea.vmem %s0, %s322
          // Predicated region
          $region37: #{moe_model_forward.18} parent=35 // pred_check
            _
          $region38: #{moe_model_forward.18} parent=35 // pred_check_branch
            %325 = sbr.rel (0) target = $region40
          $region39: #{moe_model_forward.18} parent=35 // pred_region
            // Predicated region
            $region41: #{moe_model_forward.18} parent=39 // pred_check
              _
            $region42: #{moe_model_forward.18} parent=39 // pred_check_branch
              %327 = sbr.rel target = $region44
            $region43: #{moe_model_forward.18} parent=39 // pred_region
              // Predicated region
              $region56: #{moe_model_forward.18} parent=43 // pred_check
                _
              $region57: #{moe_model_forward.18} parent=43 // pred_check_branch
                %357 = sbr.rel (0) target = $region59
              $region58: #{moe_model_forward.18} parent=43 // pred_region
                loop: start=0, step=1, limit=1
                $region60: #{moe_model_forward.18} parent=58 // loop_pre_header
                  _
                $region61: #{moe_model_forward.18} parent=58 // loop_header
                  %s359 = sphi 0, %s363
                  %p360 = scmp.ge.s32.totalorder %s359, 1
                  %s364 = sphi %s323, %s323
                  %s365 = sphi %s316, %s316
                $region62: #{moe_model_forward.18} parent=58 // loop_header_branch
                  %362 = sbr.rel (%p360) target = $region66
                $region63: #{moe_model_forward.18} parent=58 // loop_body
                  _
                $region64: #{moe_model_forward.18} parent=58 // loop_footer
                  %s363 = sadd.s32 1, %s359
                $region65: #{moe_model_forward.18} parent=58 // loop_footer_branch
                  %358 = sbr.rel target = $region61
                $region66: #{moe_model_forward.18} parent=58 // loop_exit
                  _
                %s367 = ssub.s32 4, 1
                loop: start=0, step=1, limit=1
                $region67: #{moe_model_forward.18} parent=58 // loop_pre_header
                  _
                $region68: #{moe_model_forward.18} parent=58 // loop_header
                  %s369 = sphi 0, %s373
                  %p370 = scmp.ge.s32.totalorder %s369, 1
                  %s374 = sphi %s323, %s323
                  %s375 = sphi %s316, %s316
                $region69: #{moe_model_forward.18} parent=58 // loop_header_branch
                  %372 = sbr.rel (%p370) target = $region73
                $region70: #{moe_model_forward.18} parent=58 // loop_body
                  %v376 = vld [vmem:[%s374] sm:%s367]
                  %377 = vst [vmem:[%s375] sm:%s367] %v376
                  %v378 = vld [vmem:[%s374 + $0x6] sm:%s367]
                  %379 = vst [vmem:[%s375 + $0x2] sm:%s367] %v378
                  %v380 = vld [vmem:[%s374 + $0xc] sm:%s367]
                  %381 = vst [vmem:[%s375 + $0x4] sm:%s367] %v380
                  %v382 = vld [vmem:[%s374 + $0x12] sm:%s367]
                  %383 = vst [vmem:[%s375 + $0x6] sm:%s367] %v382
                  %v384 = vld [vmem:[%s374 + $0x18] sm:%s367]
                  %385 = vst [vmem:[%s375 + $0x8] sm:%s367] %v384
                  %v386 = vld [vmem:[%s374 + $0x1e] sm:%s367]
                  %387 = vst [vmem:[%s375 + $0xa] sm:%s367] %v386
                  %v388 = vld [vmem:[%s374 + $0x24] sm:%s367]
                  %389 = vst [vmem:[%s375 + $0xc] sm:%s367] %v388
                  %v390 = vld [vmem:[%s374 + $0x2a] sm:%s367]
                  %391 = vst [vmem:[%s375 + $0xe] sm:%s367] %v390
                $region71: #{moe_model_forward.18} parent=58 // loop_footer
                  %s373 = sadd.s32 1, %s369
                $region72: #{moe_model_forward.18} parent=58 // loop_footer_branch
                  %368 = sbr.rel target = $region68
                $region73: #{moe_model_forward.18} parent=58 // loop_exit
                  _
              $region59: #{moe_model_forward.18} parent=43 // pred_fallthru
                _
            $region44: #{moe_model_forward.18} parent=39 // pred_fallthru
              _
            // Predicated region
            $region45: #{moe_model_forward.18} parent=39 // pred_check
              _
            $region46: #{moe_model_forward.18} parent=39 // pred_check_branch
              %329 = sbr.rel (0) target = $region48
            $region47: #{moe_model_forward.18} parent=39 // pred_region
              %s331 = ssub.s32 4, 1
              loop: start=0, step=1, limit=1
              $region49: #{moe_model_forward.18} parent=47 // loop_pre_header
                _
              $region50: #{moe_model_forward.18} parent=47 // loop_header
                %s333 = sphi 0, %s337
                %p334 = scmp.ge.s32.totalorder %s333, 1
                %s338 = sphi %s323, %s323
                %s339 = sphi %s316, %s316
              $region51: #{moe_model_forward.18} parent=47 // loop_header_branch
                %336 = sbr.rel (%p334) target = $region55
              $region52: #{moe_model_forward.18} parent=47 // loop_body
                %v340 = vld [vmem:[%s338] sm:%s331]
                %341 = vst [vmem:[%s339] sm:%s331] %v340
                %v342 = vld [vmem:[%s338 + $0x6] sm:%s331]
                %343 = vst [vmem:[%s339 + $0x2] sm:%s331] %v342
                %v344 = vld [vmem:[%s338 + $0xc] sm:%s331]
                %345 = vst [vmem:[%s339 + $0x4] sm:%s331] %v344
                %v346 = vld [vmem:[%s338 + $0x12] sm:%s331]
                %347 = vst [vmem:[%s339 + $0x6] sm:%s331] %v346
                %v348 = vld [vmem:[%s338 + $0x18] sm:%s331]
                %349 = vst [vmem:[%s339 + $0x8] sm:%s331] %v348
                %v350 = vld [vmem:[%s338 + $0x1e] sm:%s331]
                %351 = vst [vmem:[%s339 + $0xa] sm:%s331] %v350
                %v352 = vld [vmem:[%s338 + $0x24] sm:%s331]
                %353 = vst [vmem:[%s339 + $0xc] sm:%s331] %v352
                %v354 = vld [vmem:[%s338 + $0x2a] sm:%s331]
                %355 = vst [vmem:[%s339 + $0xe] sm:%s331] %v354
              $region53: #{moe_model_forward.18} parent=47 // loop_footer
                %s337 = sadd.s32 1, %s333
              $region54: #{moe_model_forward.18} parent=47 // loop_footer_branch
                %332 = sbr.rel target = $region50
              $region55: #{moe_model_forward.18} parent=47 // loop_exit
                _
            $region48: #{moe_model_forward.18} parent=39 // pred_fallthru
              _
          $region40: #{moe_model_forward.18} parent=35 // pred_fallthru
            _
          %392 = vnop
        $region36: #{moe_model_forward.18} parent=31 // pred_fallthru
          _
        // Predicated region
        $region74: #{moe_model_forward.18} parent=31 // pred_check
          %p393 = pneg %p93
        $region75: #{moe_model_forward.18} parent=31 // pred_check_branch
          %395 = sbr.rel (%p393) target = $region77
        $region76: #{moe_model_forward.18} parent=31 // pred_region
          %s396 = sand.u32 %s83, 1
          %s397 = sand.u32 %s83, 1
          %s398 = smul.addr %s397, 16
          %s399 = scalar_lea.vmem [#allocation7], %s398
          %s400 = smul.u32 8, %s23
          %s401 = sadd.s32 %s21, 1
          %s402 = smul.addr %s400, 3
          %s403 = sadd.s32 %s401, %s402
          %s404 = smul.addr %s20, 24
          %s405 = sadd.s32 %s403, %s404
          %s406 = smul.addr %s405, 2
          %s407 = scalar_lea.vmem %s1, %s406
          // Predicated region
          $region78: #{moe_model_forward.18} parent=76 // pred_check
            _
          $region79: #{moe_model_forward.18} parent=76 // pred_check_branch
            %409 = sbr.rel (0) target = $region81
          $region80: #{moe_model_forward.18} parent=76 // pred_region
            // Predicated region
            $region82: #{moe_model_forward.18} parent=80 // pred_check
              _
            $region83: #{moe_model_forward.18} parent=80 // pred_check_branch
              %411 = sbr.rel target = $region85
            $region84: #{moe_model_forward.18} parent=80 // pred_region
              // Predicated region
              $region97: #{moe_model_forward.18} parent=84 // pred_check
                _
              $region98: #{moe_model_forward.18} parent=84 // pred_check_branch
                %441 = sbr.rel (0) target = $region100
              $region99: #{moe_model_forward.18} parent=84 // pred_region
                loop: start=0, step=1, limit=1
                $region101: #{moe_model_forward.18} parent=99 // loop_pre_header
                  _
                $region102: #{moe_model_forward.18} parent=99 // loop_header
                  %s443 = sphi 0, %s447
                  %p444 = scmp.ge.s32.totalorder %s443, 1
                  %s448 = sphi %s407, %s407
                  %s449 = sphi %s399, %s399
                $region103: #{moe_model_forward.18} parent=99 // loop_header_branch
                  %446 = sbr.rel (%p444) target = $region107
                $region104: #{moe_model_forward.18} parent=99 // loop_body
                  _
                $region105: #{moe_model_forward.18} parent=99 // loop_footer
                  %s447 = sadd.s32 1, %s443
                $region106: #{moe_model_forward.18} parent=99 // loop_footer_branch
                  %442 = sbr.rel target = $region102
                $region107: #{moe_model_forward.18} parent=99 // loop_exit
                  _
                %s451 = ssub.s32 4, 1
                loop: start=0, step=1, limit=1
                $region108: #{moe_model_forward.18} parent=99 // loop_pre_header
                  _
                $region109: #{moe_model_forward.18} parent=99 // loop_header
                  %s453 = sphi 0, %s457
                  %p454 = scmp.ge.s32.totalorder %s453, 1
                  %s458 = sphi %s407, %s407
                  %s459 = sphi %s399, %s399
                $region110: #{moe_model_forward.18} parent=99 // loop_header_branch
                  %456 = sbr.rel (%p454) target = $region114
                $region111: #{moe_model_forward.18} parent=99 // loop_body
                  %v460 = vld [vmem:[%s458] sm:%s451]
                  %461 = vst [vmem:[%s459] sm:%s451] %v460
                  %v462 = vld [vmem:[%s458 + $0x6] sm:%s451]
                  %463 = vst [vmem:[%s459 + $0x2] sm:%s451] %v462
                  %v464 = vld [vmem:[%s458 + $0xc] sm:%s451]
                  %465 = vst [vmem:[%s459 + $0x4] sm:%s451] %v464
                  %v466 = vld [vmem:[%s458 + $0x12] sm:%s451]
                  %467 = vst [vmem:[%s459 + $0x6] sm:%s451] %v466
                  %v468 = vld [vmem:[%s458 + $0x18] sm:%s451]
                  %469 = vst [vmem:[%s459 + $0x8] sm:%s451] %v468
                  %v470 = vld [vmem:[%s458 + $0x1e] sm:%s451]
                  %471 = vst [vmem:[%s459 + $0xa] sm:%s451] %v470
                  %v472 = vld [vmem:[%s458 + $0x24] sm:%s451]
                  %473 = vst [vmem:[%s459 + $0xc] sm:%s451] %v472
                  %v474 = vld [vmem:[%s458 + $0x2a] sm:%s451]
                  %475 = vst [vmem:[%s459 + $0xe] sm:%s451] %v474
                $region112: #{moe_model_forward.18} parent=99 // loop_footer
                  %s457 = sadd.s32 1, %s453
                $region113: #{moe_model_forward.18} parent=99 // loop_footer_branch
                  %452 = sbr.rel target = $region109
                $region114: #{moe_model_forward.18} parent=99 // loop_exit
                  _
              $region100: #{moe_model_forward.18} parent=84 // pred_fallthru
                _
            $region85: #{moe_model_forward.18} parent=80 // pred_fallthru
              _
            // Predicated region
            $region86: #{moe_model_forward.18} parent=80 // pred_check
              _
            $region87: #{moe_model_forward.18} parent=80 // pred_check_branch
              %413 = sbr.rel (0) target = $region89
            $region88: #{moe_model_forward.18} parent=80 // pred_region
              %s415 = ssub.s32 4, 1
              loop: start=0, step=1, limit=1
              $region90: #{moe_model_forward.18} parent=88 // loop_pre_header
                _
              $region91: #{moe_model_forward.18} parent=88 // loop_header
                %s417 = sphi 0, %s421
                %p418 = scmp.ge.s32.totalorder %s417, 1
                %s422 = sphi %s407, %s407
                %s423 = sphi %s399, %s399
              $region92: #{moe_model_forward.18} parent=88 // loop_header_branch
                %420 = sbr.rel (%p418) target = $region96
              $region93: #{moe_model_forward.18} parent=88 // loop_body
                %v424 = vld [vmem:[%s422] sm:%s415]
                %425 = vst [vmem:[%s423] sm:%s415] %v424
                %v426 = vld [vmem:[%s422 + $0x6] sm:%s415]
                %427 = vst [vmem:[%s423 + $0x2] sm:%s415] %v426
                %v428 = vld [vmem:[%s422 + $0xc] sm:%s415]
                %429 = vst [vmem:[%s423 + $0x4] sm:%s415] %v428
                %v430 = vld [vmem:[%s422 + $0x12] sm:%s415]
                %431 = vst [vmem:[%s423 + $0x6] sm:%s415] %v430
                %v432 = vld [vmem:[%s422 + $0x18] sm:%s415]
                %433 = vst [vmem:[%s423 + $0x8] sm:%s415] %v432
                %v434 = vld [vmem:[%s422 + $0x1e] sm:%s415]
                %435 = vst [vmem:[%s423 + $0xa] sm:%s415] %v434
                %v436 = vld [vmem:[%s422 + $0x24] sm:%s415]
                %437 = vst [vmem:[%s423 + $0xc] sm:%s415] %v436
                %v438 = vld [vmem:[%s422 + $0x2a] sm:%s415]
                %439 = vst [vmem:[%s423 + $0xe] sm:%s415] %v438
              $region94: #{moe_model_forward.18} parent=88 // loop_footer
                %s421 = sadd.s32 1, %s417
              $region95: #{moe_model_forward.18} parent=88 // loop_footer_branch
                %416 = sbr.rel target = $region91
              $region96: #{moe_model_forward.18} parent=88 // loop_exit
                _
            $region89: #{moe_model_forward.18} parent=80 // pred_fallthru
              _
          $region81: #{moe_model_forward.18} parent=76 // pred_fallthru
            _
          %476 = vnop
        $region77: #{moe_model_forward.18} parent=31 // pred_fallthru
          _
        // Predicated region
        $region115: #{moe_model_forward.18} parent=31 // pred_check
          %p477 = pneg %p123
        $region116: #{moe_model_forward.18} parent=31 // pred_check_branch
          %479 = sbr.rel (%p477) target = $region118
        $region117: #{moe_model_forward.18} parent=31 // pred_region
          %s480 = sand.u32 %s113, 1
          %s481 = sand.u32 %s113, 1
          %s482 = smul.addr %s481, 16
          %s483 = scalar_lea.vmem [#allocation8], %s482
          %s484 = smul.u32 8, %s23
          %s485 = sadd.s32 %s21, 2
          %s486 = smul.addr %s484, 3
          %s487 = sadd.s32 %s485, %s486
          %s488 = smul.addr %s20, 24
          %s489 = sadd.s32 %s487, %s488
          %s490 = smul.addr %s489, 2
          %s491 = scalar_lea.vmem %s2, %s490
          // Predicated region
          $region119: #{moe_model_forward.18} parent=117 // pred_check
            _
          $region120: #{moe_model_forward.18} parent=117 // pred_check_branch
            %493 = sbr.rel (0) target = $region122
          $region121: #{moe_model_forward.18} parent=117 // pred_region
            // Predicated region
            $region123: #{moe_model_forward.18} parent=121 // pred_check
              _
            $region124: #{moe_model_forward.18} parent=121 // pred_check_branch
              %495 = sbr.rel target = $region126
            $region125: #{moe_model_forward.18} parent=121 // pred_region
              // Predicated region
              $region138: #{moe_model_forward.18} parent=125 // pred_check
                _
              $region139: #{moe_model_forward.18} parent=125 // pred_check_branch
                %525 = sbr.rel (0) target = $region141
              $region140: #{moe_model_forward.18} parent=125 // pred_region
                loop: start=0, step=1, limit=1
                $region142: #{moe_model_forward.18} parent=140 // loop_pre_header
                  _
                $region143: #{moe_model_forward.18} parent=140 // loop_header
                  %s527 = sphi 0, %s531
                  %p528 = scmp.ge.s32.totalorder %s527, 1
                  %s532 = sphi %s491, %s491
                  %s533 = sphi %s483, %s483
                $region144: #{moe_model_forward.18} parent=140 // loop_header_branch
                  %530 = sbr.rel (%p528) target = $region148
                $region145: #{moe_model_forward.18} parent=140 // loop_body
                  _
                $region146: #{moe_model_forward.18} parent=140 // loop_footer
                  %s531 = sadd.s32 1, %s527
                $region147: #{moe_model_forward.18} parent=140 // loop_footer_branch
                  %526 = sbr.rel target = $region143
                $region148: #{moe_model_forward.18} parent=140 // loop_exit
                  _
                %s535 = ssub.s32 4, 1
                loop: start=0, step=1, limit=1
                $region149: #{moe_model_forward.18} parent=140 // loop_pre_header
                  _
                $region150: #{moe_model_forward.18} parent=140 // loop_header
                  %s537 = sphi 0, %s541
                  %p538 = scmp.ge.s32.totalorder %s537, 1
                  %s542 = sphi %s491, %s491
                  %s543 = sphi %s483, %s483
                $region151: #{moe_model_forward.18} parent=140 // loop_header_branch
                  %540 = sbr.rel (%p538) target = $region155
                $region152: #{moe_model_forward.18} parent=140 // loop_body
                  %v544 = vld [vmem:[%s542] sm:%s535]
                  %545 = vst [vmem:[%s543] sm:%s535] %v544
                  %v546 = vld [vmem:[%s542 + $0x6] sm:%s535]
                  %547 = vst [vmem:[%s543 + $0x2] sm:%s535] %v546
                  %v548 = vld [vmem:[%s542 + $0xc] sm:%s535]
                  %549 = vst [vmem:[%s543 + $0x4] sm:%s535] %v548
                  %v550 = vld [vmem:[%s542 + $0x12] sm:%s535]
                  %551 = vst [vmem:[%s543 + $0x6] sm:%s535] %v550
                  %v552 = vld [vmem:[%s542 + $0x18] sm:%s535]
                  %553 = vst [vmem:[%s543 + $0x8] sm:%s535] %v552
                  %v554 = vld [vmem:[%s542 + $0x1e] sm:%s535]
                  %555 = vst [vmem:[%s543 + $0xa] sm:%s535] %v554
                  %v556 = vld [vmem:[%s542 + $0x24] sm:%s535]
                  %557 = vst [vmem:[%s543 + $0xc] sm:%s535] %v556
                  %v558 = vld [vmem:[%s542 + $0x2a] sm:%s535]
                  %559 = vst [vmem:[%s543 + $0xe] sm:%s535] %v558
                $region153: #{moe_model_forward.18} parent=140 // loop_footer
                  %s541 = sadd.s32 1, %s537
                $region154: #{moe_model_forward.18} parent=140 // loop_footer_branch
                  %536 = sbr.rel target = $region150
                $region155: #{moe_model_forward.18} parent=140 // loop_exit
                  _
              $region141: #{moe_model_forward.18} parent=125 // pred_fallthru
                _
            $region126: #{moe_model_forward.18} parent=121 // pred_fallthru
              _
            // Predicated region
            $region127: #{moe_model_forward.18} parent=121 // pred_check
              _
            $region128: #{moe_model_forward.18} parent=121 // pred_check_branch
              %497 = sbr.rel (0) target = $region130
            $region129: #{moe_model_forward.18} parent=121 // pred_region
              %s499 = ssub.s32 4, 1
              loop: start=0, step=1, limit=1
              $region131: #{moe_model_forward.18} parent=129 // loop_pre_header
                _
              $region132: #{moe_model_forward.18} parent=129 // loop_header
                %s501 = sphi 0, %s505
                %p502 = scmp.ge.s32.totalorder %s501, 1
                %s506 = sphi %s491, %s491
                %s507 = sphi %s483, %s483
              $region133: #{moe_model_forward.18} parent=129 // loop_header_branch
                %504 = sbr.rel (%p502) target = $region137
              $region134: #{moe_model_forward.18} parent=129 // loop_body
                %v508 = vld [vmem:[%s506] sm:%s499]
                %509 = vst [vmem:[%s507] sm:%s499] %v508
                %v510 = vld [vmem:[%s506 + $0x6] sm:%s499]
                %511 = vst [vmem:[%s507 + $0x2] sm:%s499] %v510
                %v512 = vld [vmem:[%s506 + $0xc] sm:%s499]
                %513 = vst [vmem:[%s507 + $0x4] sm:%s499] %v512
                %v514 = vld [vmem:[%s506 + $0x12] sm:%s499]
                %515 = vst [vmem:[%s507 + $0x6] sm:%s499] %v514
                %v516 = vld [vmem:[%s506 + $0x18] sm:%s499]
                %517 = vst [vmem:[%s507 + $0x8] sm:%s499] %v516
                %v518 = vld [vmem:[%s506 + $0x1e] sm:%s499]
                %519 = vst [vmem:[%s507 + $0xa] sm:%s499] %v518
                %v520 = vld [vmem:[%s506 + $0x24] sm:%s499]
                %521 = vst [vmem:[%s507 + $0xc] sm:%s499] %v520
                %v522 = vld [vmem:[%s506 + $0x2a] sm:%s499]
                %523 = vst [vmem:[%s507 + $0xe] sm:%s499] %v522
              $region135: #{moe_model_forward.18} parent=129 // loop_footer
                %s505 = sadd.s32 1, %s501
              $region136: #{moe_model_forward.18} parent=129 // loop_footer_branch
                %500 = sbr.rel target = $region132
              $region137: #{moe_model_forward.18} parent=129 // loop_exit
                _
            $region130: #{moe_model_forward.18} parent=121 // pred_fallthru
              _
          $region122: #{moe_model_forward.18} parent=117 // pred_fallthru
            _
          %560 = vnop
        $region118: #{moe_model_forward.18} parent=31 // pred_fallthru
          _
      $region32: #{moe_model_forward.18} parent=5 // pred_fallthru
        _
      %p561 = scmp.le.s32.totalorder 1, %s13
      %p562 = scmp.lt.s32.totalorder %s13, 3
      %p563 = pnand %p561, %p562
      %p564 = pneg %p563
      // Predicated region
      $region156: #{moe_model_forward.18} parent=5 // pred_check
        _
      $region157: #{moe_model_forward.18} parent=5 // pred_check_branch
        %566 = sbr.rel (%p563) target = $region159
      $region158: #{moe_model_forward.18} parent=5 // pred_region
        %s567 = ssub.s32 %s13, 1
        %s568 = sand.u32 %s56, 1
        %s569 = sand.u32 %s56, 1
        %s570 = smul.addr %s569, 16
        %s571 = scalar_lea.vmem [#allocation6], %s570
        // Predicated region
        $region160: #{moe_model_forward.18} parent=158 // pred_check
          %p572 = pneg %p69
        $region161: #{moe_model_forward.18} parent=158 // pred_check_branch
          %574 = sbr.rel (%p572) target = $region163
        $region162: #{moe_model_forward.18} parent=158 // pred_region
          _
        $region163: #{moe_model_forward.18} parent=158 // pred_fallthru
          _
        %s575 = sand.u32 %s86, 1
        %s576 = sand.u32 %s86, 1
        %s577 = smul.addr %s576, 16
        %s578 = scalar_lea.vmem [#allocation7], %s577
        // Predicated region
        $region164: #{moe_model_forward.18} parent=158 // pred_check
          %p579 = pneg %p99
        $region165: #{moe_model_forward.18} parent=158 // pred_check_branch
          %581 = sbr.rel (%p579) target = $region167
        $region166: #{moe_model_forward.18} parent=158 // pred_region
          _
        $region167: #{moe_model_forward.18} parent=158 // pred_fallthru
          _
        %s582 = sand.u32 %s116, 1
        %s583 = sand.u32 %s116, 1
        %s584 = smul.addr %s583, 16
        %s585 = scalar_lea.vmem [#allocation8], %s584
        // Predicated region
        $region168: #{moe_model_forward.18} parent=158 // pred_check
          %p586 = pneg %p129
        $region169: #{moe_model_forward.18} parent=158 // pred_check_branch
          %588 = sbr.rel (%p586) target = $region171
        $region170: #{moe_model_forward.18} parent=158 // pred_region
          _
        $region171: #{moe_model_forward.18} parent=158 // pred_fallthru
          _
        %s589 = sand.u32 %s56, 1
        %s590 = sand.u32 %s56, 1
        %s591 = smul.addr %s590, 16
        %s592 = scalar_lea.vmem [#allocation6], %s591
        %p593 = pneg %p69
        %p594 = pneg %p66
        %s595 = sand.u32 %s86, 1
        %s596 = sand.u32 %s86, 1
        %s597 = smul.addr %s596, 16
        %s598 = scalar_lea.vmem [#allocation7], %s597
        %p599 = pneg %p99
        %p600 = pneg %p96
        %s601 = sand.u32 %s116, 1
        %s602 = sand.u32 %s116, 1
        %s603 = smul.addr %s602, 16
        %s604 = scalar_lea.vmem [#allocation8], %s603
        %p605 = pneg %p129
        %p606 = pneg %p126
        %p607 = scmp.lt.s32.totalorder %s26, 0
        %s608 = scalar_select %p607, %s26, 0
        %s609 = smul.addr %s608, 8
        %s610 = scalar_lea.vmem %s3, %s609
        %p611 = pneg %p155
        %p612 = pneg %p152
        %p613 = scmp.lt.s32.totalorder %s26, 0
        %s614 = scalar_select %p613, %s26, 0
        %s615 = smul.addr %s614, 8
        %s616 = scalar_lea.vmem %s4, %s615
        %p617 = pneg %p181
        %p618 = pneg %p178
        %p619 = scmp.lt.s32.totalorder %s27, 0
        %s620 = scalar_select %p619, %s27, 0
        %s621 = smul.addr %s620, 8
        %s622 = scalar_lea.vmem %s5, %s621
        %p623 = pneg %p207
        %p624 = pneg %p204
        %p625 = scmp.lt.s32.totalorder %s27, 0
        %s626 = scalar_select %p625, %s27, 0
        %s627 = smul.addr %s626, 8
        %s628 = scalar_lea.vmem %s6, %s627
        %p629 = pneg %p233
        %p630 = pneg %p230
        %p631 = pneg %p263
        %p632 = pneg %p260
        %s633 = smul.u32 8, %s26
        %p634 = scmp.lt.s32.totalorder %s24, 1
        %s635 = scalar_select %p634, %s24, 1
        %p636 = scmp.lt.s32.totalorder %s633, 7
        %s637 = scalar_select %p636, %s633, 7
        %p638 = scmp.lt.s32.totalorder %s25, 0
        %s639 = scalar_select %p638, %s25, 0
        %s640 = sadd.s32 %s639, %s637
        %s641 = smul.addr %s635, 8
        %s642 = sadd.s32 %s640, %s641
        %s643 = smul.addr %s642, 2
        %s644 = scalar_lea.vmem %s7, %s643
        %s645 = smul.u32 8, %s26
        %s646 = smul.u32 8, %s27
        %s647 = smul.u32 8, %s27
        %p648 = scmp.lt.s32.totalorder %s26, 0
        %s649 = scalar_select %p648, %s26, 0
        %s650 = smul.addr %s649, 8
        %s651 = scalar_lea.vmem %s3, %s650
        %p652 = scmp.lt.s32.totalorder %s26, 0
        %s653 = scalar_select %p652, %s26, 0
        %s654 = smul.addr %s653, 8
        %s655 = scalar_lea.vmem %s4, %s654
        %p656 = scmp.lt.s32.totalorder %s27, 0
        %s657 = scalar_select %p656, %s27, 0
        %s658 = smul.addr %s657, 8
        %s659 = scalar_lea.vmem %s5, %s658
        %p660 = scmp.lt.s32.totalorder %s27, 0
        %s661 = scalar_select %p660, %s27, 0
        %s662 = smul.addr %s661, 8
        %s663 = scalar_lea.vmem %s6, %s662
        %s664 = smul.u32 8, %s26
        %p665 = scmp.lt.s32.totalorder %s24, 1
        %s666 = scalar_select %p665, %s24, 1
        %p667 = scmp.lt.s32.totalorder %s664, 7
        %s668 = scalar_select %p667, %s664, 7
        %p669 = scmp.lt.s32.totalorder %s25, 0
        %s670 = scalar_select %p669, %s25, 0
        %s671 = sadd.s32 %s670, %s668
        %s672 = smul.addr %s666, 8
        %s673 = sadd.s32 %s671, %s672
        %s674 = smul.addr %s673, 2
        %s675 = scalar_lea.vmem %s7, %s674
        %s676 = smul.u32 8, %s26
        %p678 = scmp.eq.s32.totalorder %s27, 0
        // Predicated region
        $region172: #{moe_model_forward.18} parent=158 // pred_check
          %p679 = pneg %p678
        $region173: #{moe_model_forward.18} parent=158 // pred_check_branch
          %681 = sbr.rel (%p679) target = $region175
        $region174: #{moe_model_forward.18} parent=158 // pred_region
          %vm682 = vcmask 7168
          %683 = vst.msk [vmem:[#allocation3] sm:$0xff] %vm682, -inf
          %684 = vst.msk [vmem:[#allocation3 + $0x8] sm:$0xff] %vm682, -inf
          %685 = vst.msk [vmem:[#allocation3 + $0x10] sm:$0xff] %vm682, -inf
          %686 = vst.msk [vmem:[#allocation3 + $0x18] sm:$0xff] %vm682, -inf
          %687 = vst.msk [vmem:[#allocation4] sm:$0xff] %vm682, 0.0
          %688 = vst.msk [vmem:[#allocation4 + $0x8] sm:$0xff] %vm682, 0.0
          %689 = vst.msk [vmem:[#allocation4 + $0x10] sm:$0xff] %vm682, 0.0
          %690 = vst.msk [vmem:[#allocation4 + $0x18] sm:$0xff] %vm682, 0.0
          %vm691 = vcmask 64512
          %692 = vst.msk [vmem:[#allocation5] sm:$0xff] %vm691, 0.0
          %693 = vst.msk [vmem:[#allocation5 + $0x8] sm:$0xff] %vm691, 0.0
          %694 = vst.msk [vmem:[#allocation5 + $0x10] sm:$0xff] %vm691, 0.0
          %695 = vst.msk [vmem:[#allocation5 + $0x18] sm:$0xff] %vm691, 0.0
          %v696 = vld [vmem:[%s651] sm:$0xff]
          %v697 = vld [vmem:[%s655] sm:$0xff]
          %v698 = vld [vmem:[%s571] sm:$0x3]
          %v699 = vld [vmem:[%s571 + $0x2] sm:$0x3]
          %v700 = vld [vmem:[%s571 + $0x4] sm:$0x3]
          %v701 = vld [vmem:[%s571 + $0x6] sm:$0x3]
          %v702 = vld [vmem:[%s571 + $0x8] sm:$0x3]
          %v703 = vld [vmem:[%s571 + $0xa] sm:$0x3]
          %v704 = vld [vmem:[%s571 + $0xc] sm:$0x3]
          %v705 = vld [vmem:[%s571 + $0xe] sm:$0x3]
          %v706 = vunpack.c.l.bf16 %v698
          %v707 = vunpack.c.l.bf16 %v699
          %v708 = vunpack.c.l.bf16 %v700
          %v709 = vunpack.c.l.bf16 %v701
          %v710 = vunpack.c.l.bf16 %v702
          %v711 = vunpack.c.l.bf16 %v703
          %v712 = vunpack.c.l.bf16 %v704
          %v713 = vunpack.c.l.bf16 %v705
          %v715 = vrot.slane %v696, 4
          %v716 = vrot.slane %v696, 1
          %v717 = vrot.slane %v696, 2
          %v718 = vrot.slane %v696, 3
          %v719 = vrot.slane %v715, 1
          %v720 = vrot.slane %v715, 2
          %v721 = vrot.slane %v715, 3
          %v730 = vmul.f32 %v706, %v696
          %v731 = vmul.f32 %v707, %v716
          %v732 = vmul.f32 %v708, %v717
          %v733 = vmul.f32 %v709, %v718
          %v734 = vmul.f32 %v710, %v715
          %v735 = vmul.f32 %v711, %v719
          %v736 = vmul.f32 %v712, %v720
          %v737 = vmul.f32 %v713, %v721
          %v739 = vrot.slane %v697, 4
          %v740 = vrot.slane %v697, 1
          %v741 = vrot.slane %v697, 2
          %v742 = vrot.slane %v697, 3
          %v743 = vrot.slane %v739, 1
          %v744 = vrot.slane %v739, 2
          %v745 = vrot.slane %v739, 3
          %746 = vrot.lane.b32.xlu0 %v697, 4
          %v747 = vpop.permute.xlu0 %746
          %748 = vrot.lane.b32.xlu0 %v740, 4
          %v749 = vpop.permute.xlu0 %748
          %750 = vrot.lane.b32.xlu0 %v741, 4
          %v751 = vpop.permute.xlu0 %750
          %752 = vrot.lane.b32.xlu0 %v742, 4
          %v753 = vpop.permute.xlu0 %752
          %754 = vrot.lane.b32.xlu0 %v739, 4
          %v755 = vpop.permute.xlu0 %754
          %756 = vrot.lane.b32.xlu0 %v743, 4
          %v757 = vpop.permute.xlu0 %756
          %758 = vrot.lane.b32.xlu0 %v744, 4
          %v759 = vpop.permute.xlu0 %758
          %760 = vrot.lane.b32.xlu0 %v745, 4
          %v761 = vpop.permute.xlu0 %760
          %v770 = vmul.f32 %v706, %v747
          %v771 = vmul.f32 %v707, %v749
          %v772 = vmul.f32 %v708, %v751
          %v773 = vmul.f32 %v709, %v753
          %v774 = vmul.f32 %v710, %v755
          %v775 = vmul.f32 %v711, %v757
          %v776 = vmul.f32 %v712, %v759
          %v777 = vmul.f32 %v713, %v761
          %786 = vrot.lane.b32.xlu0 %v770, 124
          %v787 = vpop.permute.xlu0 %786
          %788 = vrot.lane.b32.xlu0 %v771, 124
          %v789 = vpop.permute.xlu0 %788
          %790 = vrot.lane.b32.xlu0 %v772, 124
          %v791 = vpop.permute.xlu0 %790
          %792 = vrot.lane.b32.xlu0 %v773, 124
          %v793 = vpop.permute.xlu0 %792
          %794 = vrot.lane.b32.xlu0 %v774, 124
          %v795 = vpop.permute.xlu0 %794
          %796 = vrot.lane.b32.xlu0 %v775, 124
          %v797 = vpop.permute.xlu0 %796
          %798 = vrot.lane.b32.xlu0 %v776, 124
          %v799 = vpop.permute.xlu0 %798
          %800 = vrot.lane.b32.xlu0 %v777, 124
          %v801 = vpop.permute.xlu0 %800
          %v810 = vsub.f32 %v730, %v787
          %v811 = vsub.f32 %v731, %v789
          %v812 = vsub.f32 %v732, %v791
          %v813 = vsub.f32 %v733, %v793
          %v814 = vsub.f32 %v734, %v795
          %v815 = vsub.f32 %v735, %v797
          %v816 = vsub.f32 %v736, %v799
          %v817 = vsub.f32 %v737, %v801
          %818 = vrot.lane.b32.xlu0 %v696, 4
          %v819 = vpop.permute.xlu0 %818
          %820 = vrot.lane.b32.xlu0 %v716, 4
          %v821 = vpop.permute.xlu0 %820
          %822 = vrot.lane.b32.xlu0 %v717, 4
          %v823 = vpop.permute.xlu0 %822
          %824 = vrot.lane.b32.xlu0 %v718, 4
          %v825 = vpop.permute.xlu0 %824
          %826 = vrot.lane.b32.xlu0 %v715, 4
          %v827 = vpop.permute.xlu0 %826
          %828 = vrot.lane.b32.xlu0 %v719, 4
          %v829 = vpop.permute.xlu0 %828
          %830 = vrot.lane.b32.xlu0 %v720, 4
          %v831 = vpop.permute.xlu0 %830
          %832 = vrot.lane.b32.xlu0 %v721, 4
          %v833 = vpop.permute.xlu0 %832
          %v842 = vmul.f32 %v706, %v819
          %v843 = vmul.f32 %v707, %v821
          %v844 = vmul.f32 %v708, %v823
          %v845 = vmul.f32 %v709, %v825
          %v846 = vmul.f32 %v710, %v827
          %v847 = vmul.f32 %v711, %v829
          %v848 = vmul.f32 %v712, %v831
          %v849 = vmul.f32 %v713, %v833
          %v858 = vmul.f32 %v706, %v697
          %v859 = vmul.f32 %v707, %v740
          %v860 = vmul.f32 %v708, %v741
          %v861 = vmul.f32 %v709, %v742
          %v862 = vmul.f32 %v710, %v739
          %v863 = vmul.f32 %v711, %v743
          %v864 = vmul.f32 %v712, %v744
          %v865 = vmul.f32 %v713, %v745
          %874 = vrot.lane.b32.xlu0 %v858, 4
          %v875 = vpop.permute.xlu0 %874
          %876 = vrot.lane.b32.xlu0 %v859, 4
          %v877 = vpop.permute.xlu0 %876
          %878 = vrot.lane.b32.xlu0 %v860, 4
          %v879 = vpop.permute.xlu0 %878
          %880 = vrot.lane.b32.xlu0 %v861, 4
          %v881 = vpop.permute.xlu0 %880
          %882 = vrot.lane.b32.xlu0 %v862, 4
          %v883 = vpop.permute.xlu0 %882
          %884 = vrot.lane.b32.xlu0 %v863, 4
          %v885 = vpop.permute.xlu0 %884
          %886 = vrot.lane.b32.xlu0 %v864, 4
          %v887 = vpop.permute.xlu0 %886
          %888 = vrot.lane.b32.xlu0 %v865, 4
          %v889 = vpop.permute.xlu0 %888
          %v898 = vadd.f32 %v842, %v875
          %v899 = vadd.f32 %v843, %v877
          %v900 = vadd.f32 %v844, %v879
          %v901 = vadd.f32 %v845, %v881
          %v902 = vadd.f32 %v846, %v883
          %v903 = vadd.f32 %v847, %v885
          %v904 = vadd.f32 %v848, %v887
          %v905 = vadd.f32 %v849, %v889
          %v914 = vperm.slane %v810, 0
          %v915 = vperm.slane %v811, 0
          %v916 = vperm.slane %v812, 0
          %v917 = vperm.slane %v813, 0
          %v918 = vperm.slane %v814, 0
          %v919 = vperm.slane %v815, 0
          %v920 = vperm.slane %v816, 0
          %v921 = vperm.slane %v817, 0
          %vm922 = vcmask 1041409
          %v923 = vsel %vm922, %v915, %v914
          %vm924 = vcmask 1042434
          %v925 = vsel %vm924, %v916, %v923
          %vm926 = vcmask 1043459
          %v927 = vsel %vm926, %v917, %v925
          %vm928 = vcmask 1044484
          %v929 = vsel %vm928, %v918, %v927
          %vm930 = vcmask 1045509
          %v931 = vsel %vm930, %v919, %v929
          %vm932 = vcmask 1046534
          %v933 = vsel %vm932, %v920, %v931
          %vm934 = vcmask 1047559
          %v935 = vsel %vm934, %v921, %v933
          %v945 = vperm.slane %v898, 0
          %v946 = vperm.slane %v899, 0
          %v947 = vperm.slane %v900, 0
          %v948 = vperm.slane %v901, 0
          %v949 = vperm.slane %v902, 0
          %v950 = vperm.slane %v903, 0
          %v951 = vperm.slane %v904, 0
          %v952 = vperm.slane %v905, 0
          %v953 = vsel %vm922, %v946, %v945
          %v954 = vsel %vm924, %v947, %v953
          %v955 = vsel %vm926, %v948, %v954
          %v956 = vsel %vm928, %v949, %v955
          %v957 = vsel %vm930, %v950, %v956
          %v958 = vsel %vm932, %v951, %v957
          %v959 = vsel %vm934, %v952, %v958
          %vm961 = vcmask 31744
          %v962 = vsel %vm961, %v935, %v959
          %v963 = vpack.c.bf16 %v962, %v962
          %vm964 = vcmask 60416
          %965 = vst.msk [vmem:[#allocation2] sm:$0xf] %vm964, %v963
          %v966 = vrot.slane %v696, 7
          %v967 = vrot.slane %v715, 7
          %v970 = vmul.f32 %v706, %v966
          %v971 = vmul.f32 %v707, %v696
          %v972 = vmul.f32 %v708, %v716
          %v973 = vmul.f32 %v709, %v717
          %v974 = vmul.f32 %v710, %v967
          %v975 = vmul.f32 %v711, %v715
          %v976 = vmul.f32 %v712, %v719
          %v977 = vmul.f32 %v713, %v720
          %v978 = vrot.slane %v697, 7
          %v979 = vrot.slane %v739, 7
          %980 = vrot.lane.b32.xlu0 %v978, 4
          %v981 = vpop.permute.xlu0 %980
          %982 = vrot.lane.b32.xlu0 %v979, 4
          %v983 = vpop.permute.xlu0 %982
          %v986 = vmul.f32 %v706, %v981
          %v987 = vmul.f32 %v707, %v747
          %v988 = vmul.f32 %v708, %v749
          %v989 = vmul.f32 %v709, %v751
          %v990 = vmul.f32 %v710, %v983
          %v991 = vmul.f32 %v711, %v755
          %v992 = vmul.f32 %v712, %v757
          %v993 = vmul.f32 %v713, %v759
          %1002 = vrot.lane.b32.xlu0 %v986, 124
          %v1003 = vpop.permute.xlu0 %1002
          %1004 = vrot.lane.b32.xlu0 %v987, 124
          %v1005 = vpop.permute.xlu0 %1004
          %1006 = vrot.lane.b32.xlu0 %v988, 124
          %v1007 = vpop.permute.xlu0 %1006
          %1008 = vrot.lane.b32.xlu0 %v989, 124
          %v1009 = vpop.permute.xlu0 %1008
          %1010 = vrot.lane.b32.xlu0 %v990, 124
          %v1011 = vpop.permute.xlu0 %1010
          %1012 = vrot.lane.b32.xlu0 %v991, 124
          %v1013 = vpop.permute.xlu0 %1012
          %1014 = vrot.lane.b32.xlu0 %v992, 124
          %v1015 = vpop.permute.xlu0 %1014
          %1016 = vrot.lane.b32.xlu0 %v993, 124
          %v1017 = vpop.permute.xlu0 %1016
          %v1026 = vsub.f32 %v970, %v1003
          %v1027 = vsub.f32 %v971, %v1005
          %v1028 = vsub.f32 %v972, %v1007
          %v1029 = vsub.f32 %v973, %v1009
          %v1030 = vsub.f32 %v974, %v1011
          %v1031 = vsub.f32 %v975, %v1013
          %v1032 = vsub.f32 %v976, %v1015
          %v1033 = vsub.f32 %v977, %v1017
          %1034 = vrot.lane.b32.xlu0 %v966, 4
          %v1035 = vpop.permute.xlu0 %1034
          %1036 = vrot.lane.b32.xlu0 %v967, 4
          %v1037 = vpop.permute.xlu0 %1036
          %v1040 = vmul.f32 %v706, %v1035
          %v1041 = vmul.f32 %v707, %v819
          %v1042 = vmul.f32 %v708, %v821
          %v1043 = vmul.f32 %v709, %v823
          %v1044 = vmul.f32 %v710, %v1037
          %v1045 = vmul.f32 %v711, %v827
          %v1046 = vmul.f32 %v712, %v829
          %v1047 = vmul.f32 %v713, %v831
          %v1050 = vmul.f32 %v706, %v978
          %v1051 = vmul.f32 %v707, %v697
          %v1052 = vmul.f32 %v708, %v740
          %v1053 = vmul.f32 %v709, %v741
          %v1054 = vmul.f32 %v710, %v979
          %v1055 = vmul.f32 %v711, %v739
          %v1056 = vmul.f32 %v712, %v743
          %v1057 = vmul.f32 %v713, %v744
          %1066 = vrot.lane.b32.xlu0 %v1050, 4
          %v1067 = vpop.permute.xlu0 %1066
          %1068 = vrot.lane.b32.xlu0 %v1051, 4
          %v1069 = vpop.permute.xlu0 %1068
          %1070 = vrot.lane.b32.xlu0 %v1052, 4
          %v1071 = vpop.permute.xlu0 %1070
          %1072 = vrot.lane.b32.xlu0 %v1053, 4
          %v1073 = vpop.permute.xlu0 %1072
          %1074 = vrot.lane.b32.xlu0 %v1054, 4
          %v1075 = vpop.permute.xlu0 %1074
          %1076 = vrot.lane.b32.xlu0 %v1055, 4
          %v1077 = vpop.permute.xlu0 %1076
          %1078 = vrot.lane.b32.xlu0 %v1056, 4
          %v1079 = vpop.permute.xlu0 %1078
          %1080 = vrot.lane.b32.xlu0 %v1057, 4
          %v1081 = vpop.permute.xlu0 %1080
          %v1090 = vadd.f32 %v1040, %v1067
          %v1091 = vadd.f32 %v1041, %v1069
          %v1092 = vadd.f32 %v1042, %v1071
          %v1093 = vadd.f32 %v1043, %v1073
          %v1094 = vadd.f32 %v1044, %v1075
          %v1095 = vadd.f32 %v1045, %v1077
          %v1096 = vadd.f32 %v1046, %v1079
          %v1097 = vadd.f32 %v1047, %v1081
          %v1106 = vperm.slane %v1026, 1
          %v1107 = vperm.slane %v1027, 1
          %v1108 = vperm.slane %v1028, 1
          %v1109 = vperm.slane %v1029, 1
          %v1110 = vperm.slane %v1030, 1
          %v1111 = vperm.slane %v1031, 1
          %v1112 = vperm.slane %v1032, 1
          %v1113 = vperm.slane %v1033, 1
          %v1114 = vsel %vm924, %v1107, %v1106
          %v1115 = vsel %vm926, %v1108, %v1114
          %v1116 = vsel %vm928, %v1109, %v1115
          %v1117 = vsel %vm930, %v1110, %v1116
          %v1118 = vsel %vm932, %v1111, %v1117
          %v1119 = vsel %vm934, %v1112, %v1118
          %v1130 = vperm.slane %v1090, 1
          %v1131 = vperm.slane %v1091, 1
          %v1132 = vperm.slane %v1092, 1
          %v1133 = vperm.slane %v1093, 1
          %v1134 = vperm.slane %v1094, 1
          %v1135 = vperm.slane %v1095, 1
          %v1136 = vperm.slane %v1096, 1
          %v1137 = vperm.slane %v1097, 1
          %v1138 = vsel %vm924, %v1131, %v1130
          %v1139 = vsel %vm926, %v1132, %v1138
          %v1140 = vsel %vm928, %v1133, %v1139
          %v1141 = vsel %vm930, %v1134, %v1140
          %v1142 = vsel %vm932, %v1135, %v1141
          %v1143 = vsel %vm934, %v1136, %v1142
          %v1146 = vsel %vm961, %v1119, %v1143
          %v1147 = vsel %vm961, %v1113, %v1137
          %v1148 = vpack.c.bf16 %v1146, %v1146
          %v1149 = vpack.c.bf16 %v1147, %v1147
          %vm1150 = vsmask.f32 3328
          %vm1151 = vsmask.f32 7440
          %vm1152 = vmor %vm1150, %vm1151
          %v1154 = vshrl.u32 %v1148, 16
          %v1156 = vrot.slane %v1154, 4
          %v1157 = vshll.u32 %v1148, 16
          %v1159 = vrot.slane %v1157, 5
          %v1160 = vor.u32 %v1156, %v1159
          %v1161 = vrot.slane %v1160, 4
          %v1163 = vshll.u32 %v1149, 16
          %v1165 = vrot.slane %v1163, 5
          %v1166 = vsel %vm1152, %v1161, %v1165
          %s1168 = scalar_lea.vmem [#allocation2], 4
          %1169 = vst.msk [vmem:[%s1168] sm:$0xf] %vm964, %v1166
          %v1170 = vrot.slane %v696, 6
          %v1171 = vrot.slane %v715, 6
          %v1174 = vmul.f32 %v706, %v1170
          %v1175 = vmul.f32 %v707, %v966
          %v1176 = vmul.f32 %v708, %v696
          %v1177 = vmul.f32 %v709, %v716
          %v1178 = vmul.f32 %v710, %v1171
          %v1179 = vmul.f32 %v711, %v967
          %v1180 = vmul.f32 %v712, %v715
          %v1181 = vmul.f32 %v713, %v719
          %v1182 = vrot.slane %v697, 6
          %v1183 = vrot.slane %v739, 6
          %1184 = vrot.lane.b32.xlu0 %v1182, 4
          %v1185 = vpop.permute.xlu0 %1184
          %1186 = vrot.lane.b32.xlu0 %v1183, 4
          %v1187 = vpop.permute.xlu0 %1186
          %v1190 = vmul.f32 %v706, %v1185
          %v1191 = vmul.f32 %v707, %v981
          %v1192 = vmul.f32 %v708, %v747
          %v1193 = vmul.f32 %v709, %v749
          %v1194 = vmul.f32 %v710, %v1187
          %v1195 = vmul.f32 %v711, %v983
          %v1196 = vmul.f32 %v712, %v755
          %v1197 = vmul.f32 %v713, %v757
          %1206 = vrot.lane.b32.xlu0 %v1190, 124
          %v1207 = vpop.permute.xlu0 %1206
          %1208 = vrot.lane.b32.xlu0 %v1191, 124
          %v1209 = vpop.permute.xlu0 %1208
          %1210 = vrot.lane.b32.xlu0 %v1192, 124
          %v1211 = vpop.permute.xlu0 %1210
          %1212 = vrot.lane.b32.xlu0 %v1193, 124
          %v1213 = vpop.permute.xlu0 %1212
          %1214 = vrot.lane.b32.xlu0 %v1194, 124
          %v1215 = vpop.permute.xlu0 %1214
          %1216 = vrot.lane.b32.xlu0 %v1195, 124
          %v1217 = vpop.permute.xlu0 %1216
          %1218 = vrot.lane.b32.xlu0 %v1196, 124
          %v1219 = vpop.permute.xlu0 %1218
          %1220 = vrot.lane.b32.xlu0 %v1197, 124
          %v1221 = vpop.permute.xlu0 %1220
          %v1230 = vsub.f32 %v1174, %v1207
          %v1231 = vsub.f32 %v1175, %v1209
          %v1232 = vsub.f32 %v1176, %v1211
          %v1233 = vsub.f32 %v1177, %v1213
          %v1234 = vsub.f32 %v1178, %v1215
          %v1235 = vsub.f32 %v1179, %v1217
          %v1236 = vsub.f32 %v1180, %v1219
          %v1237 = vsub.f32 %v1181, %v1221
          %1238 = vrot.lane.b32.xlu0 %v1170, 4
          %v1239 = vpop.permute.xlu0 %1238
          %1240 = vrot.lane.b32.xlu0 %v1171, 4
          %v1241 = vpop.permute.xlu0 %1240
          %v1244 = vmul.f32 %v706, %v1239
          %v1245 = vmul.f32 %v707, %v1035
          %v1246 = vmul.f32 %v708, %v819
          %v1247 = vmul.f32 %v709, %v821
          %v1248 = vmul.f32 %v710, %v1241
          %v1249 = vmul.f32 %v711, %v1037
          %v1250 = vmul.f32 %v712, %v827
          %v1251 = vmul.f32 %v713, %v829
          %v1254 = vmul.f32 %v706, %v1182
          %v1255 = vmul.f32 %v707, %v978
          %v1256 = vmul.f32 %v708, %v697
          %v1257 = vmul.f32 %v709, %v740
          %v1258 = vmul.f32 %v710, %v1183
          %v1259 = vmul.f32 %v711, %v979
          %v1260 = vmul.f32 %v712, %v739
          %v1261 = vmul.f32 %v713, %v743
          %1270 = vrot.lane.b32.xlu0 %v1254, 4
          %v1271 = vpop.permute.xlu0 %1270
          %1272 = vrot.lane.b32.xlu0 %v1255, 4
          %v1273 = vpop.permute.xlu0 %1272
          %1274 = vrot.lane.b32.xlu0 %v1256, 4
          %v1275 = vpop.permute.xlu0 %1274
          %1276 = vrot.lane.b32.xlu0 %v1257, 4
          %v1277 = vpop.permute.xlu0 %1276
          %1278 = vrot.lane.b32.xlu0 %v1258, 4
          %v1279 = vpop.permute.xlu0 %1278
          %1280 = vrot.lane.b32.xlu0 %v1259, 4
          %v1281 = vpop.permute.xlu0 %1280
          %1282 = vrot.lane.b32.xlu0 %v1260, 4
          %v1283 = vpop.permute.xlu0 %1282
          %1284 = vrot.lane.b32.xlu0 %v1261, 4
          %v1285 = vpop.permute.xlu0 %1284
          %v1294 = vadd.f32 %v1244, %v1271
          %v1295 = vadd.f32 %v1245, %v1273
          %v1296 = vadd.f32 %v1246, %v1275
          %v1297 = vadd.f32 %v1247, %v1277
          %v1298 = vadd.f32 %v1248, %v1279
          %v1299 = vadd.f32 %v1249, %v1281
          %v1300 = vadd.f32 %v1250, %v1283
          %v1301 = vadd.f32 %v1251, %v1285
          %v1310 = vperm.slane %v1230, 2
          %v1311 = vperm.slane %v1231, 2
          %v1312 = vperm.slane %v1232, 2
          %v1313 = vperm.slane %v1233, 2
          %v1314 = vperm.slane %v1234, 2
          %v1315 = vperm.slane %v1235, 2
          %v1316 = vperm.slane %v1236, 2
          %v1317 = vperm.slane %v1237, 2
          %v1318 = vsel %vm926, %v1311, %v1310
          %v1319 = vsel %vm928, %v1312, %v1318
          %v1320 = vsel %vm930, %v1313, %v1319
          %v1321 = vsel %vm932, %v1314, %v1320
          %v1322 = vsel %vm934, %v1315, %v1321
          %v1323 = vsel %vm922, %v1317, %v1316
          %v1334 = vperm.slane %v1294, 2
          %v1335 = vperm.slane %v1295, 2
          %v1336 = vperm.slane %v1296, 2
          %v1337 = vperm.slane %v1297, 2
          %v1338 = vperm.slane %v1298, 2
          %v1339 = vperm.slane %v1299, 2
          %v1340 = vperm.slane %v1300, 2
          %v1341 = vperm.slane %v1301, 2
          %v1342 = vsel %vm926, %v1335, %v1334
          %v1343 = vsel %vm928, %v1336, %v1342
          %v1344 = vsel %vm930, %v1337, %v1343
          %v1345 = vsel %vm932, %v1338, %v1344
          %v1346 = vsel %vm934, %v1339, %v1345
          %v1347 = vsel %vm922, %v1341, %v1340
          %v1350 = vsel %vm961, %v1322, %v1346
          %v1351 = vsel %vm961, %v1323, %v1347
          %v1352 = vpack.c.bf16 %v1350, %v1350
          %v1353 = vpack.c.bf16 %v1351, %v1351
          %vm1356 = vcmask 1042432
          %vm1357 = vcmask 1046532
          %vm1358 = vmor %vm1356, %vm1357
          %v1359 = vrot.slane %v1352, 5
          %v1360 = vrot.slane %v1359, 4
          %v1361 = vrot.slane %v1353, 5
          %v1362 = vsel %vm1358, %v1360, %v1361
          %s1364 = scalar_lea.vmem [#allocation2], 8
          %1365 = vst.msk [vmem:[%s1364] sm:$0xf] %vm964, %v1362
          %v1366 = vrot.slane %v696, 5
          %v1367 = vrot.slane %v715, 5
          %v1370 = vmul.f32 %v706, %v1366
          %v1371 = vmul.f32 %v707, %v1170
          %v1372 = vmul.f32 %v708, %v966
          %v1373 = vmul.f32 %v709, %v696
          %v1374 = vmul.f32 %v710, %v1367
          %v1375 = vmul.f32 %v711, %v1171
          %v1376 = vmul.f32 %v712, %v967
          %v1377 = vmul.f32 %v713, %v715
          %v1378 = vrot.slane %v697, 5
          %v1379 = vrot.slane %v739, 5
          %1380 = vrot.lane.b32.xlu0 %v1378, 4
          %v1381 = vpop.permute.xlu0 %1380
          %1382 = vrot.lane.b32.xlu0 %v1379, 4
          %v1383 = vpop.permute.xlu0 %1382
          %v1386 = vmul.f32 %v706, %v1381
          %v1387 = vmul.f32 %v707, %v1185
          %v1388 = vmul.f32 %v708, %v981
          %v1389 = vmul.f32 %v709, %v747
          %v1390 = vmul.f32 %v710, %v1383
          %v1391 = vmul.f32 %v711, %v1187
          %v1392 = vmul.f32 %v712, %v983
          %v1393 = vmul.f32 %v713, %v755
          %1402 = vrot.lane.b32.xlu0 %v1386, 124
          %v1403 = vpop.permute.xlu0 %1402
          %1404 = vrot.lane.b32.xlu0 %v1387, 124
          %v1405 = vpop.permute.xlu0 %1404
          %1406 = vrot.lane.b32.xlu0 %v1388, 124
          %v1407 = vpop.permute.xlu0 %1406
          %1408 = vrot.lane.b32.xlu0 %v1389, 124
          %v1409 = vpop.permute.xlu0 %1408
          %1410 = vrot.lane.b32.xlu0 %v1390, 124
          %v1411 = vpop.permute.xlu0 %1410
          %1412 = vrot.lane.b32.xlu0 %v1391, 124
          %v1413 = vpop.permute.xlu0 %1412
          %1414 = vrot.lane.b32.xlu0 %v1392, 124
          %v1415 = vpop.permute.xlu0 %1414
          %1416 = vrot.lane.b32.xlu0 %v1393, 124
          %v1417 = vpop.permute.xlu0 %1416
          %v1426 = vsub.f32 %v1370, %v1403
          %v1427 = vsub.f32 %v1371, %v1405
          %v1428 = vsub.f32 %v1372, %v1407
          %v1429 = vsub.f32 %v1373, %v1409
          %v1430 = vsub.f32 %v1374, %v1411
          %v1431 = vsub.f32 %v1375, %v1413
          %v1432 = vsub.f32 %v1376, %v1415
          %v1433 = vsub.f32 %v1377, %v1417
          %1434 = vrot.lane.b32.xlu0 %v1366, 4
          %v1435 = vpop.permute.xlu0 %1434
          %1436 = vrot.lane.b32.xlu0 %v1367, 4
          %v1437 = vpop.permute.xlu0 %1436
          %v1440 = vmul.f32 %v706, %v1435
          %v1441 = vmul.f32 %v707, %v1239
          %v1442 = vmul.f32 %v708, %v1035
          %v1443 = vmul.f32 %v709, %v819
          %v1444 = vmul.f32 %v710, %v1437
          %v1445 = vmul.f32 %v711, %v1241
          %v1446 = vmul.f32 %v712, %v1037
          %v1447 = vmul.f32 %v713, %v827
          %v1450 = vmul.f32 %v706, %v1378
          %v1451 = vmul.f32 %v707, %v1182
          %v1452 = vmul.f32 %v708, %v978
          %v1453 = vmul.f32 %v709, %v697
          %v1454 = vmul.f32 %v710, %v1379
          %v1455 = vmul.f32 %v711, %v1183
          %v1456 = vmul.f32 %v712, %v979
          %v1457 = vmul.f32 %v713, %v739
          %1466 = vrot.lane.b32.xlu0 %v1450, 4
          %v1467 = vpop.permute.xlu0 %1466
          %1468 = vrot.lane.b32.xlu0 %v1451, 4
          %v1469 = vpop.permute.xlu0 %1468
          %1470 = vrot.lane.b32.xlu0 %v1452, 4
          %v1471 = vpop.permute.xlu0 %1470
          %1472 = vrot.lane.b32.xlu0 %v1453, 4
          %v1473 = vpop.permute.xlu0 %1472
          %1474 = vrot.lane.b32.xlu0 %v1454, 4
          %v1475 = vpop.permute.xlu0 %1474
          %1476 = vrot.lane.b32.xlu0 %v1455, 4
          %v1477 = vpop.permute.xlu0 %1476
          %1478 = vrot.lane.b32.xlu0 %v1456, 4
          %v1479 = vpop.permute.xlu0 %1478
          %1480 = vrot.lane.b32.xlu0 %v1457, 4
          %v1481 = vpop.permute.xlu0 %1480
          %v1490 = vadd.f32 %v1440, %v1467
          %v1491 = vadd.f32 %v1441, %v1469
          %v1492 = vadd.f32 %v1442, %v1471
          %v1493 = vadd.f32 %v1443, %v1473
          %v1494 = vadd.f32 %v1444, %v1475
          %v1495 = vadd.f32 %v1445, %v1477
          %v1496 = vadd.f32 %v1446, %v1479
          %v1497 = vadd.f32 %v1447, %v1481
          %v1506 = vperm.slane %v1426, 3
          %v1507 = vperm.slane %v1427, 3
          %v1508 = vperm.slane %v1428, 3
          %v1509 = vperm.slane %v1429, 3
          %v1510 = vperm.slane %v1430, 3
          %v1511 = vperm.slane %v1431, 3
          %v1512 = vperm.slane %v1432, 3
          %v1513 = vperm.slane %v1433, 3
          %v1514 = vsel %vm928, %v1507, %v1506
          %v1515 = vsel %vm930, %v1508, %v1514
          %v1516 = vsel %vm932, %v1509, %v1515
          %v1517 = vsel %vm934, %v1510, %v1516
          %v1518 = vsel %vm922, %v1512, %v1511
          %v1519 = vsel %vm924, %v1513, %v1518
          %v1530 = vperm.slane %v1490, 3
          %v1531 = vperm.slane %v1491, 3
          %v1532 = vperm.slane %v1492, 3
          %v1533 = vperm.slane %v1493, 3
          %v1534 = vperm.slane %v1494, 3
          %v1535 = vperm.slane %v1495, 3
          %v1536 = vperm.slane %v1496, 3
          %v1537 = vperm.slane %v1497, 3
          %v1538 = vsel %vm928, %v1531, %v1530
          %v1539 = vsel %vm930, %v1532, %v1538
          %v1540 = vsel %vm932, %v1533, %v1539
          %v1541 = vsel %vm934, %v1534, %v1540
          %v1542 = vsel %vm922, %v1536, %v1535
          %v1543 = vsel %vm924, %v1537, %v1542
          %v1546 = vsel %vm961, %v1517, %v1541
          %v1547 = vsel %vm961, %v1519, %v1543
          %v1548 = vpack.c.bf16 %v1546, %v1546
          %v1549 = vpack.c.bf16 %v1547, %v1547
          %vm1550 = vsmask.f32 2304
          %vm1551 = vsmask.f32 6416
          %vm1552 = vmor %vm1550, %vm1551
          %v1554 = vshrl.u32 %v1548, 16
          %v1556 = vrot.slane %v1554, 5
          %v1557 = vshll.u32 %v1548, 16
          %v1559 = vrot.slane %v1557, 6
          %v1560 = vor.u32 %v1556, %v1559
          %v1561 = vrot.slane %v1560, 4
          %v1563 = vshrl.u32 %v1549, 16
          %v1565 = vrot.slane %v1563, 5
          %v1566 = vshll.u32 %v1549, 16
          %v1568 = vrot.slane %v1566, 6
          %v1569 = vor.u32 %v1565, %v1568
          %v1570 = vsel %vm1552, %v1561, %v1569
          %s1572 = scalar_lea.vmem [#allocation2], 12
          %1573 = vst.msk [vmem:[%s1572] sm:$0xf] %vm964, %v1570
        $region175: #{moe_model_forward.18} parent=158 // pred_fallthru
          _
        %v1574 = vld [vmem:[%s659] sm:$0xff]
        %v1575 = vld [vmem:[%s663] sm:$0xff]
        %v1576 = vld [vmem:[%s578] sm:$0x3]
        %v1577 = vld [vmem:[%s578 + $0x2] sm:$0x3]
        %v1578 = vld [vmem:[%s578 + $0x4] sm:$0x3]
        %v1579 = vld [vmem:[%s578 + $0x6] sm:$0x3]
        %v1580 = vld [vmem:[%s578 + $0x8] sm:$0x3]
        %v1581 = vld [vmem:[%s578 + $0xa] sm:$0x3]
        %v1582 = vld [vmem:[%s578 + $0xc] sm:$0x3]
        %v1583 = vld [vmem:[%s578 + $0xe] sm:$0x3]
        %v1584 = vld [vmem:[%s585] sm:$0x3]
        %v1585 = vld [vmem:[%s585 + $0x2] sm:$0x3]
        %v1586 = vld [vmem:[%s585 + $0x4] sm:$0x3]
        %v1587 = vld [vmem:[%s585 + $0x6] sm:$0x3]
        %v1588 = vld [vmem:[%s585 + $0x8] sm:$0x3]
        %v1589 = vld [vmem:[%s585 + $0xa] sm:$0x3]
        %v1590 = vld [vmem:[%s585 + $0xc] sm:$0x3]
        %v1591 = vld [vmem:[%s585 + $0xe] sm:$0x3]
        %v1592 = vunpack.c.l.bf16 %v1576
        %v1593 = vunpack.c.l.bf16 %v1577
        %v1594 = vunpack.c.l.bf16 %v1578
        %v1595 = vunpack.c.l.bf16 %v1579
        %v1596 = vunpack.c.l.bf16 %v1580
        %v1597 = vunpack.c.l.bf16 %v1581
        %v1598 = vunpack.c.l.bf16 %v1582
        %v1599 = vunpack.c.l.bf16 %v1583
        %v1601 = vrot.slane %v1574, 4
        %v1602 = vrot.slane %v1574, 1
        %v1603 = vrot.slane %v1574, 2
        %v1604 = vrot.slane %v1574, 3
        %v1605 = vrot.slane %v1601, 1
        %v1606 = vrot.slane %v1601, 2
        %v1607 = vrot.slane %v1601, 3
        %v1616 = vmul.f32 %v1592, %v1574
        %v1617 = vmul.f32 %v1593, %v1602
        %v1618 = vmul.f32 %v1594, %v1603
        %v1619 = vmul.f32 %v1595, %v1604
        %v1620 = vmul.f32 %v1596, %v1601
        %v1621 = vmul.f32 %v1597, %v1605
        %v1622 = vmul.f32 %v1598, %v1606
        %v1623 = vmul.f32 %v1599, %v1607
        %v1625 = vrot.slane %v1575, 4
        %v1626 = vrot.slane %v1575, 1
        %v1627 = vrot.slane %v1575, 2
        %v1628 = vrot.slane %v1575, 3
        %v1629 = vrot.slane %v1625, 1
        %v1630 = vrot.slane %v1625, 2
        %v1631 = vrot.slane %v1625, 3
        %1632 = vrot.lane.b32.xlu0 %v1575, 4
        %v1633 = vpop.permute.xlu0 %1632
        %1634 = vrot.lane.b32.xlu0 %v1626, 4
        %v1635 = vpop.permute.xlu0 %1634
        %1636 = vrot.lane.b32.xlu0 %v1627, 4
        %v1637 = vpop.permute.xlu0 %1636
        %1638 = vrot.lane.b32.xlu0 %v1628, 4
        %v1639 = vpop.permute.xlu0 %1638
        %1640 = vrot.lane.b32.xlu0 %v1625, 4
        %v1641 = vpop.permute.xlu0 %1640
        %1642 = vrot.lane.b32.xlu0 %v1629, 4
        %v1643 = vpop.permute.xlu0 %1642
        %1644 = vrot.lane.b32.xlu0 %v1630, 4
        %v1645 = vpop.permute.xlu0 %1644
        %1646 = vrot.lane.b32.xlu0 %v1631, 4
        %v1647 = vpop.permute.xlu0 %1646
        %v1656 = vmul.f32 %v1592, %v1633
        %v1657 = vmul.f32 %v1593, %v1635
        %v1658 = vmul.f32 %v1594, %v1637
        %v1659 = vmul.f32 %v1595, %v1639
        %v1660 = vmul.f32 %v1596, %v1641
        %v1661 = vmul.f32 %v1597, %v1643
        %v1662 = vmul.f32 %v1598, %v1645
        %v1663 = vmul.f32 %v1599, %v1647
        %1672 = vrot.lane.b32.xlu0 %v1656, 124
        %v1673 = vpop.permute.xlu0 %1672
        %1674 = vrot.lane.b32.xlu0 %v1657, 124
        %v1675 = vpop.permute.xlu0 %1674
        %1676 = vrot.lane.b32.xlu0 %v1658, 124
        %v1677 = vpop.permute.xlu0 %1676
        %1678 = vrot.lane.b32.xlu0 %v1659, 124
        %v1679 = vpop.permute.xlu0 %1678
        %1680 = vrot.lane.b32.xlu0 %v1660, 124
        %v1681 = vpop.permute.xlu0 %1680
        %1682 = vrot.lane.b32.xlu0 %v1661, 124
        %v1683 = vpop.permute.xlu0 %1682
        %1684 = vrot.lane.b32.xlu0 %v1662, 124
        %v1685 = vpop.permute.xlu0 %1684
        %1686 = vrot.lane.b32.xlu0 %v1663, 124
        %v1687 = vpop.permute.xlu0 %1686
        %v1696 = vsub.f32 %v1616, %v1673
        %v1697 = vsub.f32 %v1617, %v1675
        %v1698 = vsub.f32 %v1618, %v1677
        %v1699 = vsub.f32 %v1619, %v1679
        %v1700 = vsub.f32 %v1620, %v1681
        %v1701 = vsub.f32 %v1621, %v1683
        %v1702 = vsub.f32 %v1622, %v1685
        %v1703 = vsub.f32 %v1623, %v1687
        %1704 = vrot.lane.b32.xlu0 %v1574, 4
        %v1705 = vpop.permute.xlu0 %1704
        %1706 = vrot.lane.b32.xlu0 %v1602, 4
        %v1707 = vpop.permute.xlu0 %1706
        %1708 = vrot.lane.b32.xlu0 %v1603, 4
        %v1709 = vpop.permute.xlu0 %1708
        %1710 = vrot.lane.b32.xlu0 %v1604, 4
        %v1711 = vpop.permute.xlu0 %1710
        %1712 = vrot.lane.b32.xlu0 %v1601, 4
        %v1713 = vpop.permute.xlu0 %1712
        %1714 = vrot.lane.b32.xlu0 %v1605, 4
        %v1715 = vpop.permute.xlu0 %1714
        %1716 = vrot.lane.b32.xlu0 %v1606, 4
        %v1717 = vpop.permute.xlu0 %1716
        %1718 = vrot.lane.b32.xlu0 %v1607, 4
        %v1719 = vpop.permute.xlu0 %1718
        %v1728 = vmul.f32 %v1592, %v1705
        %v1729 = vmul.f32 %v1593, %v1707
        %v1730 = vmul.f32 %v1594, %v1709
        %v1731 = vmul.f32 %v1595, %v1711
        %v1732 = vmul.f32 %v1596, %v1713
        %v1733 = vmul.f32 %v1597, %v1715
        %v1734 = vmul.f32 %v1598, %v1717
        %v1735 = vmul.f32 %v1599, %v1719
        %v1744 = vmul.f32 %v1592, %v1575
        %v1745 = vmul.f32 %v1593, %v1626
        %v1746 = vmul.f32 %v1594, %v1627
        %v1747 = vmul.f32 %v1595, %v1628
        %v1748 = vmul.f32 %v1596, %v1625
        %v1749 = vmul.f32 %v1597, %v1629
        %v1750 = vmul.f32 %v1598, %v1630
        %v1751 = vmul.f32 %v1599, %v1631
        %1760 = vrot.lane.b32.xlu0 %v1744, 4
        %v1761 = vpop.permute.xlu0 %1760
        %1762 = vrot.lane.b32.xlu0 %v1745, 4
        %v1763 = vpop.permute.xlu0 %1762
        %1764 = vrot.lane.b32.xlu0 %v1746, 4
        %v1765 = vpop.permute.xlu0 %1764
        %1766 = vrot.lane.b32.xlu0 %v1747, 4
        %v1767 = vpop.permute.xlu0 %1766
        %1768 = vrot.lane.b32.xlu0 %v1748, 4
        %v1769 = vpop.permute.xlu0 %1768
        %1770 = vrot.lane.b32.xlu0 %v1749, 4
        %v1771 = vpop.permute.xlu0 %1770
        %1772 = vrot.lane.b32.xlu0 %v1750, 4
        %v1773 = vpop.permute.xlu0 %1772
        %1774 = vrot.lane.b32.xlu0 %v1751, 4
        %v1775 = vpop.permute.xlu0 %1774
        %v1784 = vadd.f32 %v1728, %v1761
        %v1785 = vadd.f32 %v1729, %v1763
        %v1786 = vadd.f32 %v1730, %v1765
        %v1787 = vadd.f32 %v1731, %v1767
        %v1788 = vadd.f32 %v1732, %v1769
        %v1789 = vadd.f32 %v1733, %v1771
        %v1790 = vadd.f32 %v1734, %v1773
        %v1791 = vadd.f32 %v1735, %v1775
        %v1800 = vperm.slane %v1696, 0
        %v1801 = vperm.slane %v1697, 0
        %v1802 = vperm.slane %v1698, 0
        %v1803 = vperm.slane %v1699, 0
        %v1804 = vperm.slane %v1700, 0
        %v1805 = vperm.slane %v1701, 0
        %v1806 = vperm.slane %v1702, 0
        %v1807 = vperm.slane %v1703, 0
        %vm1808 = vcmask 1041409
        %v1809 = vsel %vm1808, %v1801, %v1800
        %vm1810 = vcmask 1042434
        %v1811 = vsel %vm1810, %v1802, %v1809
        %vm1812 = vcmask 1043459
        %v1813 = vsel %vm1812, %v1803, %v1811
        %vm1814 = vcmask 1044484
        %v1815 = vsel %vm1814, %v1804, %v1813
        %vm1816 = vcmask 1045509
        %v1817 = vsel %vm1816, %v1805, %v1815
        %vm1818 = vcmask 1046534
        %v1819 = vsel %vm1818, %v1806, %v1817
        %vm1820 = vcmask 1047559
        %v1821 = vsel %vm1820, %v1807, %v1819
        %v1831 = vperm.slane %v1784, 0
        %v1832 = vperm.slane %v1785, 0
        %v1833 = vperm.slane %v1786, 0
        %v1834 = vperm.slane %v1787, 0
        %v1835 = vperm.slane %v1788, 0
        %v1836 = vperm.slane %v1789, 0
        %v1837 = vperm.slane %v1790, 0
        %v1838 = vperm.slane %v1791, 0
        %v1839 = vsel %vm1808, %v1832, %v1831
        %v1840 = vsel %vm1810, %v1833, %v1839
        %v1841 = vsel %vm1812, %v1834, %v1840
        %v1842 = vsel %vm1814, %v1835, %v1841
        %v1843 = vsel %vm1816, %v1836, %v1842
        %v1844 = vsel %vm1818, %v1837, %v1843
        %v1845 = vsel %vm1820, %v1838, %v1844
        %vm1847 = vcmask 31744
        %v1848 = vsel %vm1847, %v1821, %v1845
        %v1849 = vpack.c.bf16 %v1848, %v1848
        %v1850 = vld [vmem:[#allocation2] sm:$0xf]
        %vm1851 = vcmask 64512
        %v1853 = vsel %vm1851, %v1850, 0
        %v1856 = vsel %vm1851, %v1849, 0
        %1858 = vmatpush.bf16.xpose.msra.mxu0 0
        %1859 = vmatpush.bf16.xpose.msra.mxu0 0
        %1860 = vmatpush.bf16.xpose.msra.mxu0 0
        %1861 = vmatpush.bf16.xpose.msra.mxu0 0
        %1862 = vmatpush.bf16.xpose.msra.mxu0 0
        %1863 = vmatpush.bf16.xpose.msra.mxu0 0
        %1864 = vmatpush.bf16.xpose.msra.mxu0 0
        %1865 = vmatpush.bf16.xpose.msra.mxu0 %v1856
        %1866 = vmatmul.bf16.gmra.mxu0 %v1853
        %v1867 = vpop.f32.mrf.mxu0
        %v1868 = vadd.f32 0.0, %v1867
        %v1869 = vpop.f32.mrf.mxu0
        %1870 = vdwg.mxu0
        %v1871 = vld [vmem:[#allocation3] sm:$0xff]
        %v1872 = vsel %vm1851, %v1868, -inf
        %1873 = vmax.xlane.f32.xlu0 %v1872
        %v1874 = vpop.xlane.xlu0 %1873
        %v1875 = vmax.f32 %v1871, %v1874
        %v1876 = vsub.f32 %v1871, %v1875
        %v1877 = vmul.f32 %v1876, 1.442695
        %v1878 = vpow.pop %v1877
        %1880 = vset.pattern.permute.xlu0 0
        %1881 = vperm.xlu0 %1880, %v1875
        %v1882 = vpop.permute.xlu0 %1881
        %v1884 = vsub.f32 %v1868, %v1882
        %v1885 = vmul.f32 %v1884, 1.442695
        %v1886 = vpow.pop %v1885
        %v1887 = vld [vmem:[#allocation4] sm:$0xff]
        %v1888 = vmul.f32 %v1878, %v1887
        %v1889 = vsel %vm1851, %v1886, 0.0
        %1890 = vadd.xlane.f32.xlu0 %v1889
        %v1891 = vpop.xlane.xlu0 %1890
        %v1892 = vadd.f32 %v1888, %v1891
        %vm1893 = vcmask 7168
        %1894 = vst.msk [vmem:[#allocation4] sm:$0xff] %vm1893, %v1892
        %v1895 = vld [vmem:[#allocation5] sm:$0xff]
        %1897 = vset.pattern.permute.xlu0 0
        %1898 = vperm.xlu0 %1897, %v1878
        %v1899 = vpop.permute.xlu0 %1898
        %v1901 = vmul.f32 %v1899, %v1895
        %v1902 = vpack.c.bf16 %v1886, %v1886
        %1904 = vst [vmem:[#allocation1] ss:$4 sm:$0xff] %v1584
        %v1905 = vld.sshfl [vmem:[#allocation1] sm:$0xff pattern:$0x73625140]
        %s1908 = scalar_lea.vmem [#allocation1], 32
        %1909 = vst [vmem:[%s1908] ss:$4 sm:$0xff] %v1585
        %v1910 = vld.sshfl [vmem:[#allocation1 + $0x20] sm:$0xff pattern:$0x73625140]
        %1913 = vst [vmem:[#allocation1] ss:$4 sm:$0xff] %v1586
        %v1914 = vld.sshfl [vmem:[#allocation1] sm:$0xff pattern:$0x73625140]
        %1917 = vst [vmem:[%s1908] ss:$4 sm:$0xff] %v1587
        %v1918 = vld.sshfl [vmem:[#allocation1 + $0x20] sm:$0xff pattern:$0x73625140]
        %1921 = vst [vmem:[#allocation1] ss:$4 sm:$0xff] %v1588
        %v1922 = vld.sshfl [vmem:[#allocation1] sm:$0xff pattern:$0x73625140]
        %1925 = vst [vmem:[%s1908] ss:$4 sm:$0xff] %v1589
        %v1926 = vld.sshfl [vmem:[#allocation1 + $0x20] sm:$0xff pattern:$0x73625140]
        %1929 = vst [vmem:[#allocation1] ss:$4 sm:$0xff] %v1590
        %v1930 = vld.sshfl [vmem:[#allocation1] sm:$0xff pattern:$0x73625140]
        %1933 = vst [vmem:[%s1908] ss:$4 sm:$0xff] %v1591
        %v1934 = vld.sshfl [vmem:[#allocation1 + $0x20] sm:$0xff pattern:$0x73625140]
        %v1936 = vunpack.c.l.b16 %v1905
        %v1937 = vunpack.c.l.b16 %v1910
        %v1938 = vunpack.c.l.b16 %v1914
        %v1939 = vunpack.c.l.b16 %v1918
        %v1940 = vunpack.c.l.b16 %v1922
        %v1941 = vunpack.c.l.b16 %v1926
        %v1942 = vunpack.c.l.b16 %v1930
        %v1943 = vunpack.c.l.b16 %v1934
        %v1944 = vrot.slane %v1937, 7
        %v1945 = vsel %vm1808, %v1944, %v1936
        %v1946 = vrot.slane %v1938, 6
        %v1947 = vsel %vm1810, %v1946, %v1945
        %v1948 = vrot.slane %v1939, 5
        %v1949 = vsel %vm1812, %v1948, %v1947
        %v1950 = vrot.slane %v1940, 4
        %v1951 = vsel %vm1814, %v1950, %v1949
        %v1952 = vrot.slane %v1941, 3
        %v1953 = vsel %vm1816, %v1952, %v1951
        %v1954 = vrot.slane %v1942, 2
        %v1955 = vsel %vm1818, %v1954, %v1953
        %v1956 = vrot.slane %v1943, 1
        %v1957 = vsel %vm1820, %v1956, %v1955
        %v1958 = vpack.c.b16 %v1957, %v1957
        %v1960 = vsel %vm1851, %v1902, 0
        %vm1962 = vcmask 1043456
        %v1964 = vsel %vm1962, %v1958, 0
        %1966 = vmatpush.bf16.msra.mxu0 0
        %1967 = vmatpush.bf16.msra.mxu0 0
        %1968 = vmatpush.bf16.msra.mxu0 0
        %1969 = vmatpush.bf16.msra.mxu0 0
        %1970 = vmatpush.bf16.msra.mxu0 0
        %1971 = vmatpush.bf16.msra.mxu0 0
        %1972 = vmatpush.bf16.msra.mxu0 0
        %1973 = vmatpush.bf16.msra.mxu0 %v1964
        %1974 = vmatmul.bf16.gmra.mxu0 %v1960
        %v1975 = vpop.f32.mrf.mxu0
        %v1976 = vadd.f32 0.0, %v1975
        %v1977 = vpop.f32.mrf.mxu0
        %1978 = vdwg.mxu0
        %v1979 = vadd.f32 %v1901, %v1976
        %1980 = vst.msk [vmem:[#allocation5] sm:$0xff] %vm1851, %v1979
        %1981 = vst.msk [vmem:[#allocation3] sm:$0xff] %vm1893, %v1875
        %v1982 = vrot.slane %v1574, 7
        %v1983 = vrot.slane %v1601, 7
        %v1986 = vmul.f32 %v1592, %v1982
        %v1987 = vmul.f32 %v1593, %v1574
        %v1988 = vmul.f32 %v1594, %v1602
        %v1989 = vmul.f32 %v1595, %v1603
        %v1990 = vmul.f32 %v1596, %v1983
        %v1991 = vmul.f32 %v1597, %v1601
        %v1992 = vmul.f32 %v1598, %v1605
        %v1993 = vmul.f32 %v1599, %v1606
        %v1994 = vrot.slane %v1575, 7
        %v1995 = vrot.slane %v1625, 7
        %1996 = vrot.lane.b32.xlu0 %v1994, 4
        %v1997 = vpop.permute.xlu0 %1996
        %1998 = vrot.lane.b32.xlu0 %v1995, 4
        %v1999 = vpop.permute.xlu0 %1998
        %v2002 = vmul.f32 %v1592, %v1997
        %v2003 = vmul.f32 %v1593, %v1633
        %v2004 = vmul.f32 %v1594, %v1635
        %v2005 = vmul.f32 %v1595, %v1637
        %v2006 = vmul.f32 %v1596, %v1999
        %v2007 = vmul.f32 %v1597, %v1641
        %v2008 = vmul.f32 %v1598, %v1643
        %v2009 = vmul.f32 %v1599, %v1645
        %2018 = vrot.lane.b32.xlu0 %v2002, 124
        %v2019 = vpop.permute.xlu0 %2018
        %2020 = vrot.lane.b32.xlu0 %v2003, 124
        %v2021 = vpop.permute.xlu0 %2020
        %2022 = vrot.lane.b32.xlu0 %v2004, 124
        %v2023 = vpop.permute.xlu0 %2022
        %2024 = vrot.lane.b32.xlu0 %v2005, 124
        %v2025 = vpop.permute.xlu0 %2024
        %2026 = vrot.lane.b32.xlu0 %v2006, 124
        %v2027 = vpop.permute.xlu0 %2026
        %2028 = vrot.lane.b32.xlu0 %v2007, 124
        %v2029 = vpop.permute.xlu0 %2028
        %2030 = vrot.lane.b32.xlu0 %v2008, 124
        %v2031 = vpop.permute.xlu0 %2030
        %2032 = vrot.lane.b32.xlu0 %v2009, 124
        %v2033 = vpop.permute.xlu0 %2032
        %v2042 = vsub.f32 %v1986, %v2019
        %v2043 = vsub.f32 %v1987, %v2021
        %v2044 = vsub.f32 %v1988, %v2023
        %v2045 = vsub.f32 %v1989, %v2025
        %v2046 = vsub.f32 %v1990, %v2027
        %v2047 = vsub.f32 %v1991, %v2029
        %v2048 = vsub.f32 %v1992, %v2031
        %v2049 = vsub.f32 %v1993, %v2033
        %2050 = vrot.lane.b32.xlu0 %v1982, 4
        %v2051 = vpop.permute.xlu0 %2050
        %2052 = vrot.lane.b32.xlu0 %v1983, 4
        %v2053 = vpop.permute.xlu0 %2052
        %v2056 = vmul.f32 %v1592, %v2051
        %v2057 = vmul.f32 %v1593, %v1705
        %v2058 = vmul.f32 %v1594, %v1707
        %v2059 = vmul.f32 %v1595, %v1709
        %v2060 = vmul.f32 %v1596, %v2053
        %v2061 = vmul.f32 %v1597, %v1713
        %v2062 = vmul.f32 %v1598, %v1715
        %v2063 = vmul.f32 %v1599, %v1717
        %v2066 = vmul.f32 %v1592, %v1994
        %v2067 = vmul.f32 %v1593, %v1575
        %v2068 = vmul.f32 %v1594, %v1626
        %v2069 = vmul.f32 %v1595, %v1627
        %v2070 = vmul.f32 %v1596, %v1995
        %v2071 = vmul.f32 %v1597, %v1625
        %v2072 = vmul.f32 %v1598, %v1629
        %v2073 = vmul.f32 %v1599, %v1630
        %2082 = vrot.lane.b32.xlu0 %v2066, 4
        %v2083 = vpop.permute.xlu0 %2082
        %2084 = vrot.lane.b32.xlu0 %v2067, 4
        %v2085 = vpop.permute.xlu0 %2084
        %2086 = vrot.lane.b32.xlu0 %v2068, 4
        %v2087 = vpop.permute.xlu0 %2086
        %2088 = vrot.lane.b32.xlu0 %v2069, 4
        %v2089 = vpop.permute.xlu0 %2088
        %2090 = vrot.lane.b32.xlu0 %v2070, 4
        %v2091 = vpop.permute.xlu0 %2090
        %2092 = vrot.lane.b32.xlu0 %v2071, 4
        %v2093 = vpop.permute.xlu0 %2092
        %2094 = vrot.lane.b32.xlu0 %v2072, 4
        %v2095 = vpop.permute.xlu0 %2094
        %2096 = vrot.lane.b32.xlu0 %v2073, 4
        %v2097 = vpop.permute.xlu0 %2096
        %v2106 = vadd.f32 %v2056, %v2083
        %v2107 = vadd.f32 %v2057, %v2085
        %v2108 = vadd.f32 %v2058, %v2087
        %v2109 = vadd.f32 %v2059, %v2089
        %v2110 = vadd.f32 %v2060, %v2091
        %v2111 = vadd.f32 %v2061, %v2093
        %v2112 = vadd.f32 %v2062, %v2095
        %v2113 = vadd.f32 %v2063, %v2097
        %v2122 = vperm.slane %v2042, 1
        %v2123 = vperm.slane %v2043, 1
        %v2124 = vperm.slane %v2044, 1
        %v2125 = vperm.slane %v2045, 1
        %v2126 = vperm.slane %v2046, 1
        %v2127 = vperm.slane %v2047, 1
        %v2128 = vperm.slane %v2048, 1
        %v2129 = vperm.slane %v2049, 1
        %v2130 = vsel %vm1810, %v2123, %v2122
        %v2131 = vsel %vm1812, %v2124, %v2130
        %v2132 = vsel %vm1814, %v2125, %v2131
        %v2133 = vsel %vm1816, %v2126, %v2132
        %v2134 = vsel %vm1818, %v2127, %v2133
        %v2135 = vsel %vm1820, %v2128, %v2134
        %v2146 = vperm.slane %v2106, 1
        %v2147 = vperm.slane %v2107, 1
        %v2148 = vperm.slane %v2108, 1
        %v2149 = vperm.slane %v2109, 1
        %v2150 = vperm.slane %v2110, 1
        %v2151 = vperm.slane %v2111, 1
        %v2152 = vperm.slane %v2112, 1
        %v2153 = vperm.slane %v2113, 1
        %v2154 = vsel %vm1810, %v2147, %v2146
        %v2155 = vsel %vm1812, %v2148, %v2154
        %v2156 = vsel %vm1814, %v2149, %v2155
        %v2157 = vsel %vm1816, %v2150, %v2156
        %v2158 = vsel %vm1818, %v2151, %v2157
        %v2159 = vsel %vm1820, %v2152, %v2158
        %v2162 = vsel %vm1847, %v2135, %v2159
        %v2163 = vsel %vm1847, %v2129, %v2153
        %v2164 = vpack.c.bf16 %v2163, %v2162
        %s2165 = scalar_lea.vmem [#allocation2], 4
        %v2166 = vld [vmem:[%s2165] sm:$0xf]
        %v2168 = vshrl.u32 %v2164, 16
        %v2170 = vshll.u32 %v2164, 16
        %v2172 = vrot.slane %v2170, 1
        %v2173 = vor.u32 %v2168, %v2172
        %v2175 = vsel %vm1851, %v2166, 0
        %v2178 = vsel %vm1851, %v2173, 0
        %2180 = vmatpush.bf16.xpose.msra.mxu0 0
        %2181 = vmatpush.bf16.xpose.msra.mxu0 0
        %2182 = vmatpush.bf16.xpose.msra.mxu0 0
        %2183 = vmatpush.bf16.xpose.msra.mxu0 0
        %2184 = vmatpush.bf16.xpose.msra.mxu0 0
        %2185 = vmatpush.bf16.xpose.msra.mxu0 0
        %2186 = vmatpush.bf16.xpose.msra.mxu0 0
        %2187 = vmatpush.bf16.xpose.msra.mxu0 %v2178
        %2188 = vmatmul.bf16.gmra.mxu0 %v2175
        %v2189 = vpop.f32.mrf.mxu0
        %v2190 = vadd.f32 0.0, %v2189
        %v2191 = vpop.f32.mrf.mxu0
        %2192 = vdwg.mxu0
        %s2193 = scalar_lea.vmem [#allocation3], 8
        %v2194 = vld [vmem:[%s2193] sm:$0xff]
        %v2195 = vsel %vm1851, %v2190, -inf
        %2196 = vmax.xlane.f32.xlu0 %v2195
        %v2197 = vpop.xlane.xlu0 %2196
        %v2198 = vmax.f32 %v2194, %v2197
        %v2199 = vsub.f32 %v2194, %v2198
        %v2200 = vmul.f32 %v2199, 1.442695
        %v2201 = vpow.pop %v2200
        %2203 = vset.pattern.permute.xlu0 0
        %2204 = vperm.xlu0 %2203, %v2198
        %v2205 = vpop.permute.xlu0 %2204
        %v2207 = vsub.f32 %v2190, %v2205
        %v2208 = vmul.f32 %v2207, 1.442695
        %v2209 = vpow.pop %v2208
        %s2210 = scalar_lea.vmem [#allocation4], 8
        %v2211 = vld [vmem:[%s2210] sm:$0xff]
        %v2212 = vmul.f32 %v2201, %v2211
        %v2213 = vsel %vm1851, %v2209, 0.0
        %2214 = vadd.xlane.f32.xlu0 %v2213
        %v2215 = vpop.xlane.xlu0 %2214
        %v2216 = vadd.f32 %v2212, %v2215
        %2217 = vst.msk [vmem:[%s2210] sm:$0xff] %vm1893, %v2216
        %s2218 = scalar_lea.vmem [#allocation5], 8
        %v2219 = vld [vmem:[%s2218] sm:$0xff]
        %2221 = vset.pattern.permute.xlu0 0
        %2222 = vperm.xlu0 %2221, %v2201
        %v2223 = vpop.permute.xlu0 %2222
        %v2225 = vmul.f32 %v2223, %v2219
        %v2226 = vpack.c.bf16 %v2209, %v2209
        %2227 = vst [vmem:[#allocation1] ss:$4 sm:$0xff] %v1584
        %v2228 = vld.sshfl [vmem:[#allocation1] sm:$0xff pattern:$0x73625140]
        %s2230 = scalar_lea.vmem [#allocation1], 32
        %2231 = vst [vmem:[%s2230] ss:$4 sm:$0xff] %v1585
        %v2232 = vld.sshfl [vmem:[#allocation1 + $0x20] sm:$0xff pattern:$0x73625140]
        %2234 = vst [vmem:[#allocation1] ss:$4 sm:$0xff] %v1586
        %v2235 = vld.sshfl [vmem:[#allocation1] sm:$0xff pattern:$0x73625140]
        %2237 = vst [vmem:[%s2230] ss:$4 sm:$0xff] %v1587
        %v2238 = vld.sshfl [vmem:[#allocation1 + $0x20] sm:$0xff pattern:$0x73625140]
        %2240 = vst [vmem:[#allocation1] ss:$4 sm:$0xff] %v1588
        %v2241 = vld.sshfl [vmem:[#allocation1] sm:$0xff pattern:$0x73625140]
        %2243 = vst [vmem:[%s2230] ss:$4 sm:$0xff] %v1589
        %v2244 = vld.sshfl [vmem:[#allocation1 + $0x20] sm:$0xff pattern:$0x73625140]
        %2246 = vst [vmem:[#allocation1] ss:$4 sm:$0xff] %v1590
        %v2247 = vld.sshfl [vmem:[#allocation1] sm:$0xff pattern:$0x73625140]
        %2249 = vst [vmem:[%s2230] ss:$4 sm:$0xff] %v1591
        %v2250 = vld.sshfl [vmem:[#allocation1 + $0x20] sm:$0xff pattern:$0x73625140]
        %v2252 = vunpack.c.l.b16 %v2228
        %v2253 = vunpack.c.l.b16 %v2232
        %v2254 = vunpack.c.l.b16 %v2235
        %v2255 = vunpack.c.l.b16 %v2238
        %v2256 = vunpack.c.l.b16 %v2241
        %v2257 = vunpack.c.l.b16 %v2244
        %v2258 = vunpack.c.l.b16 %v2247
        %v2259 = vunpack.c.l.b16 %v2250
        %v2260 = vrot.slane %v2252, 1
        %v2261 = vsel %vm1808, %v2253, %v2260
        %v2262 = vrot.slane %v2254, 7
        %v2263 = vsel %vm1810, %v2262, %v2261
        %v2264 = vrot.slane %v2255, 6
        %v2265 = vsel %vm1812, %v2264, %v2263
        %v2266 = vrot.slane %v2256, 5
        %v2267 = vsel %vm1814, %v2266, %v2265
        %v2268 = vrot.slane %v2257, 4
        %v2269 = vsel %vm1816, %v2268, %v2267
        %v2270 = vrot.slane %v2258, 3
        %v2271 = vsel %vm1818, %v2270, %v2269
        %v2272 = vrot.slane %v2259, 2
        %v2273 = vsel %vm1820, %v2272, %v2271
        %v2274 = vpack.c.b16 %v2273, %v2273
        %v2276 = vsel %vm1851, %v2226, 0
        %v2279 = vsel %vm1962, %v2274, 0
        %2281 = vmatpush.bf16.msra.mxu0 0
        %2282 = vmatpush.bf16.msra.mxu0 0
        %2283 = vmatpush.bf16.msra.mxu0 0
        %2284 = vmatpush.bf16.msra.mxu0 0
        %2285 = vmatpush.bf16.msra.mxu0 0
        %2286 = vmatpush.bf16.msra.mxu0 0
        %2287 = vmatpush.bf16.msra.mxu0 0
        %2288 = vmatpush.bf16.msra.mxu0 %v2279
        %2289 = vmatmul.bf16.gmra.mxu0 %v2276
        %v2290 = vpop.f32.mrf.mxu0
        %v2291 = vadd.f32 0.0, %v2290
        %v2292 = vpop.f32.mrf.mxu0
        %2293 = vdwg.mxu0
        %v2294 = vadd.f32 %v2225, %v2291
        %2295 = vst.msk [vmem:[%s2218] sm:$0xff] %vm1851, %v2294
        %2296 = vst.msk [vmem:[%s2193] sm:$0xff] %vm1893, %v2198
        %v2297 = vrot.slane %v1574, 6
        %v2298 = vrot.slane %v1601, 6
        %v2301 = vmul.f32 %v1592, %v2297
        %v2302 = vmul.f32 %v1593, %v1982
        %v2303 = vmul.f32 %v1594, %v1574
        %v2304 = vmul.f32 %v1595, %v1602
        %v2305 = vmul.f32 %v1596, %v2298
        %v2306 = vmul.f32 %v1597, %v1983
        %v2307 = vmul.f32 %v1598, %v1601
        %v2308 = vmul.f32 %v1599, %v1605
        %v2309 = vrot.slane %v1575, 6
        %v2310 = vrot.slane %v1625, 6
        %2311 = vrot.lane.b32.xlu0 %v2309, 4
        %v2312 = vpop.permute.xlu0 %2311
        %2313 = vrot.lane.b32.xlu0 %v2310, 4
        %v2314 = vpop.permute.xlu0 %2313
        %v2317 = vmul.f32 %v1592, %v2312
        %v2318 = vmul.f32 %v1593, %v1997
        %v2319 = vmul.f32 %v1594, %v1633
        %v2320 = vmul.f32 %v1595, %v1635
        %v2321 = vmul.f32 %v1596, %v2314
        %v2322 = vmul.f32 %v1597, %v1999
        %v2323 = vmul.f32 %v1598, %v1641
        %v2324 = vmul.f32 %v1599, %v1643
        %2333 = vrot.lane.b32.xlu0 %v2317, 124
        %v2334 = vpop.permute.xlu0 %2333
        %2335 = vrot.lane.b32.xlu0 %v2318, 124
        %v2336 = vpop.permute.xlu0 %2335
        %2337 = vrot.lane.b32.xlu0 %v2319, 124
        %v2338 = vpop.permute.xlu0 %2337
        %2339 = vrot.lane.b32.xlu0 %v2320, 124
        %v2340 = vpop.permute.xlu0 %2339
        %2341 = vrot.lane.b32.xlu0 %v2321, 124
        %v2342 = vpop.permute.xlu0 %2341
        %2343 = vrot.lane.b32.xlu0 %v2322, 124
        %v2344 = vpop.permute.xlu0 %2343
        %2345 = vrot.lane.b32.xlu0 %v2323, 124
        %v2346 = vpop.permute.xlu0 %2345
        %2347 = vrot.lane.b32.xlu0 %v2324, 124
        %v2348 = vpop.permute.xlu0 %2347
        %v2357 = vsub.f32 %v2301, %v2334
        %v2358 = vsub.f32 %v2302, %v2336
        %v2359 = vsub.f32 %v2303, %v2338
        %v2360 = vsub.f32 %v2304, %v2340
        %v2361 = vsub.f32 %v2305, %v2342
        %v2362 = vsub.f32 %v2306, %v2344
        %v2363 = vsub.f32 %v2307, %v2346
        %v2364 = vsub.f32 %v2308, %v2348
        %2365 = vrot.lane.b32.xlu0 %v2297, 4
        %v2366 = vpop.permute.xlu0 %2365
        %2367 = vrot.lane.b32.xlu0 %v2298, 4
        %v2368 = vpop.permute.xlu0 %2367
        %v2371 = vmul.f32 %v1592, %v2366
        %v2372 = vmul.f32 %v1593, %v2051
        %v2373 = vmul.f32 %v1594, %v1705
        %v2374 = vmul.f32 %v1595, %v1707
        %v2375 = vmul.f32 %v1596, %v2368
        %v2376 = vmul.f32 %v1597, %v2053
        %v2377 = vmul.f32 %v1598, %v1713
        %v2378 = vmul.f32 %v1599, %v1715
        %v2381 = vmul.f32 %v1592, %v2309
        %v2382 = vmul.f32 %v1593, %v1994
        %v2383 = vmul.f32 %v1594, %v1575
        %v2384 = vmul.f32 %v1595, %v1626
        %v2385 = vmul.f32 %v1596, %v2310
        %v2386 = vmul.f32 %v1597, %v1995
        %v2387 = vmul.f32 %v1598, %v1625
        %v2388 = vmul.f32 %v1599, %v1629
        %2397 = vrot.lane.b32.xlu0 %v2381, 4
        %v2398 = vpop.permute.xlu0 %2397
        %2399 = vrot.lane.b32.xlu0 %v2382, 4
        %v2400 = vpop.permute.xlu0 %2399
        %2401 = vrot.lane.b32.xlu0 %v2383, 4
        %v2402 = vpop.permute.xlu0 %2401
        %2403 = vrot.lane.b32.xlu0 %v2384, 4
        %v2404 = vpop.permute.xlu0 %2403
        %2405 = vrot.lane.b32.xlu0 %v2385, 4
        %v2406 = vpop.permute.xlu0 %2405
        %2407 = vrot.lane.b32.xlu0 %v2386, 4
        %v2408 = vpop.permute.xlu0 %2407
        %2409 = vrot.lane.b32.xlu0 %v2387, 4
        %v2410 = vpop.permute.xlu0 %2409
        %2411 = vrot.lane.b32.xlu0 %v2388, 4
        %v2412 = vpop.permute.xlu0 %2411
        %v2421 = vadd.f32 %v2371, %v2398
        %v2422 = vadd.f32 %v2372, %v2400
        %v2423 = vadd.f32 %v2373, %v2402
        %v2424 = vadd.f32 %v2374, %v2404
        %v2425 = vadd.f32 %v2375, %v2406
        %v2426 = vadd.f32 %v2376, %v2408
        %v2427 = vadd.f32 %v2377, %v2410
        %v2428 = vadd.f32 %v2378, %v2412
        %v2437 = vperm.slane %v2357, 2
        %v2438 = vperm.slane %v2358, 2
        %v2439 = vperm.slane %v2359, 2
        %v2440 = vperm.slane %v2360, 2
        %v2441 = vperm.slane %v2361, 2
        %v2442 = vperm.slane %v2362, 2
        %v2443 = vperm.slane %v2363, 2
        %v2444 = vperm.slane %v2364, 2
        %v2445 = vsel %vm1812, %v2438, %v2437
        %v2446 = vsel %vm1814, %v2439, %v2445
        %v2447 = vsel %vm1816, %v2440, %v2446
        %v2448 = vsel %vm1818, %v2441, %v2447
        %v2449 = vsel %vm1820, %v2442, %v2448
        %v2450 = vsel %vm1808, %v2444, %v2443
        %v2461 = vperm.slane %v2421, 2
        %v2462 = vperm.slane %v2422, 2
        %v2463 = vperm.slane %v2423, 2
        %v2464 = vperm.slane %v2424, 2
        %v2465 = vperm.slane %v2425, 2
        %v2466 = vperm.slane %v2426, 2
        %v2467 = vperm.slane %v2427, 2
        %v2468 = vperm.slane %v2428, 2
        %v2469 = vsel %vm1812, %v2462, %v2461
        %v2470 = vsel %vm1814, %v2463, %v2469
        %v2471 = vsel %vm1816, %v2464, %v2470
        %v2472 = vsel %vm1818, %v2465, %v2471
        %v2473 = vsel %vm1820, %v2466, %v2472
        %v2474 = vsel %vm1808, %v2468, %v2467
        %v2477 = vsel %vm1847, %v2449, %v2473
        %v2478 = vsel %vm1847, %v2450, %v2474
        %v2479 = vpack.c.bf16 %v2478, %v2477
        %s2480 = scalar_lea.vmem [#allocation2], 8
        %v2481 = vld [vmem:[%s2480] sm:$0xf]
        %v2483 = vrot.slane %v2479, 1
        %v2485 = vsel %vm1851, %v2481, 0
        %v2488 = vsel %vm1851, %v2483, 0
        %2490 = vmatpush.bf16.xpose.msra.mxu0 0
        %2491 = vmatpush.bf16.xpose.msra.mxu0 0
        %2492 = vmatpush.bf16.xpose.msra.mxu0 0
        %2493 = vmatpush.bf16.xpose.msra.mxu0 0
        %2494 = vmatpush.bf16.xpose.msra.mxu0 0
        %2495 = vmatpush.bf16.xpose.msra.mxu0 0
        %2496 = vmatpush.bf16.xpose.msra.mxu0 0
        %2497 = vmatpush.bf16.xpose.msra.mxu0 %v2488
        %2498 = vmatmul.bf16.gmra.mxu0 %v2485
        %v2499 = vpop.f32.mrf.mxu0
        %v2500 = vadd.f32 0.0, %v2499
        %v2501 = vpop.f32.mrf.mxu0
        %2502 = vdwg.mxu0
        %s2503 = scalar_lea.vmem [#allocation3], 16
        %v2504 = vld [vmem:[%s2503] sm:$0xff]
        %v2505 = vsel %vm1851, %v2500, -inf
        %2506 = vmax.xlane.f32.xlu0 %v2505
        %v2507 = vpop.xlane.xlu0 %2506
        %v2508 = vmax.f32 %v2504, %v2507
        %v2509 = vsub.f32 %v2504, %v2508
        %v2510 = vmul.f32 %v2509, 1.442695
        %v2511 = vpow.pop %v2510
        %2513 = vset.pattern.permute.xlu0 0
        %2514 = vperm.xlu0 %2513, %v2508
        %v2515 = vpop.permute.xlu0 %2514
        %v2517 = vsub.f32 %v2500, %v2515
        %v2518 = vmul.f32 %v2517, 1.442695
        %v2519 = vpow.pop %v2518
        %s2520 = scalar_lea.vmem [#allocation4], 16
        %v2521 = vld [vmem:[%s2520] sm:$0xff]
        %v2522 = vmul.f32 %v2511, %v2521
        %v2523 = vsel %vm1851, %v2519, 0.0
        %2524 = vadd.xlane.f32.xlu0 %v2523
        %v2525 = vpop.xlane.xlu0 %2524
        %v2526 = vadd.f32 %v2522, %v2525
        %2527 = vst.msk [vmem:[%s2520] sm:$0xff] %vm1893, %v2526
        %s2528 = scalar_lea.vmem [#allocation5], 16
        %v2529 = vld [vmem:[%s2528] sm:$0xff]
        %2531 = vset.pattern.permute.xlu0 0
        %2532 = vperm.xlu0 %2531, %v2511
        %v2533 = vpop.permute.xlu0 %2532
        %v2535 = vmul.f32 %v2533, %v2529
        %v2536 = vpack.c.bf16 %v2519, %v2519
        %2537 = vst [vmem:[#allocation1] ss:$4 sm:$0xff] %v1584
        %v2538 = vld.sshfl [vmem:[#allocation1] sm:$0xff pattern:$0x73625140]
        %s2540 = scalar_lea.vmem [#allocation1], 32
        %2541 = vst [vmem:[%s2540] ss:$4 sm:$0xff] %v1585
        %v2542 = vld.sshfl [vmem:[#allocation1 + $0x20] sm:$0xff pattern:$0x73625140]
        %2544 = vst [vmem:[#allocation1] ss:$4 sm:$0xff] %v1586
        %v2545 = vld.sshfl [vmem:[#allocation1] sm:$0xff pattern:$0x73625140]
        %2547 = vst [vmem:[%s2540] ss:$4 sm:$0xff] %v1587
        %v2548 = vld.sshfl [vmem:[#allocation1 + $0x20] sm:$0xff pattern:$0x73625140]
        %2550 = vst [vmem:[#allocation1] ss:$4 sm:$0xff] %v1588
        %v2551 = vld.sshfl [vmem:[#allocation1] sm:$0xff pattern:$0x73625140]
        %2553 = vst [vmem:[%s2540] ss:$4 sm:$0xff] %v1589
        %v2554 = vld.sshfl [vmem:[#allocation1 + $0x20] sm:$0xff pattern:$0x73625140]
        %2556 = vst [vmem:[#allocation1] ss:$4 sm:$0xff] %v1590
        %v2557 = vld.sshfl [vmem:[#allocation1] sm:$0xff pattern:$0x73625140]
        %2559 = vst [vmem:[%s2540] ss:$4 sm:$0xff] %v1591
        %v2560 = vld.sshfl [vmem:[#allocation1 + $0x20] sm:$0xff pattern:$0x73625140]
        %v2562 = vunpack.c.l.b16 %v2538
        %v2563 = vunpack.c.l.b16 %v2542
        %v2564 = vunpack.c.l.b16 %v2545
        %v2565 = vunpack.c.l.b16 %v2548
        %v2566 = vunpack.c.l.b16 %v2551
        %v2567 = vunpack.c.l.b16 %v2554
        %v2568 = vunpack.c.l.b16 %v2557
        %v2569 = vunpack.c.l.b16 %v2560
        %v2570 = vrot.slane %v2562, 2
        %v2571 = vrot.slane %v2563, 1
        %v2572 = vsel %vm1808, %v2571, %v2570
        %v2573 = vsel %vm1810, %v2564, %v2572
        %v2574 = vrot.slane %v2565, 7
        %v2575 = vsel %vm1812, %v2574, %v2573
        %v2576 = vrot.slane %v2566, 6
        %v2577 = vsel %vm1814, %v2576, %v2575
        %v2578 = vrot.slane %v2567, 5
        %v2579 = vsel %vm1816, %v2578, %v2577
        %v2580 = vrot.slane %v2568, 4
        %v2581 = vsel %vm1818, %v2580, %v2579
        %v2582 = vrot.slane %v2569, 3
        %v2583 = vsel %vm1820, %v2582, %v2581
        %v2584 = vpack.c.b16 %v2583, %v2583
        %v2586 = vsel %vm1851, %v2536, 0
        %v2589 = vsel %vm1962, %v2584, 0
        %2591 = vmatpush.bf16.msra.mxu0 0
        %2592 = vmatpush.bf16.msra.mxu0 0
        %2593 = vmatpush.bf16.msra.mxu0 0
        %2594 = vmatpush.bf16.msra.mxu0 0
        %2595 = vmatpush.bf16.msra.mxu0 0
        %2596 = vmatpush.bf16.msra.mxu0 0
        %2597 = vmatpush.bf16.msra.mxu0 0
        %2598 = vmatpush.bf16.msra.mxu0 %v2589
        %2599 = vmatmul.bf16.gmra.mxu0 %v2586
        %v2600 = vpop.f32.mrf.mxu0
        %v2601 = vadd.f32 0.0, %v2600
        %v2602 = vpop.f32.mrf.mxu0
        %2603 = vdwg.mxu0
        %v2604 = vadd.f32 %v2535, %v2601
        %2605 = vst.msk [vmem:[%s2528] sm:$0xff] %vm1851, %v2604
        %2606 = vst.msk [vmem:[%s2503] sm:$0xff] %vm1893, %v2508
        %v2607 = vrot.slane %v1574, 5
        %v2608 = vrot.slane %v1601, 5
        %v2611 = vmul.f32 %v1592, %v2607
        %v2612 = vmul.f32 %v1593, %v2297
        %v2613 = vmul.f32 %v1594, %v1982
        %v2614 = vmul.f32 %v1595, %v1574
        %v2615 = vmul.f32 %v1596, %v2608
        %v2616 = vmul.f32 %v1597, %v2298
        %v2617 = vmul.f32 %v1598, %v1983
        %v2618 = vmul.f32 %v1599, %v1601
        %v2619 = vrot.slane %v1575, 5
        %v2620 = vrot.slane %v1625, 5
        %2621 = vrot.lane.b32.xlu0 %v2619, 4
        %v2622 = vpop.permute.xlu0 %2621
        %2623 = vrot.lane.b32.xlu0 %v2620, 4
        %v2624 = vpop.permute.xlu0 %2623
        %v2627 = vmul.f32 %v1592, %v2622
        %v2628 = vmul.f32 %v1593, %v2312
        %v2629 = vmul.f32 %v1594, %v1997
        %v2630 = vmul.f32 %v1595, %v1633
        %v2631 = vmul.f32 %v1596, %v2624
        %v2632 = vmul.f32 %v1597, %v2314
        %v2633 = vmul.f32 %v1598, %v1999
        %v2634 = vmul.f32 %v1599, %v1641
        %2643 = vrot.lane.b32.xlu0 %v2627, 124
        %v2644 = vpop.permute.xlu0 %2643
        %2645 = vrot.lane.b32.xlu0 %v2628, 124
        %v2646 = vpop.permute.xlu0 %2645
        %2647 = vrot.lane.b32.xlu0 %v2629, 124
        %v2648 = vpop.permute.xlu0 %2647
        %2649 = vrot.lane.b32.xlu0 %v2630, 124
        %v2650 = vpop.permute.xlu0 %2649
        %2651 = vrot.lane.b32.xlu0 %v2631, 124
        %v2652 = vpop.permute.xlu0 %2651
        %2653 = vrot.lane.b32.xlu0 %v2632, 124
        %v2654 = vpop.permute.xlu0 %2653
        %2655 = vrot.lane.b32.xlu0 %v2633, 124
        %v2656 = vpop.permute.xlu0 %2655
        %2657 = vrot.lane.b32.xlu0 %v2634, 124
        %v2658 = vpop.permute.xlu0 %2657
        %v2667 = vsub.f32 %v2611, %v2644
        %v2668 = vsub.f32 %v2612, %v2646
        %v2669 = vsub.f32 %v2613, %v2648
        %v2670 = vsub.f32 %v2614, %v2650
        %v2671 = vsub.f32 %v2615, %v2652
        %v2672 = vsub.f32 %v2616, %v2654
        %v2673 = vsub.f32 %v2617, %v2656
        %v2674 = vsub.f32 %v2618, %v2658
        %2675 = vrot.lane.b32.xlu0 %v2607, 4
        %v2676 = vpop.permute.xlu0 %2675
        %2677 = vrot.lane.b32.xlu0 %v2608, 4
        %v2678 = vpop.permute.xlu0 %2677
        %v2681 = vmul.f32 %v1592, %v2676
        %v2682 = vmul.f32 %v1593, %v2366
        %v2683 = vmul.f32 %v1594, %v2051
        %v2684 = vmul.f32 %v1595, %v1705
        %v2685 = vmul.f32 %v1596, %v2678
        %v2686 = vmul.f32 %v1597, %v2368
        %v2687 = vmul.f32 %v1598, %v2053
        %v2688 = vmul.f32 %v1599, %v1713
        %v2691 = vmul.f32 %v1592, %v2619
        %v2692 = vmul.f32 %v1593, %v2309
        %v2693 = vmul.f32 %v1594, %v1994
        %v2694 = vmul.f32 %v1595, %v1575
        %v2695 = vmul.f32 %v1596, %v2620
        %v2696 = vmul.f32 %v1597, %v2310
        %v2697 = vmul.f32 %v1598, %v1995
        %v2698 = vmul.f32 %v1599, %v1625
        %2707 = vrot.lane.b32.xlu0 %v2691, 4
        %v2708 = vpop.permute.xlu0 %2707
        %2709 = vrot.lane.b32.xlu0 %v2692, 4
        %v2710 = vpop.permute.xlu0 %2709
        %2711 = vrot.lane.b32.xlu0 %v2693, 4
        %v2712 = vpop.permute.xlu0 %2711
        %2713 = vrot.lane.b32.xlu0 %v2694, 4
        %v2714 = vpop.permute.xlu0 %2713
        %2715 = vrot.lane.b32.xlu0 %v2695, 4
        %v2716 = vpop.permute.xlu0 %2715
        %2717 = vrot.lane.b32.xlu0 %v2696, 4
        %v2718 = vpop.permute.xlu0 %2717
        %2719 = vrot.lane.b32.xlu0 %v2697, 4
        %v2720 = vpop.permute.xlu0 %2719
        %2721 = vrot.lane.b32.xlu0 %v2698, 4
        %v2722 = vpop.permute.xlu0 %2721
        %v2731 = vadd.f32 %v2681, %v2708
        %v2732 = vadd.f32 %v2682, %v2710
        %v2733 = vadd.f32 %v2683, %v2712
        %v2734 = vadd.f32 %v2684, %v2714
        %v2735 = vadd.f32 %v2685, %v2716
        %v2736 = vadd.f32 %v2686, %v2718
        %v2737 = vadd.f32 %v2687, %v2720
        %v2738 = vadd.f32 %v2688, %v2722
        %v2747 = vperm.slane %v2667, 3
        %v2748 = vperm.slane %v2668, 3
        %v2749 = vperm.slane %v2669, 3
        %v2750 = vperm.slane %v2670, 3
        %v2751 = vperm.slane %v2671, 3
        %v2752 = vperm.slane %v2672, 3
        %v2753 = vperm.slane %v2673, 3
        %v2754 = vperm.slane %v2674, 3
        %v2755 = vsel %vm1814, %v2748, %v2747
        %v2756 = vsel %vm1816, %v2749, %v2755
        %v2757 = vsel %vm1818, %v2750, %v2756
        %v2758 = vsel %vm1820, %v2751, %v2757
        %v2759 = vsel %vm1808, %v2753, %v2752
        %v2760 = vsel %vm1810, %v2754, %v2759
        %v2771 = vperm.slane %v2731, 3
        %v2772 = vperm.slane %v2732, 3
        %v2773 = vperm.slane %v2733, 3
        %v2774 = vperm.slane %v2734, 3
        %v2775 = vperm.slane %v2735, 3
        %v2776 = vperm.slane %v2736, 3
        %v2777 = vperm.slane %v2737, 3
        %v2778 = vperm.slane %v2738, 3
        %v2779 = vsel %vm1814, %v2772, %v2771
        %v2780 = vsel %vm1816, %v2773, %v2779
        %v2781 = vsel %vm1818, %v2774, %v2780
        %v2782 = vsel %vm1820, %v2775, %v2781
        %v2783 = vsel %vm1808, %v2777, %v2776
        %v2784 = vsel %vm1810, %v2778, %v2783
        %v2787 = vsel %vm1847, %v2758, %v2782
        %v2788 = vsel %vm1847, %v2760, %v2784
        %v2789 = vpack.c.bf16 %v2788, %v2787
        %s2790 = scalar_lea.vmem [#allocation2], 12
        %v2791 = vld [vmem:[%s2790] sm:$0xf]
        %v2793 = vshrl.u32 %v2789, 16
        %v2795 = vrot.slane %v2793, 1
        %v2796 = vshll.u32 %v2789, 16
        %v2798 = vrot.slane %v2796, 2
        %v2799 = vor.u32 %v2795, %v2798
        %v2801 = vsel %vm1851, %v2791, 0
        %v2804 = vsel %vm1851, %v2799, 0
        %2806 = vmatpush.bf16.xpose.msra.mxu0 0
        %2807 = vmatpush.bf16.xpose.msra.mxu0 0
        %2808 = vmatpush.bf16.xpose.msra.mxu0 0
        %2809 = vmatpush.bf16.xpose.msra.mxu0 0
        %2810 = vmatpush.bf16.xpose.msra.mxu0 0
        %2811 = vmatpush.bf16.xpose.msra.mxu0 0
        %2812 = vmatpush.bf16.xpose.msra.mxu0 0
        %2813 = vmatpush.bf16.xpose.msra.mxu0 %v2804
        %2814 = vmatmul.bf16.gmra.mxu0 %v2801
        %v2815 = vpop.f32.mrf.mxu0
        %v2816 = vadd.f32 0.0, %v2815
        %v2817 = vpop.f32.mrf.mxu0
        %2818 = vdwg.mxu0
        %s2819 = scalar_lea.vmem [#allocation3], 24
        %v2820 = vld [vmem:[%s2819] sm:$0xff]
        %v2821 = vsel %vm1851, %v2816, -inf
        %2822 = vmax.xlane.f32.xlu0 %v2821
        %v2823 = vpop.xlane.xlu0 %2822
        %v2824 = vmax.f32 %v2820, %v2823
        %v2825 = vsub.f32 %v2820, %v2824
        %v2826 = vmul.f32 %v2825, 1.442695
        %v2827 = vpow.pop %v2826
        %2829 = vset.pattern.permute.xlu0 0
        %2830 = vperm.xlu0 %2829, %v2824
        %v2831 = vpop.permute.xlu0 %2830
        %v2833 = vsub.f32 %v2816, %v2831
        %v2834 = vmul.f32 %v2833, 1.442695
        %v2835 = vpow.pop %v2834
        %s2836 = scalar_lea.vmem [#allocation4], 24
        %v2837 = vld [vmem:[%s2836] sm:$0xff]
        %v2838 = vmul.f32 %v2827, %v2837
        %v2839 = vsel %vm1851, %v2835, 0.0
        %2840 = vadd.xlane.f32.xlu0 %v2839
        %v2841 = vpop.xlane.xlu0 %2840
        %v2842 = vadd.f32 %v2838, %v2841
        %2843 = vst.msk [vmem:[%s2836] sm:$0xff] %vm1893, %v2842
        %s2844 = scalar_lea.vmem [#allocation5], 24
        %v2845 = vld [vmem:[%s2844] sm:$0xff]
        %2847 = vset.pattern.permute.xlu0 0
        %2848 = vperm.xlu0 %2847, %v2827
        %v2849 = vpop.permute.xlu0 %2848
        %v2851 = vmul.f32 %v2849, %v2845
        %v2852 = vpack.c.bf16 %v2835, %v2835
        %2853 = vst [vmem:[#allocation1] ss:$4 sm:$0xff] %v1584
        %v2854 = vld.sshfl [vmem:[#allocation1] sm:$0xff pattern:$0x73625140]
        %s2856 = scalar_lea.vmem [#allocation1], 32
        %2857 = vst [vmem:[%s2856] ss:$4 sm:$0xff] %v1585
        %v2858 = vld.sshfl [vmem:[#allocation1 + $0x20] sm:$0xff pattern:$0x73625140]
        %2860 = vst [vmem:[#allocation1] ss:$4 sm:$0xff] %v1586
        %v2861 = vld.sshfl [vmem:[#allocation1] sm:$0xff pattern:$0x73625140]
        %2863 = vst [vmem:[%s2856] ss:$4 sm:$0xff] %v1587
        %v2864 = vld.sshfl [vmem:[#allocation1 + $0x20] sm:$0xff pattern:$0x73625140]
        %2866 = vst [vmem:[#allocation1] ss:$4 sm:$0xff] %v1588
        %v2867 = vld.sshfl [vmem:[#allocation1] sm:$0xff pattern:$0x73625140]
        %2869 = vst [vmem:[%s2856] ss:$4 sm:$0xff] %v1589
        %v2870 = vld.sshfl [vmem:[#allocation1 + $0x20] sm:$0xff pattern:$0x73625140]
        %2872 = vst [vmem:[#allocation1] ss:$4 sm:$0xff] %v1590
        %v2873 = vld.sshfl [vmem:[#allocation1] sm:$0xff pattern:$0x73625140]
        %2875 = vst [vmem:[%s2856] ss:$4 sm:$0xff] %v1591
        %v2876 = vld.sshfl [vmem:[#allocation1 + $0x20] sm:$0xff pattern:$0x73625140]
        %v2878 = vunpack.c.l.b16 %v2854
        %v2879 = vunpack.c.l.b16 %v2858
        %v2880 = vunpack.c.l.b16 %v2861
        %v2881 = vunpack.c.l.b16 %v2864
        %v2882 = vunpack.c.l.b16 %v2867
        %v2883 = vunpack.c.l.b16 %v2870
        %v2884 = vunpack.c.l.b16 %v2873
        %v2885 = vunpack.c.l.b16 %v2876
        %v2886 = vrot.slane %v2878, 3
        %v2887 = vrot.slane %v2879, 2
        %v2888 = vsel %vm1808, %v2887, %v2886
        %v2889 = vrot.slane %v2880, 1
        %v2890 = vsel %vm1810, %v2889, %v2888
        %v2891 = vsel %vm1812, %v2881, %v2890
        %v2892 = vrot.slane %v2882, 7
        %v2893 = vsel %vm1814, %v2892, %v2891
        %v2894 = vrot.slane %v2883, 6
        %v2895 = vsel %vm1816, %v2894, %v2893
        %v2896 = vrot.slane %v2884, 5
        %v2897 = vsel %vm1818, %v2896, %v2895
        %v2898 = vrot.slane %v2885, 4
        %v2899 = vsel %vm1820, %v2898, %v2897
        %v2900 = vpack.c.b16 %v2899, %v2899
        %v2902 = vsel %vm1851, %v2852, 0
        %v2905 = vsel %vm1962, %v2900, 0
        %2907 = vmatpush.bf16.msra.mxu0 0
        %2908 = vmatpush.bf16.msra.mxu0 0
        %2909 = vmatpush.bf16.msra.mxu0 0
        %2910 = vmatpush.bf16.msra.mxu0 0
        %2911 = vmatpush.bf16.msra.mxu0 0
        %2912 = vmatpush.bf16.msra.mxu0 0
        %2913 = vmatpush.bf16.msra.mxu0 0
        %2914 = vmatpush.bf16.msra.mxu0 %v2905
        %2915 = vmatmul.bf16.gmra.mxu0 %v2902
        %v2916 = vpop.f32.mrf.mxu0
        %v2917 = vadd.f32 0.0, %v2916
        %v2918 = vpop.f32.mrf.mxu0
        %2919 = vdwg.mxu0
        %v2920 = vadd.f32 %v2851, %v2917
        %2921 = vst.msk [vmem:[%s2844] sm:$0xff] %vm1851, %v2920
        %2922 = vst.msk [vmem:[%s2819] sm:$0xff] %vm1893, %v2824
        // Predicated region
        $region176: #{moe_model_forward.18} parent=158 // pred_check
          %p2923 = pneg %p678
        $region177: #{moe_model_forward.18} parent=158 // pred_check_branch
          %2925 = sbr.rel (%p2923) target = $region179
        $region178: #{moe_model_forward.18} parent=158 // pred_region
          %v2926 = vld [vmem:[#allocation5] sm:$0xff]
          %v2927 = vld [vmem:[#allocation4] sm:$0xff]
          %2929 = vset.pattern.permute.xlu0 0
          %2930 = vperm.xlu0 %2929, %v2927
          %v2931 = vpop.permute.xlu0 %2930
          %v2933 = vrcp.pop %v2931
          %v2934 = vmul.f32 %v2931, %v2933
          %v2935 = vsub.f32 1.0, %v2934
          %v2936 = vmul.f32 %v2933, %v2935
          %v2937 = vadd.f32 %v2933, %v2936
          %vm2938 = vweird.f32 %v2931
          %vm2939 = vweird.f32 %v2933
          %vm2940 = vmor %vm2938, %vm2939
          %v2941 = vsel %vm2940, %v2933, %v2937
          %v2942 = vand.u32 2147483647, %v2931
          %vm2943 = vcmp.eq.f32.partialorder %v2942, 8.507059e+37
          %v2944 = vand.u32 %v2931, 2147483648
          %v2945 = vor.u32 1.1754944e-38, %v2944
          %v2946 = vsel %vm2943, %v2945, %v2941
          %v2947 = vmul.f32 %v2926, %v2946
          %v2948 = vpack.c.bf16 %v2947, %v2947
          %v2950 = vrot.slane %v2948, 3
          %vm2951 = vcmask 1040384
          %v2954 = vsel %vm2951, %v2948, %v2950
          %v2956 = vsel %vm1808, %v2948, %v2950
          %v2958 = vrot.slane %v2956, 1
          %v2959 = vsel %vm1810, %v2948, %v2950
          %v2961 = vrot.slane %v2959, 2
          %v2962 = vsel %vm1812, %v2948, %v2950
          %v2964 = vrot.slane %v2962, 3
          %v2965 = vunpack.i.l.s16 %v2954
          %v2966 = vunpack.i.h.s16 %v2954
          %v2967 = vunpack.i.l.s16 %v2958
          %v2968 = vunpack.i.h.s16 %v2958
          %v2969 = vunpack.i.l.s16 %v2961
          %v2970 = vunpack.i.h.s16 %v2961
          %v2971 = vunpack.i.l.s16 %v2964
          %v2972 = vunpack.i.h.s16 %v2964
          %v2973 = vpack.i.b16 %v2965, %v2965
          %v2974 = vpack.i.b16 %v2966, %v2966
          %v2975 = vpack.i.b16 %v2967, %v2967
          %v2976 = vpack.i.b16 %v2968, %v2968
          %v2977 = vpack.i.b16 %v2969, %v2969
          %v2978 = vpack.i.b16 %v2970, %v2970
          %v2979 = vpack.i.b16 %v2971, %v2971
          %v2980 = vpack.i.b16 %v2972, %v2972
          %v2982 = vunpack.c.l.s4 857870592
          %v2983 = vunpack.c.0.s8 %v2982
          %v2984 = vperm.slane %v2973, %v2983
          %v2986 = vunpack.c.l.s4 857870592
          %v2987 = vunpack.c.0.s8 %v2986
          %v2988 = vperm.slane %v2974, %v2987
          %v2990 = vunpack.c.l.s4 857870592
          %v2991 = vunpack.c.0.s8 %v2990
          %v2992 = vperm.slane %v2975, %v2991
          %v2994 = vunpack.c.l.s4 857870592
          %v2995 = vunpack.c.0.s8 %v2994
          %v2996 = vperm.slane %v2976, %v2995
          %v2998 = vunpack.c.l.s4 857870592
          %v2999 = vunpack.c.0.s8 %v2998
          %v3000 = vperm.slane %v2977, %v2999
          %v3002 = vunpack.c.l.s4 857870592
          %v3003 = vunpack.c.0.s8 %v3002
          %v3004 = vperm.slane %v2978, %v3003
          %v3006 = vunpack.c.l.s4 857870592
          %v3007 = vunpack.c.0.s8 %v3006
          %v3008 = vperm.slane %v2979, %v3007
          %v3010 = vunpack.c.l.s4 857870592
          %v3011 = vunpack.c.0.s8 %v3010
          %v3012 = vperm.slane %v2980, %v3011
          %vm3021 = vcmask 57344
          %vm3022 = vsmask.f32 256
          %vm3023 = vmand %vm3021, %vm3022
          %v3024 = vld [vmem:[%s675] sm:$0x1]
          %v3025 = vsel %vm3023, %v2984, %v3024
          %3026 = vst [vmem:[%s675] sm:$0x1] %v3025
          %v3027 = vld [vmem:[%s675 + $0x2] sm:$0x1]
          %v3028 = vsel %vm3023, %v2988, %v3027
          %3029 = vst [vmem:[%s675 + $0x2] sm:$0x1] %v3028
          %v3030 = vld [vmem:[%s675 + $0x4] sm:$0x1]
          %v3031 = vsel %vm3023, %v2992, %v3030
          %3032 = vst [vmem:[%s675 + $0x4] sm:$0x1] %v3031
          %v3033 = vld [vmem:[%s675 + $0x6] sm:$0x1]
          %v3034 = vsel %vm3023, %v2996, %v3033
          %3035 = vst [vmem:[%s675 + $0x6] sm:$0x1] %v3034
          %v3036 = vld [vmem:[%s675 + $0x8] sm:$0x1]
          %v3037 = vsel %vm3023, %v3000, %v3036
          %3038 = vst [vmem:[%s675 + $0x8] sm:$0x1] %v3037
          %v3039 = vld [vmem:[%s675 + $0xa] sm:$0x1]
          %v3040 = vsel %vm3023, %v3004, %v3039
          %3041 = vst [vmem:[%s675 + $0xa] sm:$0x1] %v3040
          %v3042 = vld [vmem:[%s675 + $0xc] sm:$0x1]
          %v3043 = vsel %vm3023, %v3008, %v3042
          %3044 = vst [vmem:[%s675 + $0xc] sm:$0x1] %v3043
          %v3045 = vld [vmem:[%s675 + $0xe] sm:$0x1]
          %v3046 = vsel %vm3023, %v3012, %v3045
          %3047 = vst [vmem:[%s675 + $0xe] sm:$0x1] %v3046
          %v3048 = vld [vmem:[%s2218] sm:$0xff]
          %v3049 = vld [vmem:[%s2210] sm:$0xff]
          %3051 = vset.pattern.permute.xlu0 0
          %3052 = vperm.xlu0 %3051, %v3049
          %v3053 = vpop.permute.xlu0 %3052
          %v3055 = vrcp.pop %v3053
          %v3056 = vmul.f32 %v3053, %v3055
          %v3057 = vsub.f32 1.0, %v3056
          %v3058 = vmul.f32 %v3055, %v3057
          %v3059 = vadd.f32 %v3055, %v3058
          %vm3060 = vweird.f32 %v3053
          %vm3061 = vweird.f32 %v3055
          %vm3062 = vmor %vm3060, %vm3061
          %v3063 = vsel %vm3062, %v3055, %v3059
          %v3064 = vand.u32 2147483647, %v3053
          %vm3065 = vcmp.eq.f32.partialorder %v3064, 8.507059e+37
          %v3066 = vand.u32 %v3053, 2147483648
          %v3067 = vor.u32 1.1754944e-38, %v3066
          %v3068 = vsel %vm3065, %v3067, %v3063
          %v3069 = vmul.f32 %v3048, %v3068
          %v3070 = vpack.c.bf16 %v3069, %v3069
          %v3072 = vrot.slane %v3070, 3
          %v3075 = vsel %vm2951, %v3070, %v3072
          %v3077 = vsel %vm1808, %v3070, %v3072
          %v3079 = vrot.slane %v3077, 1
          %v3080 = vsel %vm1810, %v3070, %v3072
          %v3082 = vrot.slane %v3080, 2
          %v3083 = vsel %vm1812, %v3070, %v3072
          %v3085 = vrot.slane %v3083, 3
          %v3086 = vunpack.i.l.s16 %v3075
          %v3087 = vunpack.i.h.s16 %v3075
          %v3088 = vunpack.i.l.s16 %v3079
          %v3089 = vunpack.i.h.s16 %v3079
          %v3090 = vunpack.i.l.s16 %v3082
          %v3091 = vunpack.i.h.s16 %v3082
          %v3092 = vunpack.i.l.s16 %v3085
          %v3093 = vunpack.i.h.s16 %v3085
          %v3094 = vpack.i.b16 %v3086, %v3086
          %v3095 = vpack.i.b16 %v3087, %v3087
          %v3096 = vpack.i.b16 %v3088, %v3088
          %v3097 = vpack.i.b16 %v3089, %v3089
          %v3098 = vpack.i.b16 %v3090, %v3090
          %v3099 = vpack.i.b16 %v3091, %v3091
          %v3100 = vpack.i.b16 %v3092, %v3092
          %v3101 = vpack.i.b16 %v3093, %v3093
          %v3103 = vunpack.c.l.s4 857870592
          %v3104 = vunpack.c.0.s8 %v3103
          %v3105 = vperm.slane %v3094, %v3104
          %v3107 = vunpack.c.l.s4 857870592
          %v3108 = vunpack.c.0.s8 %v3107
          %v3109 = vperm.slane %v3095, %v3108
          %v3111 = vunpack.c.l.s4 857870592
          %v3112 = vunpack.c.0.s8 %v3111
          %v3113 = vperm.slane %v3096, %v3112
          %v3115 = vunpack.c.l.s4 857870592
          %v3116 = vunpack.c.0.s8 %v3115
          %v3117 = vperm.slane %v3097, %v3116
          %v3119 = vunpack.c.l.s4 857870592
          %v3120 = vunpack.c.0.s8 %v3119
          %v3121 = vperm.slane %v3098, %v3120
          %v3123 = vunpack.c.l.s4 857870592
          %v3124 = vunpack.c.0.s8 %v3123
          %v3125 = vperm.slane %v3099, %v3124
          %v3127 = vunpack.c.l.s4 857870592
          %v3128 = vunpack.c.0.s8 %v3127
          %v3129 = vperm.slane %v3100, %v3128
          %v3131 = vunpack.c.l.s4 857870592
          %v3132 = vunpack.c.0.s8 %v3131
          %v3133 = vperm.slane %v3101, %v3132
          %vm3142 = vsmask.f32 7938
          %vm3143 = vmand %vm3021, %vm3142
          %v3144 = vld [vmem:[%s675] sm:$0x1]
          %v3145 = vsel %vm3143, %v3105, %v3144
          %3146 = vst [vmem:[%s675] sm:$0x1] %v3145
          %v3147 = vld [vmem:[%s675 + $0x2] sm:$0x1]
          %v3148 = vsel %vm3143, %v3109, %v3147
          %3149 = vst [vmem:[%s675 + $0x2] sm:$0x1] %v3148
          %v3150 = vld [vmem:[%s675 + $0x4] sm:$0x1]
          %v3151 = vsel %vm3143, %v3113, %v3150
          %3152 = vst [vmem:[%s675 + $0x4] sm:$0x1] %v3151
          %v3153 = vld [vmem:[%s675 + $0x6] sm:$0x1]
          %v3154 = vsel %vm3143, %v3117, %v3153
          %3155 = vst [vmem:[%s675 + $0x6] sm:$0x1] %v3154
          %v3156 = vld [vmem:[%s675 + $0x8] sm:$0x1]
          %v3157 = vsel %vm3143, %v3121, %v3156
          %3158 = vst [vmem:[%s675 + $0x8] sm:$0x1] %v3157
          %v3159 = vld [vmem:[%s675 + $0xa] sm:$0x1]
          %v3160 = vsel %vm3143, %v3125, %v3159
          %3161 = vst [vmem:[%s675 + $0xa] sm:$0x1] %v3160
          %v3162 = vld [vmem:[%s675 + $0xc] sm:$0x1]
          %v3163 = vsel %vm3143, %v3129, %v3162
          %3164 = vst [vmem:[%s675 + $0xc] sm:$0x1] %v3163
          %v3165 = vld [vmem:[%s675 + $0xe] sm:$0x1]
          %v3166 = vsel %vm3143, %v3133, %v3165
          %3167 = vst [vmem:[%s675 + $0xe] sm:$0x1] %v3166
          %v3168 = vld [vmem:[%s2528] sm:$0xff]
          %v3169 = vld [vmem:[%s2520] sm:$0xff]
          %3171 = vset.pattern.permute.xlu0 0
          %3172 = vperm.xlu0 %3171, %v3169
          %v3173 = vpop.permute.xlu0 %3172
          %v3175 = vrcp.pop %v3173
          %v3176 = vmul.f32 %v3173, %v3175
          %v3177 = vsub.f32 1.0, %v3176
          %v3178 = vmul.f32 %v3175, %v3177
          %v3179 = vadd.f32 %v3175, %v3178
          %vm3180 = vweird.f32 %v3173
          %vm3181 = vweird.f32 %v3175
          %vm3182 = vmor %vm3180, %vm3181
          %v3183 = vsel %vm3182, %v3175, %v3179
          %v3184 = vand.u32 2147483647, %v3173
          %vm3185 = vcmp.eq.f32.partialorder %v3184, 8.507059e+37
          %v3186 = vand.u32 %v3173, 2147483648
          %v3187 = vor.u32 1.1754944e-38, %v3186
          %v3188 = vsel %vm3185, %v3187, %v3183
          %v3189 = vmul.f32 %v3168, %v3188
          %v3190 = vpack.c.bf16 %v3189, %v3189
          %v3192 = vrot.slane %v3190, 3
          %v3195 = vsel %vm2951, %v3190, %v3192
          %v3197 = vsel %vm1808, %v3190, %v3192
          %v3199 = vrot.slane %v3197, 1
          %v3200 = vsel %vm1810, %v3190, %v3192
          %v3202 = vrot.slane %v3200, 2
          %v3203 = vsel %vm1812, %v3190, %v3192
          %v3205 = vrot.slane %v3203, 3
          %v3206 = vunpack.i.l.s16 %v3195
          %v3207 = vunpack.i.h.s16 %v3195
          %v3208 = vunpack.i.l.s16 %v3199
          %v3209 = vunpack.i.h.s16 %v3199
          %v3210 = vunpack.i.l.s16 %v3202
          %v3211 = vunpack.i.h.s16 %v3202
          %v3212 = vunpack.i.l.s16 %v3205
          %v3213 = vunpack.i.h.s16 %v3205
          %v3214 = vpack.i.b16 %v3206, %v3206
          %v3215 = vpack.i.b16 %v3207, %v3207
          %v3216 = vpack.i.b16 %v3208, %v3208
          %v3217 = vpack.i.b16 %v3209, %v3209
          %v3218 = vpack.i.b16 %v3210, %v3210
          %v3219 = vpack.i.b16 %v3211, %v3211
          %v3220 = vpack.i.b16 %v3212, %v3212
          %v3221 = vpack.i.b16 %v3213, %v3213
          %v3223 = vunpack.c.l.s4 857870592
          %v3224 = vunpack.c.0.s8 %v3223
          %v3225 = vperm.slane %v3214, %v3224
          %v3227 = vunpack.c.l.s4 857870592
          %v3228 = vunpack.c.0.s8 %v3227
          %v3229 = vperm.slane %v3215, %v3228
          %v3231 = vunpack.c.l.s4 857870592
          %v3232 = vunpack.c.0.s8 %v3231
          %v3233 = vperm.slane %v3216, %v3232
          %v3235 = vunpack.c.l.s4 857870592
          %v3236 = vunpack.c.0.s8 %v3235
          %v3237 = vperm.slane %v3217, %v3236
          %v3239 = vunpack.c.l.s4 857870592
          %v3240 = vunpack.c.0.s8 %v3239
          %v3241 = vperm.slane %v3218, %v3240
          %v3243 = vunpack.c.l.s4 857870592
          %v3244 = vunpack.c.0.s8 %v3243
          %v3245 = vperm.slane %v3219, %v3244
          %v3247 = vunpack.c.l.s4 857870592
          %v3248 = vunpack.c.0.s8 %v3247
          %v3249 = vperm.slane %v3220, %v3248
          %v3251 = vunpack.c.l.s4 857870592
          %v3252 = vunpack.c.0.s8 %v3251
          %v3253 = vperm.slane %v3221, %v3252
          %vm3262 = vcmask 58369
          %vm3263 = vsmask.f32 1280
          %vm3264 = vmand %vm3262, %vm3263
          %v3265 = vld [vmem:[%s675] sm:$0x2]
          %v3266 = vsel %vm3264, %v3225, %v3265
          %3267 = vst [vmem:[%s675] sm:$0x2] %v3266
          %v3268 = vld [vmem:[%s675 + $0x2] sm:$0x2]
          %v3269 = vsel %vm3264, %v3229, %v3268
          %3270 = vst [vmem:[%s675 + $0x2] sm:$0x2] %v3269
          %v3271 = vld [vmem:[%s675 + $0x4] sm:$0x2]
          %v3272 = vsel %vm3264, %v3233, %v3271
          %3273 = vst [vmem:[%s675 + $0x4] sm:$0x2] %v3272
          %v3274 = vld [vmem:[%s675 + $0x6] sm:$0x2]
          %v3275 = vsel %vm3264, %v3237, %v3274
          %3276 = vst [vmem:[%s675 + $0x6] sm:$0x2] %v3275
          %v3277 = vld [vmem:[%s675 + $0x8] sm:$0x2]
          %v3278 = vsel %vm3264, %v3241, %v3277
          %3279 = vst [vmem:[%s675 + $0x8] sm:$0x2] %v3278
          %v3280 = vld [vmem:[%s675 + $0xa] sm:$0x2]
          %v3281 = vsel %vm3264, %v3245, %v3280
          %3282 = vst [vmem:[%s675 + $0xa] sm:$0x2] %v3281
          %v3283 = vld [vmem:[%s675 + $0xc] sm:$0x2]
          %v3284 = vsel %vm3264, %v3249, %v3283
          %3285 = vst [vmem:[%s675 + $0xc] sm:$0x2] %v3284
          %v3286 = vld [vmem:[%s675 + $0xe] sm:$0x2]
          %v3287 = vsel %vm3264, %v3253, %v3286
          %3288 = vst [vmem:[%s675 + $0xe] sm:$0x2] %v3287
          %v3289 = vld [vmem:[%s2844] sm:$0xff]
          %v3290 = vld [vmem:[%s2836] sm:$0xff]
          %3292 = vset.pattern.permute.xlu0 0
          %3293 = vperm.xlu0 %3292, %v3290
          %v3294 = vpop.permute.xlu0 %3293
          %v3296 = vrcp.pop %v3294
          %v3297 = vmul.f32 %v3294, %v3296
          %v3298 = vsub.f32 1.0, %v3297
          %v3299 = vmul.f32 %v3296, %v3298
          %v3300 = vadd.f32 %v3296, %v3299
          %vm3301 = vweird.f32 %v3294
          %vm3302 = vweird.f32 %v3296
          %vm3303 = vmor %vm3301, %vm3302
          %v3304 = vsel %vm3303, %v3296, %v3300
          %v3305 = vand.u32 2147483647, %v3294
          %vm3306 = vcmp.eq.f32.partialorder %v3305, 8.507059e+37
          %v3307 = vand.u32 %v3294, 2147483648
          %v3308 = vor.u32 1.1754944e-38, %v3307
          %v3309 = vsel %vm3306, %v3308, %v3304
          %v3310 = vmul.f32 %v3289, %v3309
          %v3311 = vpack.c.bf16 %v3310, %v3310
          %v3313 = vrot.slane %v3311, 3
          %v3316 = vsel %vm2951, %v3311, %v3313
          %v3318 = vsel %vm1808, %v3311, %v3313
          %v3320 = vrot.slane %v3318, 1
          %v3321 = vsel %vm1810, %v3311, %v3313
          %v3323 = vrot.slane %v3321, 2
          %v3324 = vsel %vm1812, %v3311, %v3313
          %v3326 = vrot.slane %v3324, 3
          %v3327 = vunpack.i.l.s16 %v3316
          %v3328 = vunpack.i.h.s16 %v3316
          %v3329 = vunpack.i.l.s16 %v3320
          %v3330 = vunpack.i.h.s16 %v3320
          %v3331 = vunpack.i.l.s16 %v3323
          %v3332 = vunpack.i.h.s16 %v3323
          %v3333 = vunpack.i.l.s16 %v3326
          %v3334 = vunpack.i.h.s16 %v3326
          %v3335 = vpack.i.b16 %v3327, %v3327
          %v3336 = vpack.i.b16 %v3328, %v3328
          %v3337 = vpack.i.b16 %v3329, %v3329
          %v3338 = vpack.i.b16 %v3330, %v3330
          %v3339 = vpack.i.b16 %v3331, %v3331
          %v3340 = vpack.i.b16 %v3332, %v3332
          %v3341 = vpack.i.b16 %v3333, %v3333
          %v3342 = vpack.i.b16 %v3334, %v3334
          %v3344 = vunpack.c.l.s4 857870592
          %v3345 = vunpack.c.0.s8 %v3344
          %v3346 = vperm.slane %v3335, %v3345
          %v3348 = vunpack.c.l.s4 857870592
          %v3349 = vunpack.c.0.s8 %v3348
          %v3350 = vperm.slane %v3336, %v3349
          %v3352 = vunpack.c.l.s4 857870592
          %v3353 = vunpack.c.0.s8 %v3352
          %v3354 = vperm.slane %v3337, %v3353
          %v3356 = vunpack.c.l.s4 857870592
          %v3357 = vunpack.c.0.s8 %v3356
          %v3358 = vperm.slane %v3338, %v3357
          %v3360 = vunpack.c.l.s4 857870592
          %v3361 = vunpack.c.0.s8 %v3360
          %v3362 = vperm.slane %v3339, %v3361
          %v3364 = vunpack.c.l.s4 857870592
          %v3365 = vunpack.c.0.s8 %v3364
          %v3366 = vperm.slane %v3340, %v3365
          %v3368 = vunpack.c.l.s4 857870592
          %v3369 = vunpack.c.0.s8 %v3368
          %v3370 = vperm.slane %v3341, %v3369
          %v3372 = vunpack.c.l.s4 857870592
          %v3373 = vunpack.c.0.s8 %v3372
          %v3374 = vperm.slane %v3342, %v3373
          %vm3383 = vsmask.f32 7942
          %vm3384 = vmand %vm3262, %vm3383
          %v3385 = vld [vmem:[%s675] sm:$0x2]
          %v3386 = vsel %vm3384, %v3346, %v3385
          %3387 = vst [vmem:[%s675] sm:$0x2] %v3386
          %v3388 = vld [vmem:[%s675 + $0x2] sm:$0x2]
          %v3389 = vsel %vm3384, %v3350, %v3388
          %3390 = vst [vmem:[%s675 + $0x2] sm:$0x2] %v3389
          %v3391 = vld [vmem:[%s675 + $0x4] sm:$0x2]
          %v3392 = vsel %vm3384, %v3354, %v3391
          %3393 = vst [vmem:[%s675 + $0x4] sm:$0x2] %v3392
          %v3394 = vld [vmem:[%s675 + $0x6] sm:$0x2]
          %v3395 = vsel %vm3384, %v3358, %v3394
          %3396 = vst [vmem:[%s675 + $0x6] sm:$0x2] %v3395
          %v3397 = vld [vmem:[%s675 + $0x8] sm:$0x2]
          %v3398 = vsel %vm3384, %v3362, %v3397
          %3399 = vst [vmem:[%s675 + $0x8] sm:$0x2] %v3398
          %v3400 = vld [vmem:[%s675 + $0xa] sm:$0x2]
          %v3401 = vsel %vm3384, %v3366, %v3400
          %3402 = vst [vmem:[%s675 + $0xa] sm:$0x2] %v3401
          %v3403 = vld [vmem:[%s675 + $0xc] sm:$0x2]
          %v3404 = vsel %vm3384, %v3370, %v3403
          %3405 = vst [vmem:[%s675 + $0xc] sm:$0x2] %v3404
          %v3406 = vld [vmem:[%s675 + $0xe] sm:$0x2]
          %v3407 = vsel %vm3384, %v3374, %v3406
          %3408 = vst [vmem:[%s675 + $0xe] sm:$0x2] %v3407
        $region179: #{moe_model_forward.18} parent=158 // pred_fallthru
          _
        %s3409 = smul.u32 8, %s26
        %p3410 = scmp.lt.s32.totalorder %s24, 1
        %s3411 = scalar_select %p3410, %s24, 1
        %p3412 = scmp.lt.s32.totalorder %s3409, 7
        %s3413 = scalar_select %p3412, %s3409, 7
        %p3414 = scmp.lt.s32.totalorder %s25, 0
        %s3415 = scalar_select %p3414, %s25, 0
        %s3416 = sadd.s32 %s3415, %s3413
        %s3417 = smul.addr %s3411, 8
        %s3418 = sadd.s32 %s3416, %s3417
        %s3419 = smul.addr %s3418, 2
        %s3420 = scalar_lea.vmem %s7, %s3419
        // Predicated region
        $region180: #{moe_model_forward.18} parent=158 // pred_check
          %p3421 = pneg %p260
        $region181: #{moe_model_forward.18} parent=158 // pred_check_branch
          %3423 = sbr.rel (%p3421) target = $region183
        $region182: #{moe_model_forward.18} parent=158 // pred_region
          %s3424 = smul.u32 8, %s26
        $region183: #{moe_model_forward.18} parent=158 // pred_fallthru
          _
      $region159: #{moe_model_forward.18} parent=5 // pred_fallthru
        _
      %p3425 = scmp.le.s32.totalorder 2, %s13
      // Predicated region
      $region184: #{moe_model_forward.18} parent=5 // pred_check
        %p3426 = pneg %p3425
      $region185: #{moe_model_forward.18} parent=5 // pred_check_branch
        %3428 = sbr.rel (%p3426) target = $region187
      $region186: #{moe_model_forward.18} parent=5 // pred_region
        %s3429 = ssub.s32 %s13, 2
        // Predicated region
        $region188: #{moe_model_forward.18} parent=186 // pred_check
          %p3430 = pneg %p266
        $region189: #{moe_model_forward.18} parent=186 // pred_check_branch
          %3432 = sbr.rel (%p3430) target = $region191
        $region190: #{moe_model_forward.18} parent=186 // pred_region
          %s3433 = smul.u32 8, %s30
          %p3434 = scmp.lt.s32.totalorder %s28, 1
          %s3435 = scalar_select %p3434, %s28, 1
          %p3436 = scmp.lt.s32.totalorder %s3433, 7
          %s3437 = scalar_select %p3436, %s3433, 7
          %p3438 = scmp.lt.s32.totalorder %s29, 0
          %s3439 = scalar_select %p3438, %s29, 0
          %s3440 = sadd.s32 %s3439, %s3437
          %s3441 = smul.addr %s3435, 8
          %s3442 = sadd.s32 %s3440, %s3441
          %s3443 = smul.addr %s3442, 2
          %s3444 = scalar_lea.vmem %s7, %s3443
        $region191: #{moe_model_forward.18} parent=186 // pred_fallthru
          _
      $region187: #{moe_model_forward.18} parent=5 // pred_fallthru
        _
    $region6: #{moe_model_forward.18} parent=1 // loop_footer
      %s17 = sadd.s32 1, %s13
    $region7: #{moe_model_forward.18} parent=1 // loop_footer_branch
      %12 = sbr.rel target = $region3
    $region8: #{moe_model_forward.18} parent=1 // loop_exit
      _

</llo_original>
